<compile_context>
chip_gen: v7x
topology: tpu7x:2x2x1
jax: 0.10.0
libtpu: 0.0.40
codegen_flags: <defaults>
</compile_context>

<pallas_src>
import functools
import math

import jax
import jax.numpy as jnp
from jax.experimental import pallas as pl
from jax.experimental.pallas import tpu as pltpu

# ----------------------------------------------------------------------------
# Small synthetic ViT config (structure of google/vit-base-patch16-224-in21k,
# scaled down).
# ----------------------------------------------------------------------------
IMG = 32             # image spatial size
PATCH = 16           # patch size (== conv kernel == conv stride)
CHANNELS = 3
HIDDEN = 128         # hidden_size
NUM_HEADS = 4
HEAD_DIM = HIDDEN // NUM_HEADS
MLP_DIM = 256        # intermediate_size
NUM_LAYERS = 2
NUM_CLASSES = 2
LN_EPS = 1e-12       # HF ViT layer_norm_eps

N_PATCHES = (IMG // PATCH) ** 2          # 4
PATCH_DIM = CHANNELS * PATCH * PATCH     # 768
SEQ_REAL = N_PATCHES + 1                 # 5  ([CLS] + patches)
SEQ_PAD = 8                              # padded to one full sublane
NCLS_PAD = 128                           # lane-dense classifier output


# ----------------------------------------------------------------------------
# Kernel helpers (traced inside the Pallas kernel; f32 math on the VPU)
# ----------------------------------------------------------------------------
def _layernorm(x, g, b):
    mean = jnp.mean(x, axis=-1, keepdims=True)
    cen = x - mean
    var = jnp.mean(cen * cen, axis=-1, keepdims=True)
    return cen * jax.lax.rsqrt(var + LN_EPS) * g + b


def _gelu(x):
    # TODO(synk): HF ViT uses exact erf-GELU; tanh approximation used here.
    c = math.sqrt(2.0 / math.pi)
    return 0.5 * x * (1.0 + jnp.tanh(c * (x + 0.044715 * x * x * x)))


def _mxu(a_f32, w_bf16):
    # Activations cast to bf16 just before the MXU; weights already bf16.
    return jnp.dot(a_f32.astype(jnp.bfloat16), w_bf16,
                   preferred_element_type=jnp.float32)


# ----------------------------------------------------------------------------
# Fused forward kernel: grid = (batch, layer)
#   layer == 0      : patch-embed + [CLS] + pos-emb  -> VMEM carry
#   every layer step: pre-LN encoder block (carry -> carry)
#   layer == L - 1  : final LayerNorm on CLS row + classifier head -> logits
# ----------------------------------------------------------------------------
def _vit_fused_kernel(patches_ref, patch_w_ref, patch_b_ref, cls_ref, pos_ref,
                      ln1g_ref, ln1b_ref, wqkv_ref, bqkv_ref, wo_ref, bo_ref,
                      ln2g_ref, ln2b_ref, w1_ref, b1_ref, w2_ref, b2_ref,
                      lnfg_ref, lnfb_ref, fcw_ref, fcb_ref,
                      logits_ref, carry_ref,
                      *, num_heads, head_dim, seq_real, n_patches):
    layer = pl.program_id(1)
    hidden = num_heads * head_dim
    seq_pad = carry_ref.shape[0]

    # ---- layer 0: patch embedding + [CLS] + position embeddings ----
    @pl.when(layer == 0)
    def _():
        p = patches_ref[...][0]                                  # [nP, C*P*P]
        emb = _mxu(p, patch_w_ref[...]) + patch_b_ref[...]       # [nP, H]
        pos = pos_ref[...]                                       # [Sp, H]
        carry_ref[0:1, :] = cls_ref[...] + pos[0:1, :]
        carry_ref[1:1 + n_patches, :] = emb + pos[1:1 + n_patches, :]
        # zero the padded rows so their (masked) K/V values stay finite
        carry_ref[1 + n_patches:seq_pad, :] = jnp.zeros(
            (seq_pad - 1 - n_patches, hidden), jnp.float32)

    # ---- encoder block `layer` (pre-LN) ----
    x = carry_ref[...]                                           # [Sp, H] f32

    # key-padding mask bias: 0 for real keys, -1e30 for pad columns
    key_idx = jax.lax.broadcasted_iota(jnp.int32, (1, seq_pad), 1)
    mask_bias = jnp.where(key_idx < seq_real, 0.0, -1e30)

    xn = _layernorm(x, ln1g_ref[...][0], ln1b_ref[...][0])
    qkv = _mxu(xn, wqkv_ref[...][0]) + bqkv_ref[...][0]          # [Sp, 3H]

    scale = 1.0 / math.sqrt(head_dim)
    o_heads = []
    # TODO(synk): the per-head score/PV matmuls could be batched into a single
    # masked [nh*S, nh*S] MXU pass; kept unrolled (4 heads) at these tiny sizes.
    for hh in range(num_heads):
        q_h = qkv[:, hh * head_dim:(hh + 1) * head_dim]
        k_h = qkv[:, hidden + hh * head_dim:hidden + (hh + 1) * head_dim]
        v_h = qkv[:, 2 * hidden + hh * head_dim:
                  2 * hidden + (hh + 1) * head_dim]
        s = jax.lax.dot_general(q_h.astype(jnp.bfloat16),
                                k_h.astype(jnp.bfloat16),
                                (((1,), (1,)), ((), ())),
                                preferred_element_type=jnp.float32)
        s = s * scale + mask_bias
        s = s - jnp.max(s, axis=-1, keepdims=True)
        p = jnp.exp(s)
        p = p * pl.reciprocal(jnp.sum(p, axis=-1, keepdims=True), approx=False)
        o_heads.append(jnp.dot(p.astype(jnp.bfloat16),
                               v_h.astype(jnp.bfloat16),
                               preferred_element_type=jnp.float32))
    # heads occupy disjoint 32-lane slices -> assemble one [Sp, H] tile and do
    # a single full 128-contraction output projection.
    o_cat = jnp.concatenate(o_heads, axis=-1)                    # [Sp, H]
    attn = _mxu(o_cat, wo_ref[...][0]) + bo_ref[...][0]
    h1 = x + attn                                                # residual

    hn = _layernorm(h1, ln2g_ref[...][0], ln2b_ref[...][0])
    m = _mxu(hn, w1_ref[...][0]) + b1_ref[...][0]
    m = _gelu(m)
    m2 = _mxu(m, w2_ref[...][0]) + b2_ref[...][0]
    out = h1 + m2                                                # residual
    carry_ref[...] = out

    # ---- last layer: final LN (CLS row) + dropout (identity) + classifier ----
    @pl.when(layer == pl.num_programs(1) - 1)
    def _():
        cls_row = out[0:1, :]                                    # [1, H]
        y = _layernorm(cls_row, lnfg_ref[...], lnfb_ref[...])
        logits = _mxu(y, fcw_ref[...]) + fcb_ref[...]            # [1, NCLS_PAD]
        logits_ref[...] = logits[None].astype(logits_ref.dtype)


# ----------------------------------------------------------------------------
# Parameters (deterministic synthetic init).  PyTorch Linear weights [out, in]
# are stored transposed as [in, out]; q/k/v fused into one [H, 3H] matrix;
# per-layer weights stacked on a leading [L, ...] axis; matmul weights bf16.
# ----------------------------------------------------------------------------
def init_params(key):
    keys = jax.random.split(key, 5)

    def nrm(k, shape, dtype=jnp.float32):
        return (0.02 * jax.random.normal(k, shape)).astype(dtype)

    lk = jax.random.split(keys[4], 4)

    fc_w = nrm(keys[3], (HIDDEN, NUM_CLASSES))
    fc_w = jnp.pad(fc_w, ((0, 0), (0, NCLS_PAD - NUM_CLASSES)))

    pos = nrm(keys[2], (SEQ_REAL, HIDDEN))
    pos = jnp.pad(pos, ((0, SEQ_PAD - SEQ_REAL), (0, 0)))

    return {
        # embedding
        "patch_w": nrm(keys[0], (PATCH_DIM, HIDDEN), jnp.bfloat16),
        "patch_b": jnp.zeros((1, HIDDEN), jnp.float32),
        "cls_token": nrm(keys[1], (1, HIDDEN)),
        "pos_emb": pos,                                   # [SEQ_PAD, H]
        # encoder (stacked over layers)
        "ln1_g": jnp.ones((NUM_LAYERS, 1, HIDDEN), jnp.float32),
        "ln1_b": jnp.zeros((NUM_LAYERS, 1, HIDDEN), jnp.float32),
        "wqkv": nrm(lk[0], (NUM_LAYERS, HIDDEN, 3 * HIDDEN), jnp.bfloat16),
        "bqkv": jnp.zeros((NUM_LAYERS, 1, 3 * HIDDEN), jnp.float32),
        "wo": nrm(lk[1], (NUM_LAYERS, HIDDEN, HIDDEN), jnp.bfloat16),
        "bo": jnp.zeros((NUM_LAYERS, 1, HIDDEN), jnp.float32),
        "ln2_g": jnp.ones((NUM_LAYERS, 1, HIDDEN), jnp.float32),
        "ln2_b": jnp.zeros((NUM_LAYERS, 1, HIDDEN), jnp.float32),
        "w1": nrm(lk[2], (NUM_LAYERS, HIDDEN, MLP_DIM), jnp.bfloat16),
        "b1": jnp.zeros((NUM_LAYERS, 1, MLP_DIM), jnp.float32),
        "w2": nrm(lk[3], (NUM_LAYERS, MLP_DIM, HIDDEN), jnp.bfloat16),
        "b2": jnp.zeros((NUM_LAYERS, 1, HIDDEN), jnp.float32),
        # final LN + classifier head
        "ln_g": jnp.ones((1, HIDDEN), jnp.float32),
        "ln_b": jnp.zeros((1, HIDDEN), jnp.float32),
        "fc_w": fc_w.astype(jnp.bfloat16),                # [H, NCLS_PAD]
        "fc_b": jnp.zeros((1, NCLS_PAD), jnp.float32),
    }


# ----------------------------------------------------------------------------
# Forward pass (dropout layers are identity — eval semantics)
# ----------------------------------------------------------------------------
@jax.jit
def vit_forward(params, x):
    # x: [B, C, H, W] (NCHW, matching the PyTorch conv input)
    B, C, Himg, Wimg = x.shape
    P = PATCH
    nP = (Himg // P) * (Wimg // P)

    # Patchify (XLA glue) so the patch-embedding conv becomes a Pallas matmul.
    patches = x.reshape(B, C, Himg // P, P, Wimg // P, P)
    patches = patches.transpose(0, 2, 4, 1, 3, 5).reshape(B, nP, C * P * P)

    kernel = functools.partial(_vit_fused_kernel,
                               num_heads=NUM_HEADS, head_dim=HEAD_DIM,
                               seq_real=SEQ_REAL, n_patches=nP)

    def const2(shape):
        return pl.BlockSpec(shape, lambda b, l: (0, 0))

    def perlayer(shape):
        return pl.BlockSpec(shape, lambda b, l: (l, 0, 0))

    logits_pad = pl.pallas_call(
        kernel,
        out_shape=jax.ShapeDtypeStruct((B, 1, NCLS_PAD), jnp.float32),
        grid=(B, NUM_LAYERS),
        in_specs=[
            pl.BlockSpec((1, nP, C * P * P), lambda b, l: (b, 0, 0)),  # patches
            const2((PATCH_DIM, HIDDEN)),          # patch_w (bf16)
            const2((1, HIDDEN)),                  # patch_b
            const2((1, HIDDEN)),                  # cls_token
            const2((SEQ_PAD, HIDDEN)),            # pos_emb
            perlayer((1, 1, HIDDEN)),             # ln1_g
            perlayer((1, 1, HIDDEN)),             # ln1_b
            perlayer((1, HIDDEN, 3 * HIDDEN)),    # wqkv (bf16)
            perlayer((1, 1, 3 * HIDDEN)),         # bqkv
            perlayer((1, HIDDEN, HIDDEN)),        # wo (bf16)
            perlayer((1, 1, HIDDEN)),             # bo
            perlayer((1, 1, HIDDEN)),             # ln2_g
            perlayer((1, 1, HIDDEN)),             # ln2_b
            perlayer((1, HIDDEN, MLP_DIM)),       # w1 (bf16)
            perlayer((1, 1, MLP_DIM)),            # b1
            perlayer((1, MLP_DIM, HIDDEN)),       # w2 (bf16)
            perlayer((1, 1, HIDDEN)),             # b2
            const2((1, HIDDEN)),                  # final ln_g
            const2((1, HIDDEN)),                  # final ln_b
            const2((HIDDEN, NCLS_PAD)),           # fc_w (bf16)
            const2((1, NCLS_PAD)),                # fc_b
        ],
        out_specs=pl.BlockSpec((1, 1, NCLS_PAD), lambda b, l: (b, 0, 0)),
        scratch_shapes=[pltpu.VMEM((SEQ_PAD, HIDDEN), jnp.float32)],
        compiler_params=pltpu.CompilerParams(
            dimension_semantics=("parallel", "arbitrary"),
            vmem_limit_bytes=32 * 1024 * 1024),
    )(patches,
      params["patch_w"], params["patch_b"], params["cls_token"],
      params["pos_emb"],
      params["ln1_g"], params["ln1_b"], params["wqkv"], params["bqkv"],
      params["wo"], params["bo"], params["ln2_g"], params["ln2_b"],
      params["w1"], params["b1"], params["w2"], params["b2"],
      params["ln_g"], params["ln_b"], params["fc_w"], params["fc_b"])

    return logits_pad[:, 0, :NUM_CLASSES]


if __name__ == "__main__":
    key = jax.random.PRNGKey(0)
    pkey, xkey = jax.random.split(key)
    params = init_params(pkey)
    x = jax.random.normal(xkey, (2, CHANNELS, IMG, IMG), dtype=jnp.float32)

    logits = vit_forward(params, x)
    logits = jax.block_until_ready(logits)
    assert logits.shape == (2, NUM_CLASSES), logits.shape
    assert bool(jnp.all(jnp.isfinite(logits)))
    print("KERNEL_OK")
</pallas_src>

<mosaic_0001>
module attributes {stable_mosaic.version = 11 : i64} {
  func.func @_vit_fused_kernel(%arg0: i32, %arg1: i32, %arg2: memref<1x4x768xf32, #tpu.memory_space<vmem>>, %arg3: memref<768x128xbf16, #tpu.memory_space<vmem>>, %arg4: memref<1x128xf32, #tpu.memory_space<vmem>>, %arg5: memref<1x128xf32, #tpu.memory_space<vmem>>, %arg6: memref<8x128xf32, #tpu.memory_space<vmem>>, %arg7: memref<1x1x128xf32, #tpu.memory_space<vmem>>, %arg8: memref<1x1x128xf32, #tpu.memory_space<vmem>>, %arg9: memref<1x128x384xbf16, #tpu.memory_space<vmem>>, %arg10: memref<1x1x384xf32, #tpu.memory_space<vmem>>, %arg11: memref<1x128x128xbf16, #tpu.memory_space<vmem>>, %arg12: memref<1x1x128xf32, #tpu.memory_space<vmem>>, %arg13: memref<1x1x128xf32, #tpu.memory_space<vmem>>, %arg14: memref<1x1x128xf32, #tpu.memory_space<vmem>>, %arg15: memref<1x128x256xbf16, #tpu.memory_space<vmem>>, %arg16: memref<1x1x256xf32, #tpu.memory_space<vmem>>, %arg17: memref<1x256x128xbf16, #tpu.memory_space<vmem>>, %arg18: memref<1x1x128xf32, #tpu.memory_space<vmem>>, %arg19: memref<1x128xf32, #tpu.memory_space<vmem>>, %arg20: memref<1x128xf32, #tpu.memory_space<vmem>>, %arg21: memref<128x128xbf16, #tpu.memory_space<vmem>>, %arg22: memref<1x128xf32, #tpu.memory_space<vmem>>, %arg23: memref<1x1x128xf32, #tpu.memory_space<vmem>>, %arg24: memref<8x128xf32, #tpu.memory_space<vmem>>) attributes {dimension_semantics = [#tpu.dimension_semantics<parallel>, #tpu.dimension_semantics<arbitrary>], iteration_bounds = array<i64: 2, 2>, scalar_prefetch = 0 : i64, scratch_operands = 1 : i64, tpu.core_type = #tpu.core_type<tc>, window_params = [{transform_indices = @transform_0, window_bounds = array<i64: 1, 4, 768>}, {pipeline_mode = #tpu.pipeline_mode<synchronous>, transform_indices = @transform_1, window_bounds = array<i64: 768, 128>}, {pipeline_mode = #tpu.pipeline_mode<synchronous>, transform_indices = @transform_2, window_bounds = array<i64: 1, 128>}, {pipeline_mode = #tpu.pipeline_mode<synchronous>, transform_indices = @transform_3, window_bounds = array<i64: 1, 128>}, {pipeline_mode = #tpu.pipeline_mode<synchronous>, transform_indices = @transform_4, window_bounds = array<i64: 8, 128>}, {transform_indices = @transform_5, window_bounds = array<i64: 1, 1, 128>}, {transform_indices = @transform_6, window_bounds = array<i64: 1, 1, 128>}, {transform_indices = @transform_7, window_bounds = array<i64: 1, 128, 384>}, {transform_indices = @transform_8, window_bounds = array<i64: 1, 1, 384>}, {transform_indices = @transform_9, window_bounds = array<i64: 1, 128, 128>}, {transform_indices = @transform_10, window_bounds = array<i64: 1, 1, 128>}, {transform_indices = @transform_11, window_bounds = array<i64: 1, 1, 128>}, {transform_indices = @transform_12, window_bounds = array<i64: 1, 1, 128>}, {transform_indices = @transform_13, window_bounds = array<i64: 1, 128, 256>}, {transform_indices = @transform_14, window_bounds = array<i64: 1, 1, 256>}, {transform_indices = @transform_15, window_bounds = array<i64: 1, 256, 128>}, {transform_indices = @transform_16, window_bounds = array<i64: 1, 1, 128>}, {pipeline_mode = #tpu.pipeline_mode<synchronous>, transform_indices = @transform_17, window_bounds = array<i64: 1, 128>}, {pipeline_mode = #tpu.pipeline_mode<synchronous>, transform_indices = @transform_18, window_bounds = array<i64: 1, 128>}, {pipeline_mode = #tpu.pipeline_mode<synchronous>, transform_indices = @transform_19, window_bounds = array<i64: 128, 128>}, {pipeline_mode = #tpu.pipeline_mode<synchronous>, transform_indices = @transform_20, window_bounds = array<i64: 1, 128>}, {transform_indices = @transform_21, window_bounds = array<i64: 1, 1, 128>}]} {
    %c0_i32 = arith.constant 0 : i32
    %0 = arith.cmpi eq, %arg1, %c0_i32 : i32
    %1 = arith.extui %0 : i1 to i32
    %c0_i32_0 = arith.constant 0 : i32
    %2 = arith.cmpi ne, %1, %c0_i32_0 : i32
    scf.if %2 {
      %c0_80 = arith.constant 0 : index
      %c0_81 = arith.constant 0 : index
      %c0_82 = arith.constant 0 : index
      %202 = vector.load %arg2[%c0_80, %c0_81, %c0_82] : memref<1x4x768xf32, #tpu.memory_space<vmem>>, vector<1x4x768xf32>
      %203 = vector.shape_cast %202 : vector<1x4x768xf32> to vector<4x768xf32>
      %c0_83 = arith.constant 0 : index
      %c0_84 = arith.constant 0 : index
      %204 = vector.load %arg3[%c0_83, %c0_84] : memref<768x128xbf16, #tpu.memory_space<vmem>>, vector<768x128xbf16>
      %205 = arith.truncf %203 : vector<4x768xf32> to vector<4x768xbf16>
      %cst_85 = arith.constant dense<0.000000e+00> : vector<4x128xf32>
      %206 = tpu.matmul %205, %204, %cst_85 {dimension_numbers = #tpu.dot_dimension_numbers<[1], [0], [0], [1], [0, 0, 1, 1], [], []>} : vector<4x768xbf16>, vector<768x128xbf16>, vector<4x128xf32> -> vector<4x128xf32>
      %c0_86 = arith.constant 0 : index
      %c0_87 = arith.constant 0 : index
      %207 = vector.load %arg4[%c0_86, %c0_87] : memref<1x128xf32, #tpu.memory_space<vmem>>, vector<1x128xf32>
      %208 = vector.broadcast %207 : vector<1x128xf32> to vector<4x128xf32>
      %209 = arith.addf %206, %208 : vector<4x128xf32>
      %c0_88 = arith.constant 0 : index
      %c0_89 = arith.constant 0 : index
      %210 = vector.load %arg6[%c0_88, %c0_89] : memref<8x128xf32, #tpu.memory_space<vmem>>, vector<8x128xf32>
      %c0_90 = arith.constant 0 : index
      %c0_91 = arith.constant 0 : index
      %211 = vector.load %arg5[%c0_90, %c0_91] : memref<1x128xf32, #tpu.memory_space<vmem>>, vector<1x128xf32>
      %212 = vector.extract_strided_slice %210 {offsets = [0, 0], sizes = [1, 128], strides = [1, 1]} : vector<8x128xf32> to vector<1x128xf32>
      %213 = arith.addf %211, %212 : vector<1x128xf32>
      %c0_92 = arith.constant 0 : index
      %c0_93 = arith.constant 0 : index
      %214 = vector.load %arg24[%c0_92, %c0_93] : memref<8x128xf32, #tpu.memory_space<vmem>>, vector<1x128xf32>
      tpu.vector_store %arg24[%c0_92, %c0_93], %213 {strides = array<i32>} : memref<8x128xf32, #tpu.memory_space<vmem>>, vector<1x128xf32>,
      %215 = vector.extract_strided_slice %210 {offsets = [1, 0], sizes = [4, 128], strides = [1, 1]} : vector<8x128xf32> to vector<4x128xf32>
      %216 = arith.addf %209, %215 : vector<4x128xf32>
      %c1 = arith.constant 1 : index
      %c0_94 = arith.constant 0 : index
      %217 = vector.load %arg24[%c1, %c0_94] : memref<8x128xf32, #tpu.memory_space<vmem>>, vector<4x128xf32>
      tpu.vector_store %arg24[%c1, %c0_94], %216 {strides = array<i32>} : memref<8x128xf32, #tpu.memory_space<vmem>>, vector<4x128xf32>,
      %cst_95 = arith.constant 0.000000e+00 : f32
      %218 = vector.broadcast %cst_95 : f32 to vector<3x128xf32>
      %c5 = arith.constant 5 : index
      %c0_96 = arith.constant 0 : index
      %219 = vector.load %arg24[%c5, %c0_96] : memref<8x128xf32, #tpu.memory_space<vmem>>, vector<3x128xf32>
      tpu.vector_store %arg24[%c5, %c0_96], %218 {strides = array<i32>} : memref<8x128xf32, #tpu.memory_space<vmem>>, vector<3x128xf32>,
    } else {
    }
    %c0 = arith.constant 0 : index
    %c0_1 = arith.constant 0 : index
    %3 = vector.load %arg24[%c0, %c0_1] : memref<8x128xf32, #tpu.memory_space<vmem>>, vector<8x128xf32>
    %4 = tpu.iota {dimensions = array<i32: 1>} : vector<1x8xi32>
    %c5_i32 = arith.constant 5 : i32
    %5 = vector.broadcast %c5_i32 : i32 to vector<1x8xi32>
    %6 = arith.cmpi slt, %4, %5 : vector<1x8xi32>
    %cst = arith.constant 0.000000e+00 : f32
    %cst_2 = arith.constant -1.000000e+30 : f32
    %7 = vector.broadcast %cst : f32 to vector<1x8xf32>
    %8 = vector.broadcast %cst_2 : f32 to vector<1x8xf32>
    %9 = arith.select %6, %7, %8 : vector<1x8xi1>, vector<1x8xf32>
    %c0_3 = arith.constant 0 : index
    %c0_4 = arith.constant 0 : index
    %c0_5 = arith.constant 0 : index
    %10 = vector.load %arg7[%c0_3, %c0_4, %c0_5] : memref<1x1x128xf32, #tpu.memory_space<vmem>>, vector<1x1x128xf32>
    %11 = vector.shape_cast %10 : vector<1x1x128xf32> to vector<1x128xf32>
    %c0_6 = arith.constant 0 : index
    %c0_7 = arith.constant 0 : index
    %c0_8 = arith.constant 0 : index
    %12 = vector.load %arg8[%c0_6, %c0_7, %c0_8] : memref<1x1x128xf32, #tpu.memory_space<vmem>>, vector<1x1x128xf32>
    %13 = vector.shape_cast %12 : vector<1x1x128xf32> to vector<1x128xf32>
    %cst_9 = arith.constant dense<0.000000e+00> : vector<8xf32>
    %14 = vector.multi_reduction <add>, %3, %cst_9 [1] : vector<8x128xf32> to vector<8xf32>
    %15 = vector.shape_cast %14 : vector<8xf32> to vector<8x1xf32>
    %cst_10 = arith.constant 1.280000e+02 : f32
    %16 = vector.broadcast %cst_10 : f32 to vector<8x1xf32>
    %17 = arith.divf %15, %16 : vector<8x1xf32>
    %18 = vector.broadcast %17 : vector<8x1xf32> to vector<8x128xf32>
    %19 = arith.subf %3, %18 : vector<8x128xf32>
    %20 = arith.mulf %19, %19 : vector<8x128xf32>
    %cst_11 = arith.constant dense<0.000000e+00> : vector<8xf32>
    %21 = vector.multi_reduction <add>, %20, %cst_11 [1] : vector<8x128xf32> to vector<8xf32>
    %22 = vector.shape_cast %21 : vector<8xf32> to vector<8x1xf32>
    %cst_12 = arith.constant 1.280000e+02 : f32
    %23 = vector.broadcast %cst_12 : f32 to vector<8x1xf32>
    %24 = arith.divf %22, %23 : vector<8x1xf32>
    %cst_13 = arith.constant 9.99999996E-13 : f32
    %25 = vector.broadcast %cst_13 : f32 to vector<8x1xf32>
    %26 = arith.addf %24, %25 : vector<8x1xf32>
    %27 = math.rsqrt %26 : vector<8x1xf32>
    %28 = vector.broadcast %27 : vector<8x1xf32> to vector<8x128xf32>
    %29 = arith.mulf %19, %28 : vector<8x128xf32>
    %30 = vector.broadcast %11 : vector<1x128xf32> to vector<8x128xf32>
    %31 = arith.mulf %29, %30 : vector<8x128xf32>
    %32 = vector.broadcast %13 : vector<1x128xf32> to vector<8x128xf32>
    %33 = arith.addf %31, %32 : vector<8x128xf32>
    %c0_14 = arith.constant 0 : index
    %c0_15 = arith.constant 0 : index
    %c0_16 = arith.constant 0 : index
    %34 = vector.load %arg9[%c0_14, %c0_15, %c0_16] : memref<1x128x384xbf16, #tpu.memory_space<vmem>>, vector<1x128x384xbf16>
    %35 = vector.shape_cast %34 : vector<1x128x384xbf16> to vector<128x384xbf16>
    %36 = arith.truncf %33 : vector<8x128xf32> to vector<8x128xbf16>
    %cst_17 = arith.constant dense<0.000000e+00> : vector<8x384xf32>
    %37 = tpu.matmul %36, %35, %cst_17 {dimension_numbers = #tpu.dot_dimension_numbers<[1], [0], [0], [1], [0, 0, 1, 1], [], []>} : vector<8x128xbf16>, vector<128x384xbf16>, vector<8x384xf32> -> vector<8x384xf32>
    %c0_18 = arith.constant 0 : index
    %c0_19 = arith.constant 0 : index
    %c0_20 = arith.constant 0 : index
    %38 = vector.load %arg10[%c0_18, %c0_19, %c0_20] : memref<1x1x384xf32, #tpu.memory_space<vmem>>, vector<1x1x384xf32>
    %39 = vector.shape_cast %38 : vector<1x1x384xf32> to vector<1x384xf32>
    %40 = vector.broadcast %39 : vector<1x384xf32> to vector<8x384xf32>
    %41 = arith.addf %37, %40 : vector<8x384xf32>
    %42 = vector.extract_strided_slice %41 {offsets = [0, 0], sizes = [8, 32], strides = [1, 1]} : vector<8x384xf32> to vector<8x32xf32>
    %43 = vector.extract_strided_slice %41 {offsets = [0, 128], sizes = [8, 32], strides = [1, 1]} : vector<8x384xf32> to vector<8x32xf32>
    %44 = vector.extract_strided_slice %41 {offsets = [0, 256], sizes = [8, 32], strides = [1, 1]} : vector<8x384xf32> to vector<8x32xf32>
    %45 = arith.truncf %42 : vector<8x32xf32> to vector<8x32xbf16>
    %46 = arith.truncf %43 : vector<8x32xf32> to vector<8x32xbf16>
    %cst_21 = arith.constant dense<0.000000e+00> : vector<8x8xf32>
    %47 = tpu.matmul %45, %46, %cst_21 {dimension_numbers = #tpu.dot_dimension_numbers<[1], [1], [0], [0], [0, 0, 1, 0], [], []>} : vector<8x32xbf16>, vector<8x32xbf16>, vector<8x8xf32> -> vector<8x8xf32>
    %cst_22 = arith.constant 0.176776692 : f32
    %48 = vector.broadcast %cst_22 : f32 to vector<8x8xf32>
    %49 = arith.mulf %47, %48 : vector<8x8xf32>
    %50 = vector.broadcast %9 : vector<1x8xf32> to vector<8x8xf32>
    %51 = arith.addf %49, %50 : vector<8x8xf32>
    %cst_23 = arith.constant dense<0xFF800000> : vector<8xf32>
    %52 = vector.multi_reduction <maximumf>, %51, %cst_23 [1] : vector<8x8xf32> to vector<8xf32>
    %53 = vector.shape_cast %52 : vector<8xf32> to vector<8x1xf32>
    %54 = vector.broadcast %53 : vector<8x1xf32> to vector<8x8xf32>
    %55 = arith.subf %51, %54 : vector<8x8xf32>
    %56 = math.exp %55 : vector<8x8xf32>
    %cst_24 = arith.constant dense<0.000000e+00> : vector<8xf32>
    %57 = vector.multi_reduction <add>, %56, %cst_24 [1] : vector<8x8xf32> to vector<8xf32>
    %58 = vector.shape_cast %57 : vector<8xf32> to vector<8x1xf32>
    %59 = tpu.reciprocal %58 : vector<8x1xf32> -> vector<8x1xf32>
    %60 = vector.broadcast %59 : vector<8x1xf32> to vector<8x8xf32>
    %61 = arith.mulf %56, %60 : vector<8x8xf32>
    %62 = arith.truncf %61 : vector<8x8xf32> to vector<8x8xbf16>
    %63 = arith.truncf %44 : vector<8x32xf32> to vector<8x32xbf16>
    %cst_25 = arith.constant dense<0.000000e+00> : vector<8x32xf32>
    %64 = tpu.matmul %62, %63, %cst_25 {dimension_numbers = #tpu.dot_dimension_numbers<[1], [0], [0], [1], [0, 0, 1, 1], [], []>} : vector<8x8xbf16>, vector<8x32xbf16>, vector<8x32xf32> -> vector<8x32xf32>
    %65 = vector.extract_strided_slice %41 {offsets = [0, 32], sizes = [8, 32], strides = [1, 1]} : vector<8x384xf32> to vector<8x32xf32>
    %66 = vector.extract_strided_slice %41 {offsets = [0, 160], sizes = [8, 32], strides = [1, 1]} : vector<8x384xf32> to vector<8x32xf32>
    %67 = vector.extract_strided_slice %41 {offsets = [0, 288], sizes = [8, 32], strides = [1, 1]} : vector<8x384xf32> to vector<8x32xf32>
    %68 = arith.truncf %65 : vector<8x32xf32> to vector<8x32xbf16>
    %69 = arith.truncf %66 : vector<8x32xf32> to vector<8x32xbf16>
    %cst_26 = arith.constant dense<0.000000e+00> : vector<8x8xf32>
    %70 = tpu.matmul %68, %69, %cst_26 {dimension_numbers = #tpu.dot_dimension_numbers<[1], [1], [0], [0], [0, 0, 1, 0], [], []>} : vector<8x32xbf16>, vector<8x32xbf16>, vector<8x8xf32> -> vector<8x8xf32>
    %cst_27 = arith.constant 0.176776692 : f32
    %71 = vector.broadcast %cst_27 : f32 to vector<8x8xf32>
    %72 = arith.mulf %70, %71 : vector<8x8xf32>
    %73 = vector.broadcast %9 : vector<1x8xf32> to vector<8x8xf32>
    %74 = arith.addf %72, %73 : vector<8x8xf32>
    %cst_28 = arith.constant dense<0xFF800000> : vector<8xf32>
    %75 = vector.multi_reduction <maximumf>, %74, %cst_28 [1] : vector<8x8xf32> to vector<8xf32>
    %76 = vector.shape_cast %75 : vector<8xf32> to vector<8x1xf32>
    %77 = vector.broadcast %76 : vector<8x1xf32> to vector<8x8xf32>
    %78 = arith.subf %74, %77 : vector<8x8xf32>
    %79 = math.exp %78 : vector<8x8xf32>
    %cst_29 = arith.constant dense<0.000000e+00> : vector<8xf32>
    %80 = vector.multi_reduction <add>, %79, %cst_29 [1] : vector<8x8xf32> to vector<8xf32>
    %81 = vector.shape_cast %80 : vector<8xf32> to vector<8x1xf32>
    %82 = tpu.reciprocal %81 : vector<8x1xf32> -> vector<8x1xf32>
    %83 = vector.broadcast %82 : vector<8x1xf32> to vector<8x8xf32>
    %84 = arith.mulf %79, %83 : vector<8x8xf32>
    %85 = arith.truncf %84 : vector<8x8xf32> to vector<8x8xbf16>
    %86 = arith.truncf %67 : vector<8x32xf32> to vector<8x32xbf16>
    %cst_30 = arith.constant dense<0.000000e+00> : vector<8x32xf32>
    %87 = tpu.matmul %85, %86, %cst_30 {dimension_numbers = #tpu.dot_dimension_numbers<[1], [0], [0], [1], [0, 0, 1, 1], [], []>} : vector<8x8xbf16>, vector<8x32xbf16>, vector<8x32xf32> -> vector<8x32xf32>
    %88 = vector.extract_strided_slice %41 {offsets = [0, 64], sizes = [8, 32], strides = [1, 1]} : vector<8x384xf32> to vector<8x32xf32>
    %89 = vector.extract_strided_slice %41 {offsets = [0, 192], sizes = [8, 32], strides = [1, 1]} : vector<8x384xf32> to vector<8x32xf32>
    %90 = vector.extract_strided_slice %41 {offsets = [0, 320], sizes = [8, 32], strides = [1, 1]} : vector<8x384xf32> to vector<8x32xf32>
    %91 = arith.truncf %88 : vector<8x32xf32> to vector<8x32xbf16>
    %92 = arith.truncf %89 : vector<8x32xf32> to vector<8x32xbf16>
    %cst_31 = arith.constant dense<0.000000e+00> : vector<8x8xf32>
    %93 = tpu.matmul %91, %92, %cst_31 {dimension_numbers = #tpu.dot_dimension_numbers<[1], [1], [0], [0], [0, 0, 1, 0], [], []>} : vector<8x32xbf16>, vector<8x32xbf16>, vector<8x8xf32> -> vector<8x8xf32>
    %cst_32 = arith.constant 0.176776692 : f32
    %94 = vector.broadcast %cst_32 : f32 to vector<8x8xf32>
    %95 = arith.mulf %93, %94 : vector<8x8xf32>
    %96 = vector.broadcast %9 : vector<1x8xf32> to vector<8x8xf32>
    %97 = arith.addf %95, %96 : vector<8x8xf32>
    %cst_33 = arith.constant dense<0xFF800000> : vector<8xf32>
    %98 = vector.multi_reduction <maximumf>, %97, %cst_33 [1] : vector<8x8xf32> to vector<8xf32>
    %99 = vector.shape_cast %98 : vector<8xf32> to vector<8x1xf32>
    %100 = vector.broadcast %99 : vector<8x1xf32> to vector<8x8xf32>
    %101 = arith.subf %97, %100 : vector<8x8xf32>
    %102 = math.exp %101 : vector<8x8xf32>
    %cst_34 = arith.constant dense<0.000000e+00> : vector<8xf32>
    %103 = vector.multi_reduction <add>, %102, %cst_34 [1] : vector<8x8xf32> to vector<8xf32>
    %104 = vector.shape_cast %103 : vector<8xf32> to vector<8x1xf32>
    %105 = tpu.reciprocal %104 : vector<8x1xf32> -> vector<8x1xf32>
    %106 = vector.broadcast %105 : vector<8x1xf32> to vector<8x8xf32>
    %107 = arith.mulf %102, %106 : vector<8x8xf32>
    %108 = arith.truncf %107 : vector<8x8xf32> to vector<8x8xbf16>
    %109 = arith.truncf %90 : vector<8x32xf32> to vector<8x32xbf16>
    %cst_35 = arith.constant dense<0.000000e+00> : vector<8x32xf32>
    %110 = tpu.matmul %108, %109, %cst_35 {dimension_numbers = #tpu.dot_dimension_numbers<[1], [0], [0], [1], [0, 0, 1, 1], [], []>} : vector<8x8xbf16>, vector<8x32xbf16>, vector<8x32xf32> -> vector<8x32xf32>
    %111 = vector.extract_strided_slice %41 {offsets = [0, 96], sizes = [8, 32], strides = [1, 1]} : vector<8x384xf32> to vector<8x32xf32>
    %112 = vector.extract_strided_slice %41 {offsets = [0, 224], sizes = [8, 32], strides = [1, 1]} : vector<8x384xf32> to vector<8x32xf32>
    %113 = vector.extract_strided_slice %41 {offsets = [0, 352], sizes = [8, 32], strides = [1, 1]} : vector<8x384xf32> to vector<8x32xf32>
    %114 = arith.truncf %111 : vector<8x32xf32> to vector<8x32xbf16>
    %115 = arith.truncf %112 : vector<8x32xf32> to vector<8x32xbf16>
    %cst_36 = arith.constant dense<0.000000e+00> : vector<8x8xf32>
    %116 = tpu.matmul %114, %115, %cst_36 {dimension_numbers = #tpu.dot_dimension_numbers<[1], [1], [0], [0], [0, 0, 1, 0], [], []>} : vector<8x32xbf16>, vector<8x32xbf16>, vector<8x8xf32> -> vector<8x8xf32>
    %cst_37 = arith.constant 0.176776692 : f32
    %117 = vector.broadcast %cst_37 : f32 to vector<8x8xf32>
    %118 = arith.mulf %116, %117 : vector<8x8xf32>
    %119 = vector.broadcast %9 : vector<1x8xf32> to vector<8x8xf32>
    %120 = arith.addf %118, %119 : vector<8x8xf32>
    %cst_38 = arith.constant dense<0xFF800000> : vector<8xf32>
    %121 = vector.multi_reduction <maximumf>, %120, %cst_38 [1] : vector<8x8xf32> to vector<8xf32>
    %122 = vector.shape_cast %121 : vector<8xf32> to vector<8x1xf32>
    %123 = vector.broadcast %122 : vector<8x1xf32> to vector<8x8xf32>
    %124 = arith.subf %120, %123 : vector<8x8xf32>
    %125 = math.exp %124 : vector<8x8xf32>
    %cst_39 = arith.constant dense<0.000000e+00> : vector<8xf32>
    %126 = vector.multi_reduction <add>, %125, %cst_39 [1] : vector<8x8xf32> to vector<8xf32>
    %127 = vector.shape_cast %126 : vector<8xf32> to vector<8x1xf32>
    %128 = tpu.reciprocal %127 : vector<8x1xf32> -> vector<8x1xf32>
    %129 = vector.broadcast %128 : vector<8x1xf32> to vector<8x8xf32>
    %130 = arith.mulf %125, %129 : vector<8x8xf32>
    %131 = arith.truncf %130 : vector<8x8xf32> to vector<8x8xbf16>
    %132 = arith.truncf %113 : vector<8x32xf32> to vector<8x32xbf16>
    %cst_40 = arith.constant dense<0.000000e+00> : vector<8x32xf32>
    %133 = tpu.matmul %131, %132, %cst_40 {dimension_numbers = #tpu.dot_dimension_numbers<[1], [0], [0], [1], [0, 0, 1, 1], [], []>} : vector<8x8xbf16>, vector<8x32xbf16>, vector<8x32xf32> -> vector<8x32xf32>
    %134 = tpu.concatenate %64, %87, %110, %133 in 1 : vector<8x32xf32>, vector<8x32xf32>, vector<8x32xf32>, vector<8x32xf32> -> vector<8x128xf32>
    %c0_41 = arith.constant 0 : index
    %c0_42 = arith.constant 0 : index
    %c0_43 = arith.constant 0 : index
    %135 = vector.load %arg11[%c0_41, %c0_42, %c0_43] : memref<1x128x128xbf16, #tpu.memory_space<vmem>>, vector<1x128x128xbf16>
    %136 = vector.shape_cast %135 : vector<1x128x128xbf16> to vector<128x128xbf16>
    %137 = arith.truncf %134 : vector<8x128xf32> to vector<8x128xbf16>
    %cst_44 = arith.constant dense<0.000000e+00> : vector<8x128xf32>
    %138 = tpu.matmul %137, %136, %cst_44 {dimension_numbers = #tpu.dot_dimension_numbers<[1], [0], [0], [1], [0, 0, 1, 1], [], []>} : vector<8x128xbf16>, vector<128x128xbf16>, vector<8x128xf32> -> vector<8x128xf32>
    %c0_45 = arith.constant 0 : index
    %c0_46 = arith.constant 0 : index
    %c0_47 = arith.constant 0 : index
    %139 = vector.load %arg12[%c0_45, %c0_46, %c0_47] : memref<1x1x128xf32, #tpu.memory_space<vmem>>, vector<1x1x128xf32>
    %140 = vector.shape_cast %139 : vector<1x1x128xf32> to vector<1x128xf32>
    %141 = vector.broadcast %140 : vector<1x128xf32> to vector<8x128xf32>
    %142 = arith.addf %138, %141 : vector<8x128xf32>
    %143 = arith.addf %3, %142 : vector<8x128xf32>
    %c0_48 = arith.constant 0 : index
    %c0_49 = arith.constant 0 : index
    %c0_50 = arith.constant 0 : index
    %144 = vector.load %arg13[%c0_48, %c0_49, %c0_50] : memref<1x1x128xf32, #tpu.memory_space<vmem>>, vector<1x1x128xf32>
    %145 = vector.shape_cast %144 : vector<1x1x128xf32> to vector<1x128xf32>
    %c0_51 = arith.constant 0 : index
    %c0_52 = arith.constant 0 : index
    %c0_53 = arith.constant 0 : index
    %146 = vector.load %arg14[%c0_51, %c0_52, %c0_53] : memref<1x1x128xf32, #tpu.memory_space<vmem>>, vector<1x1x128xf32>
    %147 = vector.shape_cast %146 : vector<1x1x128xf32> to vector<1x128xf32>
    %cst_54 = arith.constant dense<0.000000e+00> : vector<8xf32>
    %148 = vector.multi_reduction <add>, %143, %cst_54 [1] : vector<8x128xf32> to vector<8xf32>
    %149 = vector.shape_cast %148 : vector<8xf32> to vector<8x1xf32>
    %cst_55 = arith.constant 1.280000e+02 : f32
    %150 = vector.broadcast %cst_55 : f32 to vector<8x1xf32>
    %151 = arith.divf %149, %150 : vector<8x1xf32>
    %152 = vector.broadcast %151 : vector<8x1xf32> to vector<8x128xf32>
    %153 = arith.subf %143, %152 : vector<8x128xf32>
    %154 = arith.mulf %153, %153 : vector<8x128xf32>
    %cst_56 = arith.constant dense<0.000000e+00> : vector<8xf32>
    %155 = vector.multi_reduction <add>, %154, %cst_56 [1] : vector<8x128xf32> to vector<8xf32>
    %156 = vector.shape_cast %155 : vector<8xf32> to vector<8x1xf32>
    %cst_57 = arith.constant 1.280000e+02 : f32
    %157 = vector.broadcast %cst_57 : f32 to vector<8x1xf32>
    %158 = arith.divf %156, %157 : vector<8x1xf32>
    %cst_58 = arith.constant 9.99999996E-13 : f32
    %159 = vector.broadcast %cst_58 : f32 to vector<8x1xf32>
    %160 = arith.addf %158, %159 : vector<8x1xf32>
    %161 = math.rsqrt %160 : vector<8x1xf32>
    %162 = vector.broadcast %161 : vector<8x1xf32> to vector<8x128xf32>
    %163 = arith.mulf %153, %162 : vector<8x128xf32>
    %164 = vector.broadcast %145 : vector<1x128xf32> to vector<8x128xf32>
    %165 = arith.mulf %163, %164 : vector<8x128xf32>
    %166 = vector.broadcast %147 : vector<1x128xf32> to vector<8x128xf32>
    %167 = arith.addf %165, %166 : vector<8x128xf32>
    %c0_59 = arith.constant 0 : index
    %c0_60 = arith.constant 0 : index
    %c0_61 = arith.constant 0 : index
    %168 = vector.load %arg15[%c0_59, %c0_60, %c0_61] : memref<1x128x256xbf16, #tpu.memory_space<vmem>>, vector<1x128x256xbf16>
    %169 = vector.shape_cast %168 : vector<1x128x256xbf16> to vector<128x256xbf16>
    %170 = arith.truncf %167 : vector<8x128xf32> to vector<8x128xbf16>
    %cst_62 = arith.constant dense<0.000000e+00> : vector<8x256xf32>
    %171 = tpu.matmul %170, %169, %cst_62 {dimension_numbers = #tpu.dot_dimension_numbers<[1], [0], [0], [1], [0, 0, 1, 1], [], []>} : vector<8x128xbf16>, vector<128x256xbf16>, vector<8x256xf32> -> vector<8x256xf32>
    %c0_63 = arith.constant 0 : index
    %c0_64 = arith.constant 0 : index
    %c0_65 = arith.constant 0 : index
    %172 = vector.load %arg16[%c0_63, %c0_64, %c0_65] : memref<1x1x256xf32, #tpu.memory_space<vmem>>, vector<1x1x256xf32>
    %173 = vector.shape_cast %172 : vector<1x1x256xf32> to vector<1x256xf32>
    %174 = vector.broadcast %173 : vector<1x256xf32> to vector<8x256xf32>
    %175 = arith.addf %171, %174 : vector<8x256xf32>
    %cst_66 = arith.constant 5.000000e-01 : f32
    %176 = vector.broadcast %cst_66 : f32 to vector<8x256xf32>
    %177 = arith.mulf %176, %175 : vector<8x256xf32>
    %cst_67 = arith.constant 4.471500e-02 : f32
    %178 = vector.broadcast %cst_67 : f32 to vector<8x256xf32>
    %179 = arith.mulf %178, %175 : vector<8x256xf32>
    %180 = arith.mulf %179, %175 : vector<8x256xf32>
    %181 = arith.mulf %180, %175 : vector<8x256xf32>
    %182 = arith.addf %175, %181 : vector<8x256xf32>
    %cst_68 = arith.constant 0.797884583 : f32
    %183 = vector.broadcast %cst_68 : f32 to vector<8x256xf32>
    %184 = arith.mulf %183, %182 : vector<8x256xf32>
    %185 = math.tanh %184 : vector<8x256xf32>
    %cst_69 = arith.constant 1.000000e+00 : f32
    %186 = vector.broadcast %cst_69 : f32 to vector<8x256xf32>
    %187 = arith.addf %186, %185 : vector<8x256xf32>
    %188 = arith.mulf %177, %187 : vector<8x256xf32>
    %c0_70 = arith.constant 0 : index
    %c0_71 = arith.constant 0 : index
    %c0_72 = arith.constant 0 : index
    %189 = vector.load %arg17[%c0_70, %c0_71, %c0_72] : memref<1x256x128xbf16, #tpu.memory_space<vmem>>, vector<1x256x128xbf16>
    %190 = vector.shape_cast %189 : vector<1x256x128xbf16> to vector<256x128xbf16>
    %191 = arith.truncf %188 : vector<8x256xf32> to vector<8x256xbf16>
    %cst_73 = arith.constant dense<0.000000e+00> : vector<8x128xf32>
    %192 = tpu.matmul %191, %190, %cst_73 {dimension_numbers = #tpu.dot_dimension_numbers<[1], [0], [0], [1], [0, 0, 1, 1], [], []>} : vector<8x256xbf16>, vector<256x128xbf16>, vector<8x128xf32> -> vector<8x128xf32>
    %c0_74 = arith.constant 0 : index
    %c0_75 = arith.constant 0 : index
    %c0_76 = arith.constant 0 : index
    %193 = vector.load %arg18[%c0_74, %c0_75, %c0_76] : memref<1x1x128xf32, #tpu.memory_space<vmem>>, vector<1x1x128xf32>
    %194 = vector.shape_cast %193 : vector<1x1x128xf32> to vector<1x128xf32>
    %195 = vector.broadcast %194 : vector<1x128xf32> to vector<8x128xf32>
    %196 = arith.addf %192, %195 : vector<8x128xf32>
    %197 = arith.addf %143, %196 : vector<8x128xf32>
    %c0_77 = arith.constant 0 : index
    %c0_78 = arith.constant 0 : index
    %198 = vector.load %arg24[%c0_77, %c0_78] : memref<8x128xf32, #tpu.memory_space<vmem>>, vector<8x128xf32>
    tpu.vector_store %arg24[%c0_77, %c0_78], %197 {strides = array<i32>} : memref<8x128xf32, #tpu.memory_space<vmem>>, vector<8x128xf32>,
    %c1_i32 = arith.constant 1 : i32
    %199 = arith.cmpi eq, %arg1, %c1_i32 : i32
    %200 = arith.extui %199 : i1 to i32
    %c0_i32_79 = arith.constant 0 : i32
    %201 = arith.cmpi ne, %200, %c0_i32_79 : i32
    scf.if %201 {
      %202 = vector.extract_strided_slice %197 {offsets = [0, 0], sizes = [1, 128], strides = [1, 1]} : vector<8x128xf32> to vector<1x128xf32>
      %c0_80 = arith.constant 0 : index
      %c0_81 = arith.constant 0 : index
      %203 = vector.load %arg19[%c0_80, %c0_81] : memref<1x128xf32, #tpu.memory_space<vmem>>, vector<1x128xf32>
      %c0_82 = arith.constant 0 : index
      %c0_83 = arith.constant 0 : index
      %204 = vector.load %arg20[%c0_82, %c0_83] : memref<1x128xf32, #tpu.memory_space<vmem>>, vector<1x128xf32>
      %cst_84 = arith.constant dense<0.000000e+00> : vector<1xf32>
      %205 = vector.multi_reduction <add>, %202, %cst_84 [1] : vector<1x128xf32> to vector<1xf32>
      %206 = vector.shape_cast %205 : vector<1xf32> to vector<1x1xf32>
      %cst_85 = arith.constant 1.280000e+02 : f32
      %207 = vector.broadcast %cst_85 : f32 to vector<1x1xf32>
      %208 = arith.divf %206, %207 : vector<1x1xf32>
      %209 = vector.broadcast %208 : vector<1x1xf32> to vector<1x128xf32>
      %210 = arith.subf %202, %209 : vector<1x128xf32>
      %211 = arith.mulf %210, %210 : vector<1x128xf32>
      %cst_86 = arith.constant dense<0.000000e+00> : vector<1xf32>
      %212 = vector.multi_reduction <add>, %211, %cst_86 [1] : vector<1x128xf32> to vector<1xf32>
      %213 = vector.shape_cast %212 : vector<1xf32> to vector<1x1xf32>
      %cst_87 = arith.constant 1.280000e+02 : f32
      %214 = vector.broadcast %cst_87 : f32 to vector<1x1xf32>
      %215 = arith.divf %213, %214 : vector<1x1xf32>
      %cst_88 = arith.constant 9.99999996E-13 : f32
      %216 = vector.broadcast %cst_88 : f32 to vector<1x1xf32>
      %217 = arith.addf %215, %216 : vector<1x1xf32>
      %218 = math.rsqrt %217 : vector<1x1xf32>
      %219 = vector.broadcast %218 : vector<1x1xf32> to vector<1x128xf32>
      %220 = arith.mulf %210, %219 : vector<1x128xf32>
      %221 = arith.mulf %220, %203 : vector<1x128xf32>
      %222 = arith.addf %221, %204 : vector<1x128xf32>
      %c0_89 = arith.constant 0 : index
      %c0_90 = arith.constant 0 : index
      %223 = vector.load %arg21[%c0_89, %c0_90] : memref<128x128xbf16, #tpu.memory_space<vmem>>, vector<128x128xbf16>
      %224 = arith.truncf %222 : vector<1x128xf32> to vector<1x128xbf16>
      %cst_91 = arith.constant dense<0.000000e+00> : vector<1x128xf32>
      %225 = tpu.matmul %224, %223, %cst_91 {dimension_numbers = #tpu.dot_dimension_numbers<[1], [0], [0], [1], [0, 0, 1, 1], [], []>} : vector<1x128xbf16>, vector<128x128xbf16>, vector<1x128xf32> -> vector<1x128xf32>
      %c0_92 = arith.constant 0 : index
      %c0_93 = arith.constant 0 : index
      %226 = vector.load %arg22[%c0_92, %c0_93] : memref<1x128xf32, #tpu.memory_space<vmem>>, vector<1x128xf32>
      %227 = arith.addf %225, %226 : vector<1x128xf32>
      %228 = vector.shape_cast %227 : vector<1x128xf32> to vector<1x1x128xf32>
      %c0_94 = arith.constant 0 : index
      %c0_95 = arith.constant 0 : index
      %c0_96 = arith.constant 0 : index
      %229 = vector.load %arg23[%c0_94, %c0_95, %c0_96] : memref<1x1x128xf32, #tpu.memory_space<vmem>>, vector<1x1x128xf32>
      tpu.vector_store %arg23[%c0_94, %c0_95, %c0_96], %228 {strides = array<i32>} : memref<1x1x128xf32, #tpu.memory_space<vmem>>, vector<1x1x128xf32>,
    } else {
    }
    return
  }
  func.func @transform_0(%arg0: i32, %arg1: i32) -> (i32, i32, i32) {
    %c0_i32 = arith.constant 0 : i32
    %c0_i32_0 = arith.constant 0 : i32
    %c0_i32_1 = arith.constant 0 : i32
    return %arg0, %c0_i32, %c0_i32_0 : i32, i32, i32
  }
  func.func @transform_1(%arg0: i32, %arg1: i32) -> (i32, i32) {
    %c0_i32 = arith.constant 0 : i32
    %c0_i32_0 = arith.constant 0 : i32
    %c0_i32_1 = arith.constant 0 : i32
    return %c0_i32, %c0_i32_0 : i32, i32
  }
  func.func @transform_2(%arg0: i32, %arg1: i32) -> (i32, i32) {
    %c0_i32 = arith.constant 0 : i32
    %c0_i32_0 = arith.constant 0 : i32
    %c0_i32_1 = arith.constant 0 : i32
    return %c0_i32, %c0_i32_0 : i32, i32
  }
  func.func @transform_3(%arg0: i32, %arg1: i32) -> (i32, i32) {
    %c0_i32 = arith.constant 0 : i32
    %c0_i32_0 = arith.constant 0 : i32
    %c0_i32_1 = arith.constant 0 : i32
    return %c0_i32, %c0_i32_0 : i32, i32
  }
  func.func @transform_4(%arg0: i32, %arg1: i32) -> (i32, i32) {
    %c0_i32 = arith.constant 0 : i32
    %c0_i32_0 = arith.constant 0 : i32
    %c0_i32_1 = arith.constant 0 : i32
    return %c0_i32, %c0_i32_0 : i32, i32
  }
  func.func @transform_5(%arg0: i32, %arg1: i32) -> (i32, i32, i32) {
    %c0_i32 = arith.constant 0 : i32
    %c0_i32_0 = arith.constant 0 : i32
    %c0_i32_1 = arith.constant 0 : i32
    return %arg1, %c0_i32, %c0_i32_0 : i32, i32, i32
  }
  func.func @transform_6(%arg0: i32, %arg1: i32) -> (i32, i32, i32) {
    %c0_i32 = arith.constant 0 : i32
    %c0_i32_0 = arith.constant 0 : i32
    %c0_i32_1 = arith.constant 0 : i32
    return %arg1, %c0_i32, %c0_i32_0 : i32, i32, i32
  }
  func.func @transform_7(%arg0: i32, %arg1: i32) -> (i32, i32, i32) {
    %c0_i32 = arith.constant 0 : i32
    %c0_i32_0 = arith.constant 0 : i32
    %c0_i32_1 = arith.constant 0 : i32
    return %arg1, %c0_i32, %c0_i32_0 : i32, i32, i32
  }
  func.func @transform_8(%arg0: i32, %arg1: i32) -> (i32, i32, i32) {
    %c0_i32 = arith.constant 0 : i32
    %c0_i32_0 = arith.constant 0 : i32
    %c0_i32_1 = arith.constant 0 : i32
    return %arg1, %c0_i32, %c0_i32_0 : i32, i32, i32
  }
  func.func @transform_9(%arg0: i32, %arg1: i32) -> (i32, i32, i32) {
    %c0_i32 = arith.constant 0 : i32
    %c0_i32_0 = arith.constant 0 : i32
    %c0_i32_1 = arith.constant 0 : i32
    return %arg1, %c0_i32, %c0_i32_0 : i32, i32, i32
  }
  func.func @transform_10(%arg0: i32, %arg1: i32) -> (i32, i32, i32) {
    %c0_i32 = arith.constant 0 : i32
    %c0_i32_0 = arith.constant 0 : i32
    %c0_i32_1 = arith.constant 0 : i32
    return %arg1, %c0_i32, %c0_i32_0 : i32, i32, i32
  }
  func.func @transform_11(%arg0: i32, %arg1: i32) -> (i32, i32, i32) {
    %c0_i32 = arith.constant 0 : i32
    %c0_i32_0 = arith.constant 0 : i32
    %c0_i32_1 = arith.constant 0 : i32
    return %arg1, %c0_i32, %c0_i32_0 : i32, i32, i32
  }
  func.func @transform_12(%arg0: i32, %arg1: i32) -> (i32, i32, i32) {
    %c0_i32 = arith.constant 0 : i32
    %c0_i32_0 = arith.constant 0 : i32
    %c0_i32_1 = arith.constant 0 : i32
    return %arg1, %c0_i32, %c0_i32_0 : i32, i32, i32
  }
  func.func @transform_13(%arg0: i32, %arg1: i32) -> (i32, i32, i32) {
    %c0_i32 = arith.constant 0 : i32
    %c0_i32_0 = arith.constant 0 : i32
    %c0_i32_1 = arith.constant 0 : i32
    return %arg1, %c0_i32, %c0_i32_0 : i32, i32, i32
  }
  func.func @transform_14(%arg0: i32, %arg1: i32) -> (i32, i32, i32) {
    %c0_i32 = arith.constant 0 : i32
    %c0_i32_0 = arith.constant 0 : i32
    %c0_i32_1 = arith.constant 0 : i32
    return %arg1, %c0_i32, %c0_i32_0 : i32, i32, i32
  }
  func.func @transform_15(%arg0: i32, %arg1: i32) -> (i32, i32, i32) {
    %c0_i32 = arith.constant 0 : i32
    %c0_i32_0 = arith.constant 0 : i32
    %c0_i32_1 = arith.constant 0 : i32
    return %arg1, %c0_i32, %c0_i32_0 : i32, i32, i32
  }
  func.func @transform_16(%arg0: i32, %arg1: i32) -> (i32, i32, i32) {
    %c0_i32 = arith.constant 0 : i32
    %c0_i32_0 = arith.constant 0 : i32
    %c0_i32_1 = arith.constant 0 : i32
    return %arg1, %c0_i32, %c0_i32_0 : i32, i32, i32
  }
  func.func @transform_17(%arg0: i32, %arg1: i32) -> (i32, i32) {
    %c0_i32 = arith.constant 0 : i32
    %c0_i32_0 = arith.constant 0 : i32
    %c0_i32_1 = arith.constant 0 : i32
    return %c0_i32, %c0_i32_0 : i32, i32
  }
  func.func @transform_18(%arg0: i32, %arg1: i32) -> (i32, i32) {
    %c0_i32 = arith.constant 0 : i32
    %c0_i32_0 = arith.constant 0 : i32
    %c0_i32_1 = arith.constant 0 : i32
    return %c0_i32, %c0_i32_0 : i32, i32
  }
  func.func @transform_19(%arg0: i32, %arg1: i32) -> (i32, i32) {
    %c0_i32 = arith.constant 0 : i32
    %c0_i32_0 = arith.constant 0 : i32
    %c0_i32_1 = arith.constant 0 : i32
    return %c0_i32, %c0_i32_0 : i32, i32
  }
  func.func @transform_20(%arg0: i32, %arg1: i32) -> (i32, i32) {
    %c0_i32 = arith.constant 0 : i32
    %c0_i32_0 = arith.constant 0 : i32
    %c0_i32_1 = arith.constant 0 : i32
    return %c0_i32, %c0_i32_0 : i32, i32
  }
  func.func @transform_21(%arg0: i32, %arg1: i32) -> (i32, i32, i32) {
    %c0_i32 = arith.constant 0 : i32
    %c0_i32_0 = arith.constant 0 : i32
    %c0_i32_1 = arith.constant 0 : i32
    return %arg0, %c0_i32, %c0_i32_0 : i32, i32, i32
  }
}

</mosaic_0001>

<llo_original>
// kernel: vit_forward.1
$region0: #{vit_forward.1}
  #allocation0 [shape = 'u32[]', space=smem, size = 0x4, offset = 0x4, fixed_abs, tag = 'smem constant byte address 0x4 - core index']
  #allocation1 [shape = 'u32[144,128]{1,0:T(1,128)}', space=vmem, size = 0x12000, scoped, tag = 'internal scratch']
  #allocation2 [shape = 'f32[8,128]{1,0:T(8,128)}', space=vmem, size = 0x1000, scoped, tag = 'scratch operand']
  %s0 = inlined_call_operand.vmem [shape: f32[2,4,768], index: 0, kind: input, shape index: {}]
  %s1 = inlined_call_operand.vmem [shape: bf16[768,128], index: 1, kind: input, shape index: {}]
  %s2 = inlined_call_operand.vmem [shape: f32[1,128], index: 2, kind: input, shape index: {}]
  %s3 = inlined_call_operand.vmem [shape: f32[1,128], index: 3, kind: input, shape index: {}]
  %s4 = inlined_call_operand.vmem [shape: f32[8,128], index: 4, kind: input, shape index: {}]
  %s5 = inlined_call_operand.vmem [shape: f32[2,1,128], index: 5, kind: input, shape index: {}]
  %s6 = inlined_call_operand.vmem [shape: f32[2,1,128], index: 6, kind: input, shape index: {}]
  %s7 = inlined_call_operand.vmem [shape: bf16[2,128,384], index: 7, kind: input, shape index: {}]
  %s8 = inlined_call_operand.vmem [shape: f32[2,1,384], index: 8, kind: input, shape index: {}]
  %s9 = inlined_call_operand.vmem [shape: bf16[2,128,128], index: 9, kind: input, shape index: {}]
  %s10 = inlined_call_operand.vmem [shape: f32[2,1,128], index: 10, kind: input, shape index: {}]
  %s11 = inlined_call_operand.vmem [shape: f32[2,1,128], index: 11, kind: input, shape index: {}]
  %s12 = inlined_call_operand.vmem [shape: f32[2,1,128], index: 12, kind: input, shape index: {}]
  %s13 = inlined_call_operand.vmem [shape: bf16[2,128,256], index: 13, kind: input, shape index: {}]
  %s14 = inlined_call_operand.vmem [shape: f32[2,1,256], index: 14, kind: input, shape index: {}]
  %s15 = inlined_call_operand.vmem [shape: bf16[2,256,128], index: 15, kind: input, shape index: {}]
  %s16 = inlined_call_operand.vmem [shape: f32[2,1,128], index: 16, kind: input, shape index: {}]
  %s17 = inlined_call_operand.vmem [shape: f32[1,128], index: 17, kind: input, shape index: {}]
  %s18 = inlined_call_operand.vmem [shape: f32[1,128], index: 18, kind: input, shape index: {}]
  %s19 = inlined_call_operand.vmem [shape: bf16[128,128], index: 19, kind: input, shape index: {}]
  %s20 = inlined_call_operand.vmem [shape: f32[1,128], index: 20, kind: input, shape index: {}]
  %s21 = inlined_call_operand.hbm [shape: f32[2,1,128], index: 21, kind: output, shape index: {}]
  %s22 = sld [smem:[#allocation0]]
  $region125: #{vit_forward.1} parent=0
    _
  %s24 = ssub.s32 1, %s22
  %s25 = scalar_select 0, %s24, %s22
  $region1: #{vit_forward.1} parent=0
    #allocation3 [shape = 'u8[1024]{0}', space=vmem, size = 0x400, scoped, tag = 'output window, operand 0']
    #allocation4 [shape = 's32[2]{0}', space=sflag, size = 0x8, scoped, tag = 'scoped memory for vit_forward.1']
    %26 = vsyncpa [#allocation4], 0
    %s27 = scalar_lea.sflag [#allocation4], 1
    %28 = vsyncpa %s27, 0
    loop: start=0, step=1, limit=6
    $region2: #{vit_forward.1} parent=1 // loop_pre_header
      _
    $region3: #{vit_forward.1} parent=1 // loop_header
      %s30 = sphi 0, %s34
      %p31 = scmp.ge.s32.totalorder %s30, 6
      %s37 = sphi 0, %s49
      %s38 = sphi 0, %s45
      %s39 = sphi 0, %s37
      %s40 = sphi 0, %s38
      %s41 = sphi 0, %s39
      %s42 = sphi 0, %s40
      %s52 = sphi 0, %s54
      %s55 = sphi 0, %s52
      %s56 = sphi 0, %s55
      %s72 = sphi 0, %s56
      %s76 = sphi 0, %s76
      %s78 = sphi 0, %s76
      %s79 = sphi 0, %s78
      %s93 = sphi 0, %s79
      %s97 = sphi 0, %s97
      %s99 = sphi 0, %s97
      %s100 = sphi 0, %s99
      %s114 = sphi 0, %s100
      %s118 = sphi 0, %s118
      %s120 = sphi 0, %s118
      %s121 = sphi 0, %s120
      %s135 = sphi 0, %s121
      %s139 = sphi 0, %s139
      %s141 = sphi 0, %s139
      %s142 = sphi 0, %s141
      %s156 = sphi 0, %s142
      %s162 = sphi 0, %s164
      %s165 = sphi 0, %s162
      %s166 = sphi 0, %s165
      %s182 = sphi 0, %s166
      %s188 = sphi 0, %s190
      %s191 = sphi 0, %s188
      %s192 = sphi 0, %s191
      %s208 = sphi 0, %s192
      %s214 = sphi 0, %s216
      %s217 = sphi 0, %s214
      %s218 = sphi 0, %s217
      %s234 = sphi 0, %s218
      %s240 = sphi 0, %s242
      %s243 = sphi 0, %s240
      %s244 = sphi 0, %s243
      %s260 = sphi 0, %s244
      %s266 = sphi 0, %s268
      %s269 = sphi 0, %s266
      %s270 = sphi 0, %s269
      %s286 = sphi 0, %s270
      %s292 = sphi 0, %s294
      %s295 = sphi 0, %s292
      %s296 = sphi 0, %s295
      %s312 = sphi 0, %s296
      %s318 = sphi 0, %s320
      %s321 = sphi 0, %s318
      %s322 = sphi 0, %s321
      %s338 = sphi 0, %s322
      %s344 = sphi 0, %s346
      %s347 = sphi 0, %s344
      %s348 = sphi 0, %s347
      %s364 = sphi 0, %s348
      %s370 = sphi 0, %s372
      %s373 = sphi 0, %s370
      %s374 = sphi 0, %s373
      %s390 = sphi 0, %s374
      %s396 = sphi 0, %s398
      %s399 = sphi 0, %s396
      %s400 = sphi 0, %s399
      %s416 = sphi 0, %s400
      %s422 = sphi 0, %s424
      %s425 = sphi 0, %s422
      %s426 = sphi 0, %s425
      %s442 = sphi 0, %s426
      %s448 = sphi 0, %s450
      %s451 = sphi 0, %s448
      %s452 = sphi 0, %s451
      %s468 = sphi 0, %s452
      %s472 = sphi 0, %s472
      %s474 = sphi 0, %s472
      %s475 = sphi 0, %s474
      %s489 = sphi 0, %s475
      %s493 = sphi 0, %s493
      %s495 = sphi 0, %s493
      %s496 = sphi 0, %s495
      %s510 = sphi 0, %s496
      %s514 = sphi 0, %s514
      %s516 = sphi 0, %s514
      %s517 = sphi 0, %s516
      %s531 = sphi 0, %s517
      %s535 = sphi 0, %s535
      %s537 = sphi 0, %s535
      %s538 = sphi 0, %s537
      %s552 = sphi 0, %s538
      %s558 = sphi 0, %s560
      %s561 = sphi 0, %s558
      %s562 = sphi 0, %s561
      %s578 = sphi 0, %s562
    $region4: #{vit_forward.1} parent=1 // loop_header_branch
      %33 = sbr.rel (%p31) target = $region8
    $region5: #{vit_forward.1} parent=1 // loop_body
      %s35 = ssub.s32 %s30, 1
      %s36 = ssub.s32 %s30, 2
      %s43 = sadd.s32 1, %s38
      %p44 = scmp.ge.s32.totalorder %s43, 2
      %s45 = scalar_select %p44, 0, %s43
      %s46 = sadd.s32 1, %s37
      %s47 = scalar_select %p44, %s46, %s37
      %p48 = scmp.ge.s32.totalorder %s47, 2
      %s49 = scalar_select %p48, 0, %s47
      %s50 = ssub.s32 %s37, %s49
      %p51 = scmp.eq.s32.totalorder %s50, 0
      %s53 = sadd.s32 %s52, 1
      %s54 = scalar_select %p51, %s52, %s53
      %p57 = pneg %p51
      %p58 = scmp.eq.s32.totalorder %s30, 3
      %p59 = por %p57, %p58
      %p60 = scmp.ne.s32.totalorder %s52, %s55
      %p61 = scmp.eq.s32.totalorder %s30, 0
      %p62 = por %p60, %p61
      %p63 = scmp.ne.s32.totalorder %s52, %s55
      %p64 = scmp.eq.s32.totalorder %s35, 3
      %p65 = por %p63, %p64
      %p66 = scmp.ne.s32.totalorder %s55, %s56
      %p67 = scmp.eq.s32.totalorder %s35, 0
      %p68 = por %p66, %p67
      %p69 = scmp.ne.s32.totalorder %s55, %s56
      %p70 = scmp.eq.s32.totalorder %s36, 3
      %p71 = por %p69, %p70
      %p73 = scmp.ne.s32.totalorder %s56, %s72
      %p74 = scmp.eq.s32.totalorder %s36, 0
      %p75 = por %p73, %p74
      %s77 = sadd.s32 %s76, 1
      %p80 = scmp.eq.s32.totalorder %s30, 3
      %p81 = scmp.ne.s32.totalorder %s76, %s78
      %p82 = scmp.eq.s32.totalorder %s30, 0
      %p83 = por %p81, %p82
      %p84 = scmp.ne.s32.totalorder %s76, %s78
      %p85 = scmp.eq.s32.totalorder %s35, 3
      %p86 = por %p84, %p85
      %p87 = scmp.ne.s32.totalorder %s78, %s79
      %p88 = scmp.eq.s32.totalorder %s35, 0
      %p89 = por %p87, %p88
      %p90 = scmp.ne.s32.totalorder %s78, %s79
      %p91 = scmp.eq.s32.totalorder %s36, 3
      %p92 = por %p90, %p91
      %p94 = scmp.ne.s32.totalorder %s79, %s93
      %p95 = scmp.eq.s32.totalorder %s36, 0
      %p96 = por %p94, %p95
      %s98 = sadd.s32 %s97, 1
      %p101 = scmp.eq.s32.totalorder %s30, 3
      %p102 = scmp.ne.s32.totalorder %s97, %s99
      %p103 = scmp.eq.s32.totalorder %s30, 0
      %p104 = por %p102, %p103
      %p105 = scmp.ne.s32.totalorder %s97, %s99
      %p106 = scmp.eq.s32.totalorder %s35, 3
      %p107 = por %p105, %p106
      %p108 = scmp.ne.s32.totalorder %s99, %s100
      %p109 = scmp.eq.s32.totalorder %s35, 0
      %p110 = por %p108, %p109
      %p111 = scmp.ne.s32.totalorder %s99, %s100
      %p112 = scmp.eq.s32.totalorder %s36, 3
      %p113 = por %p111, %p112
      %p115 = scmp.ne.s32.totalorder %s100, %s114
      %p116 = scmp.eq.s32.totalorder %s36, 0
      %p117 = por %p115, %p116
      %s119 = sadd.s32 %s118, 1
      %p122 = scmp.eq.s32.totalorder %s30, 3
      %p123 = scmp.ne.s32.totalorder %s118, %s120
      %p124 = scmp.eq.s32.totalorder %s30, 0
      %p125 = por %p123, %p124
      %p126 = scmp.ne.s32.totalorder %s118, %s120
      %p127 = scmp.eq.s32.totalorder %s35, 3
      %p128 = por %p126, %p127
      %p129 = scmp.ne.s32.totalorder %s120, %s121
      %p130 = scmp.eq.s32.totalorder %s35, 0
      %p131 = por %p129, %p130
      %p132 = scmp.ne.s32.totalorder %s120, %s121
      %p133 = scmp.eq.s32.totalorder %s36, 3
      %p134 = por %p132, %p133
      %p136 = scmp.ne.s32.totalorder %s121, %s135
      %p137 = scmp.eq.s32.totalorder %s36, 0
      %p138 = por %p136, %p137
      %s140 = sadd.s32 %s139, 1
      %p143 = scmp.eq.s32.totalorder %s30, 3
      %p144 = scmp.ne.s32.totalorder %s139, %s141
      %p145 = scmp.eq.s32.totalorder %s30, 0
      %p146 = por %p144, %p145
      %p147 = scmp.ne.s32.totalorder %s139, %s141
      %p148 = scmp.eq.s32.totalorder %s35, 3
      %p149 = por %p147, %p148
      %p150 = scmp.ne.s32.totalorder %s141, %s142
      %p151 = scmp.eq.s32.totalorder %s35, 0
      %p152 = por %p150, %p151
      %p153 = scmp.ne.s32.totalorder %s141, %s142
      %p154 = scmp.eq.s32.totalorder %s36, 3
      %p155 = por %p153, %p154
      %p157 = scmp.ne.s32.totalorder %s142, %s156
      %p158 = scmp.eq.s32.totalorder %s36, 0
      %p159 = por %p157, %p158
      %s160 = ssub.s32 %s38, %s45
      %p161 = scmp.eq.s32.totalorder %s160, 0
      %s163 = sadd.s32 %s162, 1
      %s164 = scalar_select %p161, %s162, %s163
      %p167 = pneg %p161
      %p168 = scmp.eq.s32.totalorder %s30, 3
      %p169 = por %p167, %p168
      %p170 = scmp.ne.s32.totalorder %s162, %s165
      %p171 = scmp.eq.s32.totalorder %s30, 0
      %p172 = por %p170, %p171
      %p173 = scmp.ne.s32.totalorder %s162, %s165
      %p174 = scmp.eq.s32.totalorder %s35, 3
      %p175 = por %p173, %p174
      %p176 = scmp.ne.s32.totalorder %s165, %s166
      %p177 = scmp.eq.s32.totalorder %s35, 0
      %p178 = por %p176, %p177
      %p179 = scmp.ne.s32.totalorder %s165, %s166
      %p180 = scmp.eq.s32.totalorder %s36, 3
      %p181 = por %p179, %p180
      %p183 = scmp.ne.s32.totalorder %s166, %s182
      %p184 = scmp.eq.s32.totalorder %s36, 0
      %p185 = por %p183, %p184
      %s186 = ssub.s32 %s38, %s45
      %p187 = scmp.eq.s32.totalorder %s186, 0
      %s189 = sadd.s32 %s188, 1
      %s190 = scalar_select %p187, %s188, %s189
      %p193 = pneg %p187
      %p194 = scmp.eq.s32.totalorder %s30, 3
      %p195 = por %p193, %p194
      %p196 = scmp.ne.s32.totalorder %s188, %s191
      %p197 = scmp.eq.s32.totalorder %s30, 0
      %p198 = por %p196, %p197
      %p199 = scmp.ne.s32.totalorder %s188, %s191
      %p200 = scmp.eq.s32.totalorder %s35, 3
      %p201 = por %p199, %p200
      %p202 = scmp.ne.s32.totalorder %s191, %s192
      %p203 = scmp.eq.s32.totalorder %s35, 0
      %p204 = por %p202, %p203
      %p205 = scmp.ne.s32.totalorder %s191, %s192
      %p206 = scmp.eq.s32.totalorder %s36, 3
      %p207 = por %p205, %p206
      %p209 = scmp.ne.s32.totalorder %s192, %s208
      %p210 = scmp.eq.s32.totalorder %s36, 0
      %p211 = por %p209, %p210
      %s212 = ssub.s32 %s38, %s45
      %p213 = scmp.eq.s32.totalorder %s212, 0
      %s215 = sadd.s32 %s214, 1
      %s216 = scalar_select %p213, %s214, %s215
      %p219 = pneg %p213
      %p220 = scmp.eq.s32.totalorder %s30, 3
      %p221 = por %p219, %p220
      %p222 = scmp.ne.s32.totalorder %s214, %s217
      %p223 = scmp.eq.s32.totalorder %s30, 0
      %p224 = por %p222, %p223
      %p225 = scmp.ne.s32.totalorder %s214, %s217
      %p226 = scmp.eq.s32.totalorder %s35, 3
      %p227 = por %p225, %p226
      %p228 = scmp.ne.s32.totalorder %s217, %s218
      %p229 = scmp.eq.s32.totalorder %s35, 0
      %p230 = por %p228, %p229
      %p231 = scmp.ne.s32.totalorder %s217, %s218
      %p232 = scmp.eq.s32.totalorder %s36, 3
      %p233 = por %p231, %p232
      %p235 = scmp.ne.s32.totalorder %s218, %s234
      %p236 = scmp.eq.s32.totalorder %s36, 0
      %p237 = por %p235, %p236
      %s238 = ssub.s32 %s38, %s45
      %p239 = scmp.eq.s32.totalorder %s238, 0
      %s241 = sadd.s32 %s240, 1
      %s242 = scalar_select %p239, %s240, %s241
      %p245 = pneg %p239
      %p246 = scmp.eq.s32.totalorder %s30, 3
      %p247 = por %p245, %p246
      %p248 = scmp.ne.s32.totalorder %s240, %s243
      %p249 = scmp.eq.s32.totalorder %s30, 0
      %p250 = por %p248, %p249
      %p251 = scmp.ne.s32.totalorder %s240, %s243
      %p252 = scmp.eq.s32.totalorder %s35, 3
      %p253 = por %p251, %p252
      %p254 = scmp.ne.s32.totalorder %s243, %s244
      %p255 = scmp.eq.s32.totalorder %s35, 0
      %p256 = por %p254, %p255
      %p257 = scmp.ne.s32.totalorder %s243, %s244
      %p258 = scmp.eq.s32.totalorder %s36, 3
      %p259 = por %p257, %p258
      %p261 = scmp.ne.s32.totalorder %s244, %s260
      %p262 = scmp.eq.s32.totalorder %s36, 0
      %p263 = por %p261, %p262
      %s264 = ssub.s32 %s38, %s45
      %p265 = scmp.eq.s32.totalorder %s264, 0
      %s267 = sadd.s32 %s266, 1
      %s268 = scalar_select %p265, %s266, %s267
      %p271 = pneg %p265
      %p272 = scmp.eq.s32.totalorder %s30, 3
      %p273 = por %p271, %p272
      %p274 = scmp.ne.s32.totalorder %s266, %s269
      %p275 = scmp.eq.s32.totalorder %s30, 0
      %p276 = por %p274, %p275
      %p277 = scmp.ne.s32.totalorder %s266, %s269
      %p278 = scmp.eq.s32.totalorder %s35, 3
      %p279 = por %p277, %p278
      %p280 = scmp.ne.s32.totalorder %s269, %s270
      %p281 = scmp.eq.s32.totalorder %s35, 0
      %p282 = por %p280, %p281
      %p283 = scmp.ne.s32.totalorder %s269, %s270
      %p284 = scmp.eq.s32.totalorder %s36, 3
      %p285 = por %p283, %p284
      %p287 = scmp.ne.s32.totalorder %s270, %s286
      %p288 = scmp.eq.s32.totalorder %s36, 0
      %p289 = por %p287, %p288
      %s290 = ssub.s32 %s38, %s45
      %p291 = scmp.eq.s32.totalorder %s290, 0
      %s293 = sadd.s32 %s292, 1
      %s294 = scalar_select %p291, %s292, %s293
      %p297 = pneg %p291
      %p298 = scmp.eq.s32.totalorder %s30, 3
      %p299 = por %p297, %p298
      %p300 = scmp.ne.s32.totalorder %s292, %s295
      %p301 = scmp.eq.s32.totalorder %s30, 0
      %p302 = por %p300, %p301
      %p303 = scmp.ne.s32.totalorder %s292, %s295
      %p304 = scmp.eq.s32.totalorder %s35, 3
      %p305 = por %p303, %p304
      %p306 = scmp.ne.s32.totalorder %s295, %s296
      %p307 = scmp.eq.s32.totalorder %s35, 0
      %p308 = por %p306, %p307
      %p309 = scmp.ne.s32.totalorder %s295, %s296
      %p310 = scmp.eq.s32.totalorder %s36, 3
      %p311 = por %p309, %p310
      %p313 = scmp.ne.s32.totalorder %s296, %s312
      %p314 = scmp.eq.s32.totalorder %s36, 0
      %p315 = por %p313, %p314
      %s316 = ssub.s32 %s38, %s45
      %p317 = scmp.eq.s32.totalorder %s316, 0
      %s319 = sadd.s32 %s318, 1
      %s320 = scalar_select %p317, %s318, %s319
      %p323 = pneg %p317
      %p324 = scmp.eq.s32.totalorder %s30, 3
      %p325 = por %p323, %p324
      %p326 = scmp.ne.s32.totalorder %s318, %s321
      %p327 = scmp.eq.s32.totalorder %s30, 0
      %p328 = por %p326, %p327
      %p329 = scmp.ne.s32.totalorder %s318, %s321
      %p330 = scmp.eq.s32.totalorder %s35, 3
      %p331 = por %p329, %p330
      %p332 = scmp.ne.s32.totalorder %s321, %s322
      %p333 = scmp.eq.s32.totalorder %s35, 0
      %p334 = por %p332, %p333
      %p335 = scmp.ne.s32.totalorder %s321, %s322
      %p336 = scmp.eq.s32.totalorder %s36, 3
      %p337 = por %p335, %p336
      %p339 = scmp.ne.s32.totalorder %s322, %s338
      %p340 = scmp.eq.s32.totalorder %s36, 0
      %p341 = por %p339, %p340
      %s342 = ssub.s32 %s38, %s45
      %p343 = scmp.eq.s32.totalorder %s342, 0
      %s345 = sadd.s32 %s344, 1
      %s346 = scalar_select %p343, %s344, %s345
      %p349 = pneg %p343
      %p350 = scmp.eq.s32.totalorder %s30, 3
      %p351 = por %p349, %p350
      %p352 = scmp.ne.s32.totalorder %s344, %s347
      %p353 = scmp.eq.s32.totalorder %s30, 0
      %p354 = por %p352, %p353
      %p355 = scmp.ne.s32.totalorder %s344, %s347
      %p356 = scmp.eq.s32.totalorder %s35, 3
      %p357 = por %p355, %p356
      %p358 = scmp.ne.s32.totalorder %s347, %s348
      %p359 = scmp.eq.s32.totalorder %s35, 0
      %p360 = por %p358, %p359
      %p361 = scmp.ne.s32.totalorder %s347, %s348
      %p362 = scmp.eq.s32.totalorder %s36, 3
      %p363 = por %p361, %p362
      %p365 = scmp.ne.s32.totalorder %s348, %s364
      %p366 = scmp.eq.s32.totalorder %s36, 0
      %p367 = por %p365, %p366
      %s368 = ssub.s32 %s38, %s45
      %p369 = scmp.eq.s32.totalorder %s368, 0
      %s371 = sadd.s32 %s370, 1
      %s372 = scalar_select %p369, %s370, %s371
      %p375 = pneg %p369
      %p376 = scmp.eq.s32.totalorder %s30, 3
      %p377 = por %p375, %p376
      %p378 = scmp.ne.s32.totalorder %s370, %s373
      %p379 = scmp.eq.s32.totalorder %s30, 0
      %p380 = por %p378, %p379
      %p381 = scmp.ne.s32.totalorder %s370, %s373
      %p382 = scmp.eq.s32.totalorder %s35, 3
      %p383 = por %p381, %p382
      %p384 = scmp.ne.s32.totalorder %s373, %s374
      %p385 = scmp.eq.s32.totalorder %s35, 0
      %p386 = por %p384, %p385
      %p387 = scmp.ne.s32.totalorder %s373, %s374
      %p388 = scmp.eq.s32.totalorder %s36, 3
      %p389 = por %p387, %p388
      %p391 = scmp.ne.s32.totalorder %s374, %s390
      %p392 = scmp.eq.s32.totalorder %s36, 0
      %p393 = por %p391, %p392
      %s394 = ssub.s32 %s38, %s45
      %p395 = scmp.eq.s32.totalorder %s394, 0
      %s397 = sadd.s32 %s396, 1
      %s398 = scalar_select %p395, %s396, %s397
      %p401 = pneg %p395
      %p402 = scmp.eq.s32.totalorder %s30, 3
      %p403 = por %p401, %p402
      %p404 = scmp.ne.s32.totalorder %s396, %s399
      %p405 = scmp.eq.s32.totalorder %s30, 0
      %p406 = por %p404, %p405
      %p407 = scmp.ne.s32.totalorder %s396, %s399
      %p408 = scmp.eq.s32.totalorder %s35, 3
      %p409 = por %p407, %p408
      %p410 = scmp.ne.s32.totalorder %s399, %s400
      %p411 = scmp.eq.s32.totalorder %s35, 0
      %p412 = por %p410, %p411
      %p413 = scmp.ne.s32.totalorder %s399, %s400
      %p414 = scmp.eq.s32.totalorder %s36, 3
      %p415 = por %p413, %p414
      %p417 = scmp.ne.s32.totalorder %s400, %s416
      %p418 = scmp.eq.s32.totalorder %s36, 0
      %p419 = por %p417, %p418
      %s420 = ssub.s32 %s38, %s45
      %p421 = scmp.eq.s32.totalorder %s420, 0
      %s423 = sadd.s32 %s422, 1
      %s424 = scalar_select %p421, %s422, %s423
      %p427 = pneg %p421
      %p428 = scmp.eq.s32.totalorder %s30, 3
      %p429 = por %p427, %p428
      %p430 = scmp.ne.s32.totalorder %s422, %s425
      %p431 = scmp.eq.s32.totalorder %s30, 0
      %p432 = por %p430, %p431
      %p433 = scmp.ne.s32.totalorder %s422, %s425
      %p434 = scmp.eq.s32.totalorder %s35, 3
      %p435 = por %p433, %p434
      %p436 = scmp.ne.s32.totalorder %s425, %s426
      %p437 = scmp.eq.s32.totalorder %s35, 0
      %p438 = por %p436, %p437
      %p439 = scmp.ne.s32.totalorder %s425, %s426
      %p440 = scmp.eq.s32.totalorder %s36, 3
      %p441 = por %p439, %p440
      %p443 = scmp.ne.s32.totalorder %s426, %s442
      %p444 = scmp.eq.s32.totalorder %s36, 0
      %p445 = por %p443, %p444
      %s446 = ssub.s32 %s38, %s45
      %p447 = scmp.eq.s32.totalorder %s446, 0
      %s449 = sadd.s32 %s448, 1
      %s450 = scalar_select %p447, %s448, %s449
      %p453 = pneg %p447
      %p454 = scmp.eq.s32.totalorder %s30, 3
      %p455 = por %p453, %p454
      %p456 = scmp.ne.s32.totalorder %s448, %s451
      %p457 = scmp.eq.s32.totalorder %s30, 0
      %p458 = por %p456, %p457
      %p459 = scmp.ne.s32.totalorder %s448, %s451
      %p460 = scmp.eq.s32.totalorder %s35, 3
      %p461 = por %p459, %p460
      %p462 = scmp.ne.s32.totalorder %s451, %s452
      %p463 = scmp.eq.s32.totalorder %s35, 0
      %p464 = por %p462, %p463
      %p465 = scmp.ne.s32.totalorder %s451, %s452
      %p466 = scmp.eq.s32.totalorder %s36, 3
      %p467 = por %p465, %p466
      %p469 = scmp.ne.s32.totalorder %s452, %s468
      %p470 = scmp.eq.s32.totalorder %s36, 0
      %p471 = por %p469, %p470
      %s473 = sadd.s32 %s472, 1
      %p476 = scmp.eq.s32.totalorder %s30, 3
      %p477 = scmp.ne.s32.totalorder %s472, %s474
      %p478 = scmp.eq.s32.totalorder %s30, 0
      %p479 = por %p477, %p478
      %p480 = scmp.ne.s32.totalorder %s472, %s474
      %p481 = scmp.eq.s32.totalorder %s35, 3
      %p482 = por %p480, %p481
      %p483 = scmp.ne.s32.totalorder %s474, %s475
      %p484 = scmp.eq.s32.totalorder %s35, 0
      %p485 = por %p483, %p484
      %p486 = scmp.ne.s32.totalorder %s474, %s475
      %p487 = scmp.eq.s32.totalorder %s36, 3
      %p488 = por %p486, %p487
      %p490 = scmp.ne.s32.totalorder %s475, %s489
      %p491 = scmp.eq.s32.totalorder %s36, 0
      %p492 = por %p490, %p491
      %s494 = sadd.s32 %s493, 1
      %p497 = scmp.eq.s32.totalorder %s30, 3
      %p498 = scmp.ne.s32.totalorder %s493, %s495
      %p499 = scmp.eq.s32.totalorder %s30, 0
      %p500 = por %p498, %p499
      %p501 = scmp.ne.s32.totalorder %s493, %s495
      %p502 = scmp.eq.s32.totalorder %s35, 3
      %p503 = por %p501, %p502
      %p504 = scmp.ne.s32.totalorder %s495, %s496
      %p505 = scmp.eq.s32.totalorder %s35, 0
      %p506 = por %p504, %p505
      %p507 = scmp.ne.s32.totalorder %s495, %s496
      %p508 = scmp.eq.s32.totalorder %s36, 3
      %p509 = por %p507, %p508
      %p511 = scmp.ne.s32.totalorder %s496, %s510
      %p512 = scmp.eq.s32.totalorder %s36, 0
      %p513 = por %p511, %p512
      %s515 = sadd.s32 %s514, 1
      %p518 = scmp.eq.s32.totalorder %s30, 3
      %p519 = scmp.ne.s32.totalorder %s514, %s516
      %p520 = scmp.eq.s32.totalorder %s30, 0
      %p521 = por %p519, %p520
      %p522 = scmp.ne.s32.totalorder %s514, %s516
      %p523 = scmp.eq.s32.totalorder %s35, 3
      %p524 = por %p522, %p523
      %p525 = scmp.ne.s32.totalorder %s516, %s517
      %p526 = scmp.eq.s32.totalorder %s35, 0
      %p527 = por %p525, %p526
      %p528 = scmp.ne.s32.totalorder %s516, %s517
      %p529 = scmp.eq.s32.totalorder %s36, 3
      %p530 = por %p528, %p529
      %p532 = scmp.ne.s32.totalorder %s517, %s531
      %p533 = scmp.eq.s32.totalorder %s36, 0
      %p534 = por %p532, %p533
      %s536 = sadd.s32 %s535, 1
      %p539 = scmp.eq.s32.totalorder %s30, 3
      %p540 = scmp.ne.s32.totalorder %s535, %s537
      %p541 = scmp.eq.s32.totalorder %s30, 0
      %p542 = por %p540, %p541
      %p543 = scmp.ne.s32.totalorder %s535, %s537
      %p544 = scmp.eq.s32.totalorder %s35, 3
      %p545 = por %p543, %p544
      %p546 = scmp.ne.s32.totalorder %s537, %s538
      %p547 = scmp.eq.s32.totalorder %s35, 0
      %p548 = por %p546, %p547
      %p549 = scmp.ne.s32.totalorder %s537, %s538
      %p550 = scmp.eq.s32.totalorder %s36, 3
      %p551 = por %p549, %p550
      %p553 = scmp.ne.s32.totalorder %s538, %s552
      %p554 = scmp.eq.s32.totalorder %s36, 0
      %p555 = por %p553, %p554
      %s556 = ssub.s32 %s37, %s49
      %p557 = scmp.eq.s32.totalorder %s556, 0
      %s559 = sadd.s32 %s558, 1
      %s560 = scalar_select %p557, %s558, %s559
      %p563 = pneg %p557
      %p564 = scmp.eq.s32.totalorder %s30, 3
      %p565 = por %p563, %p564
      %p566 = scmp.ne.s32.totalorder %s558, %s561
      %p567 = scmp.eq.s32.totalorder %s30, 0
      %p568 = por %p566, %p567
      %p569 = scmp.ne.s32.totalorder %s558, %s561
      %p570 = scmp.eq.s32.totalorder %s35, 3
      %p571 = por %p569, %p570
      %p572 = scmp.ne.s32.totalorder %s561, %s562
      %p573 = scmp.eq.s32.totalorder %s35, 0
      %p574 = por %p572, %p573
      %p575 = scmp.ne.s32.totalorder %s561, %s562
      %p576 = scmp.eq.s32.totalorder %s36, 3
      %p577 = por %p575, %p576
      %p579 = scmp.ne.s32.totalorder %s562, %s578
      %p580 = scmp.eq.s32.totalorder %s36, 0
      %p581 = por %p579, %p580
      %p582 = scmp.le.s32.totalorder 1, %s30
      %p583 = scmp.lt.s32.totalorder %s30, 5
      %p584 = pnand %p582, %p583
      %p585 = pneg %p584
      // Predicated region
      $region9: #{vit_forward.1} parent=5 // pred_check
        _
      $region10: #{vit_forward.1} parent=5 // pred_check_branch
        %587 = sbr.rel (%p584) target = $region12
      $region11: #{vit_forward.1} parent=5 // pred_region
        %s588 = ssub.s32 %s30, 1
        // Predicated region
        $region13: #{vit_forward.1} parent=11 // pred_check
          %p589 = pneg %p89
        $region14: #{vit_forward.1} parent=11 // pred_check_branch
          %591 = sbr.rel (%p589) target = $region16
        $region15: #{vit_forward.1} parent=11 // pred_region
          _
        $region16: #{vit_forward.1} parent=11 // pred_fallthru
          _
        // Predicated region
        $region17: #{vit_forward.1} parent=11 // pred_check
          %p592 = pneg %p110
        $region18: #{vit_forward.1} parent=11 // pred_check_branch
          %594 = sbr.rel (%p592) target = $region20
        $region19: #{vit_forward.1} parent=11 // pred_region
          _
        $region20: #{vit_forward.1} parent=11 // pred_fallthru
          _
        // Predicated region
        $region21: #{vit_forward.1} parent=11 // pred_check
          %p595 = pneg %p131
        $region22: #{vit_forward.1} parent=11 // pred_check_branch
          %597 = sbr.rel (%p595) target = $region24
        $region23: #{vit_forward.1} parent=11 // pred_region
          _
        $region24: #{vit_forward.1} parent=11 // pred_fallthru
          _
        // Predicated region
        $region25: #{vit_forward.1} parent=11 // pred_check
          %p598 = pneg %p152
        $region26: #{vit_forward.1} parent=11 // pred_check_branch
          %600 = sbr.rel (%p598) target = $region28
        $region27: #{vit_forward.1} parent=11 // pred_region
          _
        $region28: #{vit_forward.1} parent=11 // pred_fallthru
          _
        // Predicated region
        $region29: #{vit_forward.1} parent=11 // pred_check
          %p601 = pneg %p485
        $region30: #{vit_forward.1} parent=11 // pred_check_branch
          %603 = sbr.rel (%p601) target = $region32
        $region31: #{vit_forward.1} parent=11 // pred_region
          _
        $region32: #{vit_forward.1} parent=11 // pred_fallthru
          _
        // Predicated region
        $region33: #{vit_forward.1} parent=11 // pred_check
          %p604 = pneg %p506
        $region34: #{vit_forward.1} parent=11 // pred_check_branch
          %606 = sbr.rel (%p604) target = $region36
        $region35: #{vit_forward.1} parent=11 // pred_region
          _
        $region36: #{vit_forward.1} parent=11 // pred_fallthru
          _
        // Predicated region
        $region37: #{vit_forward.1} parent=11 // pred_check
          %p607 = pneg %p527
        $region38: #{vit_forward.1} parent=11 // pred_check_branch
          %609 = sbr.rel (%p607) target = $region40
        $region39: #{vit_forward.1} parent=11 // pred_region
          _
        $region40: #{vit_forward.1} parent=11 // pred_fallthru
          _
        // Predicated region
        $region41: #{vit_forward.1} parent=11 // pred_check
          %p610 = pneg %p548
        $region42: #{vit_forward.1} parent=11 // pred_check_branch
          %612 = sbr.rel (%p610) target = $region44
        $region43: #{vit_forward.1} parent=11 // pred_region
          _
        $region44: #{vit_forward.1} parent=11 // pred_fallthru
          _
      $region12: #{vit_forward.1} parent=5 // pred_fallthru
        _
      %p613 = scmp.lt.s32.totalorder %s30, 4
      // Predicated region
      $region45: #{vit_forward.1} parent=5 // pred_check
        %p614 = pneg %p613
      $region46: #{vit_forward.1} parent=5 // pred_check_branch
        %616 = sbr.rel (%p614) target = $region48
      $region47: #{vit_forward.1} parent=5 // pred_region
        // Predicated region
        $region49: #{vit_forward.1} parent=47 // pred_check
          %p617 = pneg %p62
        $region50: #{vit_forward.1} parent=47 // pred_check_branch
          %619 = sbr.rel (%p617) target = $region52
        $region51: #{vit_forward.1} parent=47 // pred_region
          %p620 = scmp.lt.s32.totalorder %s37, 1
          %s621 = scalar_select %p620, %s37, 1
          %s622 = smul.addr %s621, 6
          %s623 = smul.addr %s622, 4
          %s624 = scalar_lea.vmem %s0, %s623
        $region52: #{vit_forward.1} parent=47 // pred_fallthru
          _
        // Predicated region
        $region53: #{vit_forward.1} parent=47 // pred_check
          %p625 = pneg %p172
        $region54: #{vit_forward.1} parent=47 // pred_check_branch
          %627 = sbr.rel (%p625) target = $region56
        $region55: #{vit_forward.1} parent=47 // pred_region
          %p628 = scmp.lt.s32.totalorder %s38, 1
          %s629 = scalar_select %p628, %s38, 1
          %s630 = scalar_lea.vmem %s5, %s629
        $region56: #{vit_forward.1} parent=47 // pred_fallthru
          _
        // Predicated region
        $region57: #{vit_forward.1} parent=47 // pred_check
          %p631 = pneg %p198
        $region58: #{vit_forward.1} parent=47 // pred_check_branch
          %633 = sbr.rel (%p631) target = $region60
        $region59: #{vit_forward.1} parent=47 // pred_region
          %p634 = scmp.lt.s32.totalorder %s38, 1
          %s635 = scalar_select %p634, %s38, 1
          %s636 = scalar_lea.vmem %s6, %s635
        $region60: #{vit_forward.1} parent=47 // pred_fallthru
          _
        // Predicated region
        $region61: #{vit_forward.1} parent=47 // pred_check
          %p637 = pneg %p224
        $region62: #{vit_forward.1} parent=47 // pred_check_branch
          %639 = sbr.rel (%p637) target = $region64
        $region63: #{vit_forward.1} parent=47 // pred_region
          %p640 = scmp.lt.s32.totalorder %s38, 1
          %s641 = scalar_select %p640, %s38, 1
          %s642 = smul.addr %s641, 48
          %s643 = smul.addr %s642, 4
          %s644 = scalar_lea.vmem %s7, %s643
        $region64: #{vit_forward.1} parent=47 // pred_fallthru
          _
        // Predicated region
        $region65: #{vit_forward.1} parent=47 // pred_check
          %p645 = pneg %p250
        $region66: #{vit_forward.1} parent=47 // pred_check_branch
          %647 = sbr.rel (%p645) target = $region68
        $region67: #{vit_forward.1} parent=47 // pred_region
          %p648 = scmp.lt.s32.totalorder %s38, 1
          %s649 = scalar_select %p648, %s38, 1
          %s650 = smul.addr %s649, 3
          %s651 = scalar_lea.vmem %s8, %s650
        $region68: #{vit_forward.1} parent=47 // pred_fallthru
          _
        // Predicated region
        $region69: #{vit_forward.1} parent=47 // pred_check
          %p652 = pneg %p276
        $region70: #{vit_forward.1} parent=47 // pred_check_branch
          %654 = sbr.rel (%p652) target = $region72
        $region71: #{vit_forward.1} parent=47 // pred_region
          %p655 = scmp.lt.s32.totalorder %s38, 1
          %s656 = scalar_select %p655, %s38, 1
          %s657 = smul.addr %s656, 16
          %s658 = smul.addr %s657, 4
          %s659 = scalar_lea.vmem %s9, %s658
        $region72: #{vit_forward.1} parent=47 // pred_fallthru
          _
        // Predicated region
        $region73: #{vit_forward.1} parent=47 // pred_check
          %p660 = pneg %p302
        $region74: #{vit_forward.1} parent=47 // pred_check_branch
          %662 = sbr.rel (%p660) target = $region76
        $region75: #{vit_forward.1} parent=47 // pred_region
          %p663 = scmp.lt.s32.totalorder %s38, 1
          %s664 = scalar_select %p663, %s38, 1
          %s665 = scalar_lea.vmem %s10, %s664
        $region76: #{vit_forward.1} parent=47 // pred_fallthru
          _
        // Predicated region
        $region77: #{vit_forward.1} parent=47 // pred_check
          %p666 = pneg %p328
        $region78: #{vit_forward.1} parent=47 // pred_check_branch
          %668 = sbr.rel (%p666) target = $region80
        $region79: #{vit_forward.1} parent=47 // pred_region
          %p669 = scmp.lt.s32.totalorder %s38, 1
          %s670 = scalar_select %p669, %s38, 1
          %s671 = scalar_lea.vmem %s11, %s670
        $region80: #{vit_forward.1} parent=47 // pred_fallthru
          _
        // Predicated region
        $region81: #{vit_forward.1} parent=47 // pred_check
          %p672 = pneg %p354
        $region82: #{vit_forward.1} parent=47 // pred_check_branch
          %674 = sbr.rel (%p672) target = $region84
        $region83: #{vit_forward.1} parent=47 // pred_region
          %p675 = scmp.lt.s32.totalorder %s38, 1
          %s676 = scalar_select %p675, %s38, 1
          %s677 = scalar_lea.vmem %s12, %s676
        $region84: #{vit_forward.1} parent=47 // pred_fallthru
          _
        // Predicated region
        $region85: #{vit_forward.1} parent=47 // pred_check
          %p678 = pneg %p380
        $region86: #{vit_forward.1} parent=47 // pred_check_branch
          %680 = sbr.rel (%p678) target = $region88
        $region87: #{vit_forward.1} parent=47 // pred_region
          %p681 = scmp.lt.s32.totalorder %s38, 1
          %s682 = scalar_select %p681, %s38, 1
          %s683 = smul.addr %s682, 32
          %s684 = smul.addr %s683, 4
          %s685 = scalar_lea.vmem %s13, %s684
        $region88: #{vit_forward.1} parent=47 // pred_fallthru
          _
        // Predicated region
        $region89: #{vit_forward.1} parent=47 // pred_check
          %p686 = pneg %p406
        $region90: #{vit_forward.1} parent=47 // pred_check_branch
          %688 = sbr.rel (%p686) target = $region92
        $region91: #{vit_forward.1} parent=47 // pred_region
          %p689 = scmp.lt.s32.totalorder %s38, 1
          %s690 = scalar_select %p689, %s38, 1
          %s691 = smul.addr %s690, 2
          %s692 = scalar_lea.vmem %s14, %s691
        $region92: #{vit_forward.1} parent=47 // pred_fallthru
          _
        // Predicated region
        $region93: #{vit_forward.1} parent=47 // pred_check
          %p693 = pneg %p432
        $region94: #{vit_forward.1} parent=47 // pred_check_branch
          %695 = sbr.rel (%p693) target = $region96
        $region95: #{vit_forward.1} parent=47 // pred_region
          %p696 = scmp.lt.s32.totalorder %s38, 1
          %s697 = scalar_select %p696, %s38, 1
          %s698 = smul.addr %s697, 32
          %s699 = smul.addr %s698, 4
          %s700 = scalar_lea.vmem %s15, %s699
        $region96: #{vit_forward.1} parent=47 // pred_fallthru
          _
        // Predicated region
        $region97: #{vit_forward.1} parent=47 // pred_check
          %p701 = pneg %p458
        $region98: #{vit_forward.1} parent=47 // pred_check_branch
          %703 = sbr.rel (%p701) target = $region100
        $region99: #{vit_forward.1} parent=47 // pred_region
          %p704 = scmp.lt.s32.totalorder %s38, 1
          %s705 = scalar_select %p704, %s38, 1
          %s706 = scalar_lea.vmem %s16, %s705
        $region100: #{vit_forward.1} parent=47 // pred_fallthru
          _
      $region48: #{vit_forward.1} parent=5 // pred_fallthru
        _
      %p707 = scmp.le.s32.totalorder 1, %s30
      %p708 = scmp.lt.s32.totalorder %s30, 5
      %p709 = pnand %p707, %p708
      %p710 = pneg %p709
      // Predicated region
      $region101: #{vit_forward.1} parent=5 // pred_check
        _
      $region102: #{vit_forward.1} parent=5 // pred_check_branch
        %712 = sbr.rel (%p709) target = $region104
      $region103: #{vit_forward.1} parent=5 // pred_region
        %s713 = ssub.s32 %s30, 1
        %p714 = scmp.lt.s32.totalorder %s39, 1
        %s715 = scalar_select %p714, %s39, 1
        %s716 = smul.addr %s715, 6
        %s717 = smul.addr %s716, 4
        %s718 = scalar_lea.vmem %s0, %s717
        %p719 = pneg %p68
        %p720 = pneg %p65
        %p721 = pneg %p89
        %p722 = pneg %p86
        %p723 = pneg %p110
        %p724 = pneg %p107
        %p725 = pneg %p131
        %p726 = pneg %p128
        %p727 = pneg %p152
        %p728 = pneg %p149
        %p729 = scmp.lt.s32.totalorder %s40, 1
        %s730 = scalar_select %p729, %s40, 1
        %s731 = scalar_lea.vmem %s5, %s730
        %p732 = pneg %p178
        %p733 = pneg %p175
        %p734 = scmp.lt.s32.totalorder %s40, 1
        %s735 = scalar_select %p734, %s40, 1
        %s736 = scalar_lea.vmem %s6, %s735
        %p737 = pneg %p204
        %p738 = pneg %p201
        %p739 = scmp.lt.s32.totalorder %s40, 1
        %s740 = scalar_select %p739, %s40, 1
        %s741 = smul.addr %s740, 48
        %s742 = smul.addr %s741, 4
        %s743 = scalar_lea.vmem %s7, %s742
        %p744 = pneg %p230
        %p745 = pneg %p227
        %p746 = scmp.lt.s32.totalorder %s40, 1
        %s747 = scalar_select %p746, %s40, 1
        %s748 = smul.addr %s747, 3
        %s749 = scalar_lea.vmem %s8, %s748
        %p750 = pneg %p256
        %p751 = pneg %p253
        %p752 = scmp.lt.s32.totalorder %s40, 1
        %s753 = scalar_select %p752, %s40, 1
        %s754 = smul.addr %s753, 16
        %s755 = smul.addr %s754, 4
        %s756 = scalar_lea.vmem %s9, %s755
        %p757 = pneg %p282
        %p758 = pneg %p279
        %p759 = scmp.lt.s32.totalorder %s40, 1
        %s760 = scalar_select %p759, %s40, 1
        %s761 = scalar_lea.vmem %s10, %s760
        %p762 = pneg %p308
        %p763 = pneg %p305
        %p764 = scmp.lt.s32.totalorder %s40, 1
        %s765 = scalar_select %p764, %s40, 1
        %s766 = scalar_lea.vmem %s11, %s765
        %p767 = pneg %p334
        %p768 = pneg %p331
        %p769 = scmp.lt.s32.totalorder %s40, 1
        %s770 = scalar_select %p769, %s40, 1
        %s771 = scalar_lea.vmem %s12, %s770
        %p772 = pneg %p360
        %p773 = pneg %p357
        %p774 = scmp.lt.s32.totalorder %s40, 1
        %s775 = scalar_select %p774, %s40, 1
        %s776 = smul.addr %s775, 32
        %s777 = smul.addr %s776, 4
        %s778 = scalar_lea.vmem %s13, %s777
        %p779 = pneg %p386
        %p780 = pneg %p383
        %p781 = scmp.lt.s32.totalorder %s40, 1
        %s782 = scalar_select %p781, %s40, 1
        %s783 = smul.addr %s782, 2
        %s784 = scalar_lea.vmem %s14, %s783
        %p785 = pneg %p412
        %p786 = pneg %p409
        %p787 = scmp.lt.s32.totalorder %s40, 1
        %s788 = scalar_select %p787, %s40, 1
        %s789 = smul.addr %s788, 32
        %s790 = smul.addr %s789, 4
        %s791 = scalar_lea.vmem %s15, %s790
        %p792 = pneg %p438
        %p793 = pneg %p435
        %p794 = scmp.lt.s32.totalorder %s40, 1
        %s795 = scalar_select %p794, %s40, 1
        %s796 = scalar_lea.vmem %s16, %s795
        %p797 = pneg %p464
        %p798 = pneg %p461
        %p799 = pneg %p485
        %p800 = pneg %p482
        %p801 = pneg %p506
        %p802 = pneg %p503
        %p803 = pneg %p527
        %p804 = pneg %p524
        %p805 = pneg %p548
        %p806 = pneg %p545
        %p807 = pneg %p574
        %p808 = pneg %p571
        %s809 = sand.u32 %s561, 1
        %s810 = scalar_lea.sflag [#allocation4], %s809
        %s811 = sand.u32 %s561, 1
        %s812 = scalar_lea.vmem [#allocation3], %s811
        %p813 = scmp.lt.s32.totalorder %s39, 1
        %s814 = scalar_select %p813, %s39, 1
        %s815 = smul.addr %s814, 6
        %s816 = smul.addr %s815, 4
        %s817 = scalar_lea.vmem %s0, %s816
        %p818 = scmp.lt.s32.totalorder %s40, 1
        %s819 = scalar_select %p818, %s40, 1
        %s820 = scalar_lea.vmem %s5, %s819
        %p821 = scmp.lt.s32.totalorder %s40, 1
        %s822 = scalar_select %p821, %s40, 1
        %s823 = scalar_lea.vmem %s6, %s822
        %p824 = scmp.lt.s32.totalorder %s40, 1
        %s825 = scalar_select %p824, %s40, 1
        %s826 = smul.addr %s825, 48
        %s827 = smul.addr %s826, 4
        %s828 = scalar_lea.vmem %s7, %s827
        %p829 = scmp.lt.s32.totalorder %s40, 1
        %s830 = scalar_select %p829, %s40, 1
        %s831 = smul.addr %s830, 3
        %s832 = scalar_lea.vmem %s8, %s831
        %p833 = scmp.lt.s32.totalorder %s40, 1
        %s834 = scalar_select %p833, %s40, 1
        %s835 = smul.addr %s834, 16
        %s836 = smul.addr %s835, 4
        %s837 = scalar_lea.vmem %s9, %s836
        %p838 = scmp.lt.s32.totalorder %s40, 1
        %s839 = scalar_select %p838, %s40, 1
        %s840 = scalar_lea.vmem %s10, %s839
        %p841 = scmp.lt.s32.totalorder %s40, 1
        %s842 = scalar_select %p841, %s40, 1
        %s843 = scalar_lea.vmem %s11, %s842
        %p844 = scmp.lt.s32.totalorder %s40, 1
        %s845 = scalar_select %p844, %s40, 1
        %s846 = scalar_lea.vmem %s12, %s845
        %p847 = scmp.lt.s32.totalorder %s40, 1
        %s848 = scalar_select %p847, %s40, 1
        %s849 = smul.addr %s848, 32
        %s850 = smul.addr %s849, 4
        %s851 = scalar_lea.vmem %s13, %s850
        %p852 = scmp.lt.s32.totalorder %s40, 1
        %s853 = scalar_select %p852, %s40, 1
        %s854 = smul.addr %s853, 2
        %s855 = scalar_lea.vmem %s14, %s854
        %p856 = scmp.lt.s32.totalorder %s40, 1
        %s857 = scalar_select %p856, %s40, 1
        %s858 = smul.addr %s857, 32
        %s859 = smul.addr %s858, 4
        %s860 = scalar_lea.vmem %s15, %s859
        %p861 = scmp.lt.s32.totalorder %s40, 1
        %s862 = scalar_select %p861, %s40, 1
        %s863 = scalar_lea.vmem %s16, %s862
        %p865 = scmp.eq.s32.totalorder %s40, 0
        // Predicated region
        $region105: #{vit_forward.1} parent=103 // pred_check
          %p866 = pneg %p865
        $region106: #{vit_forward.1} parent=103 // pred_check_branch
          %868 = sbr.rel (%p866) target = $region108
        $region107: #{vit_forward.1} parent=103 // pred_region
          %v869 = vld [vmem:[%s817] sm:$0xff]
          %v870 = vld [vmem:[%s817 + $0x8] sm:$0xff]
          %v871 = vld [vmem:[%s817 + $0x10] sm:$0xff]
          %v872 = vld [vmem:[%s1] sm:$0xf]
          %v873 = vld [vmem:[%s1 + $0x4] sm:$0xf]
          %v874 = vld [vmem:[%s1 + $0x8] sm:$0xf]
          %v875 = vld [vmem:[%s1 + $0xc] sm:$0xf]
          %v876 = vld [vmem:[%s1 + $0x10] sm:$0xf]
          %v877 = vld [vmem:[%s1 + $0x14] sm:$0xf]
          %v878 = vld [vmem:[%s1 + $0x18] sm:$0xf]
          %v879 = vld [vmem:[%s1 + $0x1c] sm:$0xf]
          %v880 = vld [vmem:[%s1 + $0x20] sm:$0xf]
          %v881 = vld [vmem:[%s1 + $0x24] sm:$0xf]
          %v882 = vld [vmem:[%s1 + $0x28] sm:$0xf]
          %v883 = vld [vmem:[%s1 + $0x2c] sm:$0xf]
          %v884 = vld [vmem:[%s1 + $0x30] sm:$0xf]
          %v885 = vld [vmem:[%s1 + $0x34] sm:$0xf]
          %v886 = vld [vmem:[%s1 + $0x38] sm:$0xf]
          %v887 = vld [vmem:[%s1 + $0x3c] sm:$0xf]
          %v888 = vld [vmem:[%s1 + $0x40] sm:$0xf]
          %v889 = vld [vmem:[%s1 + $0x44] sm:$0xf]
          %v890 = vld [vmem:[%s1 + $0x48] sm:$0xf]
          %v891 = vld [vmem:[%s1 + $0x4c] sm:$0xf]
          %v892 = vld [vmem:[%s1 + $0x50] sm:$0xf]
          %v893 = vld [vmem:[%s1 + $0x54] sm:$0xf]
          %v894 = vld [vmem:[%s1 + $0x58] sm:$0xf]
          %v895 = vld [vmem:[%s1 + $0x5c] sm:$0xf]
          %v896 = vld [vmem:[%s1 + $0x60] sm:$0xf]
          %v897 = vld [vmem:[%s1 + $0x64] sm:$0xf]
          %v898 = vld [vmem:[%s1 + $0x68] sm:$0xf]
          %v899 = vld [vmem:[%s1 + $0x6c] sm:$0xf]
          %v900 = vld [vmem:[%s1 + $0x70] sm:$0xf]
          %v901 = vld [vmem:[%s1 + $0x74] sm:$0xf]
          %v902 = vld [vmem:[%s1 + $0x78] sm:$0xf]
          %v903 = vld [vmem:[%s1 + $0x7c] sm:$0xf]
          %v904 = vld [vmem:[%s1 + $0x80] sm:$0xf]
          %v905 = vld [vmem:[%s1 + $0x84] sm:$0xf]
          %v906 = vld [vmem:[%s1 + $0x88] sm:$0xf]
          %v907 = vld [vmem:[%s1 + $0x8c] sm:$0xf]
          %v908 = vld [vmem:[%s1 + $0x90] sm:$0xf]
          %v909 = vld [vmem:[%s1 + $0x94] sm:$0xf]
          %v910 = vld [vmem:[%s1 + $0x98] sm:$0xf]
          %v911 = vld [vmem:[%s1 + $0x9c] sm:$0xf]
          %v912 = vld [vmem:[%s1 + $0xa0] sm:$0xf]
          %v913 = vld [vmem:[%s1 + $0xa4] sm:$0xf]
          %v914 = vld [vmem:[%s1 + $0xa8] sm:$0xf]
          %v915 = vld [vmem:[%s1 + $0xac] sm:$0xf]
          %v916 = vld [vmem:[%s1 + $0xb0] sm:$0xf]
          %v917 = vld [vmem:[%s1 + $0xb4] sm:$0xf]
          %v918 = vld [vmem:[%s1 + $0xb8] sm:$0xf]
          %v919 = vld [vmem:[%s1 + $0xbc] sm:$0xf]
          %v920 = vld [vmem:[%s1 + $0xc0] sm:$0xf]
          %v921 = vld [vmem:[%s1 + $0xc4] sm:$0xf]
          %v922 = vld [vmem:[%s1 + $0xc8] sm:$0xf]
          %v923 = vld [vmem:[%s1 + $0xcc] sm:$0xf]
          %v924 = vld [vmem:[%s1 + $0xd0] sm:$0xf]
          %v925 = vld [vmem:[%s1 + $0xd4] sm:$0xf]
          %v926 = vld [vmem:[%s1 + $0xd8] sm:$0xf]
          %v927 = vld [vmem:[%s1 + $0xdc] sm:$0xf]
          %v928 = vld [vmem:[%s1 + $0xe0] sm:$0xf]
          %v929 = vld [vmem:[%s1 + $0xe4] sm:$0xf]
          %v930 = vld [vmem:[%s1 + $0xe8] sm:$0xf]
          %v931 = vld [vmem:[%s1 + $0xec] sm:$0xf]
          %v932 = vld [vmem:[%s1 + $0xf0] sm:$0xf]
          %v933 = vld [vmem:[%s1 + $0xf4] sm:$0xf]
          %v934 = vld [vmem:[%s1 + $0xf8] sm:$0xf]
          %v935 = vld [vmem:[%s1 + $0xfc] sm:$0xf]
          %v936 = vld [vmem:[%s1 + $0x100] sm:$0xf]
          %v937 = vld [vmem:[%s1 + $0x104] sm:$0xf]
          %v938 = vld [vmem:[%s1 + $0x108] sm:$0xf]
          %v939 = vld [vmem:[%s1 + $0x10c] sm:$0xf]
          %v940 = vld [vmem:[%s1 + $0x110] sm:$0xf]
          %v941 = vld [vmem:[%s1 + $0x114] sm:$0xf]
          %v942 = vld [vmem:[%s1 + $0x118] sm:$0xf]
          %v943 = vld [vmem:[%s1 + $0x11c] sm:$0xf]
          %v944 = vld [vmem:[%s1 + $0x120] sm:$0xf]
          %v945 = vld [vmem:[%s1 + $0x124] sm:$0xf]
          %v946 = vld [vmem:[%s1 + $0x128] sm:$0xf]
          %v947 = vld [vmem:[%s1 + $0x12c] sm:$0xf]
          %v948 = vld [vmem:[%s1 + $0x130] sm:$0xf]
          %v949 = vld [vmem:[%s1 + $0x134] sm:$0xf]
          %v950 = vld [vmem:[%s1 + $0x138] sm:$0xf]
          %v951 = vld [vmem:[%s1 + $0x13c] sm:$0xf]
          %v952 = vld [vmem:[%s1 + $0x140] sm:$0xf]
          %v953 = vld [vmem:[%s1 + $0x144] sm:$0xf]
          %v954 = vld [vmem:[%s1 + $0x148] sm:$0xf]
          %v955 = vld [vmem:[%s1 + $0x14c] sm:$0xf]
          %v956 = vld [vmem:[%s1 + $0x150] sm:$0xf]
          %v957 = vld [vmem:[%s1 + $0x154] sm:$0xf]
          %v958 = vld [vmem:[%s1 + $0x158] sm:$0xf]
          %v959 = vld [vmem:[%s1 + $0x15c] sm:$0xf]
          %v960 = vld [vmem:[%s1 + $0x160] sm:$0xf]
          %v961 = vld [vmem:[%s1 + $0x164] sm:$0xf]
          %v962 = vld [vmem:[%s1 + $0x168] sm:$0xf]
          %v963 = vld [vmem:[%s1 + $0x16c] sm:$0xf]
          %v964 = vld [vmem:[%s1 + $0x170] sm:$0xf]
          %v965 = vld [vmem:[%s1 + $0x174] sm:$0xf]
          %v966 = vld [vmem:[%s1 + $0x178] sm:$0xf]
          %v967 = vld [vmem:[%s1 + $0x17c] sm:$0xf]
          %v971 = vcombine.high %v869, %v869
          %v972 = vcombine.high %v870, %v870
          %v973 = vcombine.high %v871, %v871
          %v977 = vpack.c.bf16 %v869, %v869
          %v978 = vpack.c.bf16 %v971, %v971
          %v979 = vpack.c.bf16 %v870, %v870
          %v980 = vpack.c.bf16 %v972, %v972
          %v981 = vpack.c.bf16 %v871, %v871
          %v982 = vpack.c.bf16 %v973, %v973
          %v983 = vld [vmem:[%s2] sm:$0x1]
          %v985 = vlaneseq
          %v986 = vshrl.u32 %v985, 7
          %v987 = vsub.s32 0, %v986
          %v988 = vrot.slane %v983, %v987
          %v1086 = vunpack.c.l.b16 %v872
          %v1087 = vunpack.c.l.b16 %v873
          %v1088 = vunpack.c.l.b16 %v874
          %v1089 = vunpack.c.l.b16 %v875
          %v1090 = vunpack.c.l.b16 %v876
          %v1091 = vunpack.c.l.b16 %v877
          %v1092 = vunpack.c.l.b16 %v878
          %v1093 = vunpack.c.l.b16 %v879
          %v1094 = vunpack.c.l.b16 %v880
          %v1095 = vunpack.c.l.b16 %v881
          %v1096 = vunpack.c.l.b16 %v882
          %v1097 = vunpack.c.l.b16 %v883
          %v1098 = vunpack.c.l.b16 %v884
          %v1099 = vunpack.c.l.b16 %v885
          %v1100 = vunpack.c.l.b16 %v886
          %v1101 = vunpack.c.l.b16 %v887
          %v1102 = vunpack.c.l.b16 %v888
          %v1103 = vunpack.c.l.b16 %v889
          %v1104 = vunpack.c.l.b16 %v890
          %v1105 = vunpack.c.l.b16 %v891
          %v1106 = vunpack.c.l.b16 %v892
          %v1107 = vunpack.c.l.b16 %v893
          %v1108 = vunpack.c.l.b16 %v894
          %v1109 = vunpack.c.l.b16 %v895
          %v1110 = vunpack.c.l.b16 %v896
          %v1111 = vunpack.c.l.b16 %v897
          %v1112 = vunpack.c.l.b16 %v898
          %v1113 = vunpack.c.l.b16 %v899
          %v1114 = vunpack.c.l.b16 %v900
          %v1115 = vunpack.c.l.b16 %v901
          %v1116 = vunpack.c.l.b16 %v902
          %v1117 = vunpack.c.l.b16 %v903
          %v1118 = vunpack.c.l.b16 %v904
          %v1119 = vunpack.c.l.b16 %v905
          %v1120 = vunpack.c.l.b16 %v906
          %v1121 = vunpack.c.l.b16 %v907
          %v1122 = vunpack.c.l.b16 %v908
          %v1123 = vunpack.c.l.b16 %v909
          %v1124 = vunpack.c.l.b16 %v910
          %v1125 = vunpack.c.l.b16 %v911
          %v1126 = vunpack.c.l.b16 %v912
          %v1127 = vunpack.c.l.b16 %v913
          %v1128 = vunpack.c.l.b16 %v914
          %v1129 = vunpack.c.l.b16 %v915
          %v1130 = vunpack.c.l.b16 %v916
          %v1131 = vunpack.c.l.b16 %v917
          %v1132 = vunpack.c.l.b16 %v918
          %v1133 = vunpack.c.l.b16 %v919
          %v1134 = vunpack.c.l.b16 %v920
          %v1135 = vunpack.c.l.b16 %v921
          %v1136 = vunpack.c.l.b16 %v922
          %v1137 = vunpack.c.l.b16 %v923
          %v1138 = vunpack.c.l.b16 %v924
          %v1139 = vunpack.c.l.b16 %v925
          %v1140 = vunpack.c.l.b16 %v926
          %v1141 = vunpack.c.l.b16 %v927
          %v1142 = vunpack.c.l.b16 %v928
          %v1143 = vunpack.c.l.b16 %v929
          %v1144 = vunpack.c.l.b16 %v930
          %v1145 = vunpack.c.l.b16 %v931
          %v1146 = vunpack.c.l.b16 %v932
          %v1147 = vunpack.c.l.b16 %v933
          %v1148 = vunpack.c.l.b16 %v934
          %v1149 = vunpack.c.l.b16 %v935
          %v1150 = vunpack.c.l.b16 %v936
          %v1151 = vunpack.c.l.b16 %v937
          %v1152 = vunpack.c.l.b16 %v938
          %v1153 = vunpack.c.l.b16 %v939
          %v1154 = vunpack.c.l.b16 %v940
          %v1155 = vunpack.c.l.b16 %v941
          %v1156 = vunpack.c.l.b16 %v942
          %v1157 = vunpack.c.l.b16 %v943
          %v1158 = vunpack.c.l.b16 %v944
          %v1159 = vunpack.c.l.b16 %v945
          %v1160 = vunpack.c.l.b16 %v946
          %v1161 = vunpack.c.l.b16 %v947
          %v1162 = vunpack.c.l.b16 %v948
          %v1163 = vunpack.c.l.b16 %v949
          %v1164 = vunpack.c.l.b16 %v950
          %v1165 = vunpack.c.l.b16 %v951
          %v1166 = vunpack.c.l.b16 %v952
          %v1167 = vunpack.c.l.b16 %v953
          %v1168 = vunpack.c.l.b16 %v954
          %v1169 = vunpack.c.l.b16 %v955
          %v1170 = vunpack.c.l.b16 %v956
          %v1171 = vunpack.c.l.b16 %v957
          %v1172 = vunpack.c.l.b16 %v958
          %v1173 = vunpack.c.l.b16 %v959
          %v1174 = vunpack.c.l.b16 %v960
          %v1175 = vunpack.c.l.b16 %v961
          %v1176 = vunpack.c.l.b16 %v962
          %v1177 = vunpack.c.l.b16 %v963
          %v1178 = vunpack.c.l.b16 %v964
          %v1179 = vunpack.c.l.b16 %v965
          %v1180 = vunpack.c.l.b16 %v966
          %v1181 = vunpack.c.l.b16 %v967
          %v1182 = vpack.c.b16 %v1087, %v1086
          %v1183 = vpack.c.b16 %v1089, %v1088
          %v1184 = vpack.c.b16 %v1091, %v1090
          %v1185 = vpack.c.b16 %v1093, %v1092
          %v1186 = vpack.c.b16 %v1095, %v1094
          %v1187 = vpack.c.b16 %v1097, %v1096
          %v1188 = vpack.c.b16 %v1099, %v1098
          %v1189 = vpack.c.b16 %v1101, %v1100
          %v1190 = vpack.c.b16 %v1103, %v1102
          %v1191 = vpack.c.b16 %v1105, %v1104
          %v1192 = vpack.c.b16 %v1107, %v1106
          %v1193 = vpack.c.b16 %v1109, %v1108
          %v1194 = vpack.c.b16 %v1111, %v1110
          %v1195 = vpack.c.b16 %v1113, %v1112
          %v1196 = vpack.c.b16 %v1115, %v1114
          %v1197 = vpack.c.b16 %v1117, %v1116
          %v1198 = vpack.c.b16 %v1119, %v1118
          %v1199 = vpack.c.b16 %v1121, %v1120
          %v1200 = vpack.c.b16 %v1123, %v1122
          %v1201 = vpack.c.b16 %v1125, %v1124
          %v1202 = vpack.c.b16 %v1127, %v1126
          %v1203 = vpack.c.b16 %v1129, %v1128
          %v1204 = vpack.c.b16 %v1131, %v1130
          %v1205 = vpack.c.b16 %v1133, %v1132
          %v1206 = vpack.c.b16 %v1135, %v1134
          %v1207 = vpack.c.b16 %v1137, %v1136
          %v1208 = vpack.c.b16 %v1139, %v1138
          %v1209 = vpack.c.b16 %v1141, %v1140
          %v1210 = vpack.c.b16 %v1143, %v1142
          %v1211 = vpack.c.b16 %v1145, %v1144
          %v1212 = vpack.c.b16 %v1147, %v1146
          %v1213 = vpack.c.b16 %v1149, %v1148
          %v1214 = vpack.c.b16 %v1151, %v1150
          %v1215 = vpack.c.b16 %v1153, %v1152
          %v1216 = vpack.c.b16 %v1155, %v1154
          %v1217 = vpack.c.b16 %v1157, %v1156
          %v1218 = vpack.c.b16 %v1159, %v1158
          %v1219 = vpack.c.b16 %v1161, %v1160
          %v1220 = vpack.c.b16 %v1163, %v1162
          %v1221 = vpack.c.b16 %v1165, %v1164
          %v1222 = vpack.c.b16 %v1167, %v1166
          %v1223 = vpack.c.b16 %v1169, %v1168
          %v1224 = vpack.c.b16 %v1171, %v1170
          %v1225 = vpack.c.b16 %v1173, %v1172
          %v1226 = vpack.c.b16 %v1175, %v1174
          %v1227 = vpack.c.b16 %v1177, %v1176
          %v1228 = vpack.c.b16 %v1179, %v1178
          %v1229 = vpack.c.b16 %v1181, %v1180
          %1278 = vmatprep.subr.bf16.mxu0 0
          %1279 = vmatpush1.bf16.msra.mxu0 %v1182
          %1280 = vmatprep.subr.bf16.mxu0 0
          %1281 = vmatpush1.bf16.msra.mxu0 %v1183
          %1282 = vmatprep.subr.bf16.mxu0 0
          %1283 = vmatpush1.bf16.msra.mxu0 %v1184
          %1284 = vmatprep.subr.bf16.mxu0 0
          %1285 = vmatpush1.bf16.msra.mxu0 %v1185
          %1286 = vmatprep.subr.bf16.mxu0 0
          %1287 = vmatpush1.bf16.msra.mxu0 %v1186
          %1288 = vmatprep.subr.bf16.mxu0 0
          %1289 = vmatpush1.bf16.msra.mxu0 %v1187
          %1290 = vmatprep.subr.bf16.mxu0 0
          %1291 = vmatpush1.bf16.msra.mxu0 %v1188
          %1292 = vmatprep.subr.bf16.mxu0 0
          %1293 = vmatpush1.bf16.msra.mxu0 %v1189
          %1294 = vmatprep.subr.bf16.mxu0 0
          %1295 = vmatpush1.bf16.msra.mxu0 %v1190
          %1296 = vmatprep.subr.bf16.mxu0 0
          %1297 = vmatpush1.bf16.msra.mxu0 %v1191
          %1298 = vmatprep.subr.bf16.mxu0 0
          %1299 = vmatpush1.bf16.msra.mxu0 %v1192
          %1300 = vmatprep.subr.bf16.mxu0 0
          %1301 = vmatpush1.bf16.msra.mxu0 %v1193
          %1302 = vmatprep.subr.bf16.mxu0 0
          %1303 = vmatpush1.bf16.msra.mxu0 %v1194
          %1304 = vmatprep.subr.bf16.mxu0 0
          %1305 = vmatpush1.bf16.msra.mxu0 %v1195
          %1306 = vmatprep.subr.bf16.mxu0 0
          %1307 = vmatpush1.bf16.msra.mxu0 %v1196
          %1308 = vmatprep.subr.bf16.mxu0 0
          %1309 = vmatpush1.bf16.msra.mxu0 %v1197
          %1310 = vmatprep.mubr.bf16.mxu0 %v978
          %1311 = vmatmul.mubr.bf16.gmra.mrb[0].mxu0 %v977
          %v1312 = vpop.f32.mrb[0].mxu0
          %v1313 = vadd.f32 %v988, %v1312
          %v1314 = vpop.f32.mrb[0].mxu0
          %v1315 = vpop.f32.mrb[0].mxu0
          %v1316 = vpop.f32.mrb[0].mxu0
          %1317 = vdwg.mxu0
          %1318 = vmatprep.subr.bf16.mxu0 0
          %1319 = vmatpush1.bf16.msra.mxu0 %v1198
          %1320 = vmatprep.subr.bf16.mxu0 0
          %1321 = vmatpush1.bf16.msra.mxu0 %v1199
          %1322 = vmatprep.subr.bf16.mxu0 0
          %1323 = vmatpush1.bf16.msra.mxu0 %v1200
          %1324 = vmatprep.subr.bf16.mxu0 0
          %1325 = vmatpush1.bf16.msra.mxu0 %v1201
          %1326 = vmatprep.subr.bf16.mxu0 0
          %1327 = vmatpush1.bf16.msra.mxu0 %v1202
          %1328 = vmatprep.subr.bf16.mxu0 0
          %1329 = vmatpush1.bf16.msra.mxu0 %v1203
          %1330 = vmatprep.subr.bf16.mxu0 0
          %1331 = vmatpush1.bf16.msra.mxu0 %v1204
          %1332 = vmatprep.subr.bf16.mxu0 0
          %1333 = vmatpush1.bf16.msra.mxu0 %v1205
          %1334 = vmatprep.subr.bf16.mxu0 0
          %1335 = vmatpush1.bf16.msra.mxu0 %v1206
          %1336 = vmatprep.subr.bf16.mxu0 0
          %1337 = vmatpush1.bf16.msra.mxu0 %v1207
          %1338 = vmatprep.subr.bf16.mxu0 0
          %1339 = vmatpush1.bf16.msra.mxu0 %v1208
          %1340 = vmatprep.subr.bf16.mxu0 0
          %1341 = vmatpush1.bf16.msra.mxu0 %v1209
          %1342 = vmatprep.subr.bf16.mxu0 0
          %1343 = vmatpush1.bf16.msra.mxu0 %v1210
          %1344 = vmatprep.subr.bf16.mxu0 0
          %1345 = vmatpush1.bf16.msra.mxu0 %v1211
          %1346 = vmatprep.subr.bf16.mxu0 0
          %1347 = vmatpush1.bf16.msra.mxu0 %v1212
          %1348 = vmatprep.subr.bf16.mxu0 0
          %1349 = vmatpush1.bf16.msra.mxu0 %v1213
          %1350 = vmatprep.mubr.bf16.mxu0 %v980
          %1351 = vmatmul.mubr.bf16.gmra.mrb[0].mxu0 %v979
          %v1352 = vpop.f32.mrb[0].mxu0
          %v1353 = vadd.f32 %v1313, %v1352
          %v1354 = vpop.f32.mrb[0].mxu0
          %v1355 = vpop.f32.mrb[0].mxu0
          %v1356 = vpop.f32.mrb[0].mxu0
          %1357 = vdwg.mxu0
          %1358 = vmatprep.subr.bf16.mxu0 0
          %1359 = vmatpush1.bf16.msra.mxu0 %v1214
          %1360 = vmatprep.subr.bf16.mxu0 0
          %1361 = vmatpush1.bf16.msra.mxu0 %v1215
          %1362 = vmatprep.subr.bf16.mxu0 0
          %1363 = vmatpush1.bf16.msra.mxu0 %v1216
          %1364 = vmatprep.subr.bf16.mxu0 0
          %1365 = vmatpush1.bf16.msra.mxu0 %v1217
          %1366 = vmatprep.subr.bf16.mxu0 0
          %1367 = vmatpush1.bf16.msra.mxu0 %v1218
          %1368 = vmatprep.subr.bf16.mxu0 0
          %1369 = vmatpush1.bf16.msra.mxu0 %v1219
          %1370 = vmatprep.subr.bf16.mxu0 0
          %1371 = vmatpush1.bf16.msra.mxu0 %v1220
          %1372 = vmatprep.subr.bf16.mxu0 0
          %1373 = vmatpush1.bf16.msra.mxu0 %v1221
          %1374 = vmatprep.subr.bf16.mxu0 0
          %1375 = vmatpush1.bf16.msra.mxu0 %v1222
          %1376 = vmatprep.subr.bf16.mxu0 0
          %1377 = vmatpush1.bf16.msra.mxu0 %v1223
          %1378 = vmatprep.subr.bf16.mxu0 0
          %1379 = vmatpush1.bf16.msra.mxu0 %v1224
          %1380 = vmatprep.subr.bf16.mxu0 0
          %1381 = vmatpush1.bf16.msra.mxu0 %v1225
          %1382 = vmatprep.subr.bf16.mxu0 0
          %1383 = vmatpush1.bf16.msra.mxu0 %v1226
          %1384 = vmatprep.subr.bf16.mxu0 0
          %1385 = vmatpush1.bf16.msra.mxu0 %v1227
          %1386 = vmatprep.subr.bf16.mxu0 0
          %1387 = vmatpush1.bf16.msra.mxu0 %v1228
          %1388 = vmatprep.subr.bf16.mxu0 0
          %1389 = vmatpush1.bf16.msra.mxu0 %v1229
          %1390 = vmatprep.mubr.bf16.mxu0 %v982
          %1391 = vmatmul.mubr.bf16.gmra.mrb[0].mxu0 %v981
          %v1392 = vpop.f32.mrb[0].mxu0
          %v1393 = vadd.f32 %v1353, %v1392
          %v1394 = vpop.f32.mrb[0].mxu0
          %v1395 = vpop.f32.mrb[0].mxu0
          %v1396 = vpop.f32.mrb[0].mxu0
          %1397 = vdwg.mxu0
          %v1398 = vld [vmem:[%s4] sm:$0xff]
          %v1399 = vld [vmem:[%s3] sm:$0x1]
          %v1400 = vadd.f32 %v1399, %v1398
          %1401 = vst [vmem:[#allocation2] sm:$0x1] %v1400
          %v1403 = vrot.slane %v1398, 1
          %v1405 = vadd.f32 %v1393, %v1403
          %1406 = vst [vmem:[#allocation2 + $0x1] sm:$0xf] %v1405
          %1407 = vst [vmem:[#allocation2 + $0x5] sm:$0x7] 0.0
        $region108: #{vit_forward.1} parent=103 // pred_fallthru
          _
        %v1408 = vld [vmem:[#allocation2] sm:$0xff]
        %v1409 = vlaneseq
        %v1410 = vand.u32 %v1409, 127
        %vm1411 = vcmp.lt.s32.totalorder %v1410, 5
        %v1412 = vsel %vm1411, 0.0, -1e+30
        %v1413 = vld [vmem:[%s820] sm:$0x1]
        %v1414 = vld [vmem:[%s823] sm:$0x1]
        %1415 = vadd.xlane.f32.xlu0 %v1408
        %v1416 = vpop.xlane.xlu0 %1415
        %v1417 = vrcp.pop 128.0
        %v1418 = vmul.f32 %v1416, %v1417
        %v1419 = vsub.f32 %v1408, %v1418
        %v1420 = vmul.f32 %v1419, %v1419
        %1421 = vadd.xlane.f32.xlu0 %v1420
        %v1422 = vpop.xlane.xlu0 %1421
        %v1423 = vmul.f32 %v1422, %v1417
        %v1424 = vadd.f32 %v1423, 1e-12
        %v1425 = vrsqrt.pop %v1424
        %v1426 = vmul.f32 %v1419, %v1425
        %v1428 = vlaneseq
        %v1429 = vshrl.u32 %v1428, 7
        %v1430 = vsub.s32 0, %v1429
        %v1431 = vrot.slane %v1413, %v1430
        %v1433 = vmul.f32 %v1426, %v1431
        %v1435 = vlaneseq
        %v1436 = vshrl.u32 %v1435, 7
        %v1437 = vsub.s32 0, %v1436
        %v1438 = vrot.slane %v1414, %v1437
        %v1440 = vadd.f32 %v1433, %v1438
        %v1441 = vld [vmem:[%s828] sm:$0xff]
        %v1442 = vld [vmem:[%s828 + $0x8] sm:$0xf]
        %v1443 = vld [vmem:[%s828 + $0xc] sm:$0xff]
        %v1444 = vld [vmem:[%s828 + $0x14] sm:$0xf]
        %v1445 = vld [vmem:[%s828 + $0x18] sm:$0xff]
        %v1446 = vld [vmem:[%s828 + $0x20] sm:$0xf]
        %v1447 = vld [vmem:[%s828 + $0x24] sm:$0xff]
        %v1448 = vld [vmem:[%s828 + $0x2c] sm:$0xf]
        %v1449 = vld [vmem:[%s828 + $0x30] sm:$0xff]
        %v1450 = vld [vmem:[%s828 + $0x38] sm:$0xf]
        %v1451 = vld [vmem:[%s828 + $0x3c] sm:$0xff]
        %v1452 = vld [vmem:[%s828 + $0x44] sm:$0xf]
        %v1453 = vld [vmem:[%s828 + $0x48] sm:$0xff]
        %v1454 = vld [vmem:[%s828 + $0x50] sm:$0xf]
        %v1455 = vld [vmem:[%s828 + $0x54] sm:$0xff]
        %v1456 = vld [vmem:[%s828 + $0x5c] sm:$0xf]
        %v1457 = vld [vmem:[%s828 + $0x60] sm:$0xff]
        %v1458 = vld [vmem:[%s828 + $0x68] sm:$0xf]
        %v1459 = vld [vmem:[%s828 + $0x6c] sm:$0xff]
        %v1460 = vld [vmem:[%s828 + $0x74] sm:$0xf]
        %v1461 = vld [vmem:[%s828 + $0x78] sm:$0xff]
        %v1462 = vld [vmem:[%s828 + $0x80] sm:$0xf]
        %v1463 = vld [vmem:[%s828 + $0x84] sm:$0xff]
        %v1464 = vld [vmem:[%s828 + $0x8c] sm:$0xf]
        %v1465 = vld [vmem:[%s828 + $0x90] sm:$0xff]
        %v1466 = vld [vmem:[%s828 + $0x98] sm:$0xf]
        %v1467 = vld [vmem:[%s828 + $0x9c] sm:$0xff]
        %v1468 = vld [vmem:[%s828 + $0xa4] sm:$0xf]
        %v1469 = vld [vmem:[%s828 + $0xa8] sm:$0xff]
        %v1470 = vld [vmem:[%s828 + $0xb0] sm:$0xf]
        %v1471 = vld [vmem:[%s828 + $0xb4] sm:$0xff]
        %v1472 = vld [vmem:[%s828 + $0xbc] sm:$0xf]
        %v1473 = vpack.c.bf16 %v1440, %v1440
        %v1474 = vld [vmem:[%s832] sm:$0x7]
        %v1476 = vlaneseq
        %v1477 = vshrl.u32 %v1476, 7
        %v1478 = vsub.s32 0, %v1477
        %v1479 = vrot.slane %v1474, %v1478
        %v1480 = vlaneseq
        %v1481 = vshrl.u32 %v1480, 7
        %v1482 = vsub.s32 1, %v1481
        %v1483 = vrot.slane %v1474, %v1482
        %v1484 = vlaneseq
        %v1485 = vshrl.u32 %v1484, 7
        %v1486 = vsub.s32 2, %v1485
        %v1487 = vrot.slane %v1474, %v1486
        %v1523 = vunpack.c.l.b16 %v1441
        %v1524 = vunpack.c.h.b16 %v1441
        %v1525 = vunpack.c.l.b16 %v1442
        %v1526 = vunpack.c.l.b16 %v1443
        %v1527 = vunpack.c.h.b16 %v1443
        %v1528 = vunpack.c.l.b16 %v1444
        %v1529 = vunpack.c.l.b16 %v1445
        %v1530 = vunpack.c.h.b16 %v1445
        %v1531 = vunpack.c.l.b16 %v1446
        %v1532 = vunpack.c.l.b16 %v1447
        %v1533 = vunpack.c.h.b16 %v1447
        %v1534 = vunpack.c.l.b16 %v1448
        %v1535 = vunpack.c.l.b16 %v1449
        %v1536 = vunpack.c.h.b16 %v1449
        %v1537 = vunpack.c.l.b16 %v1450
        %v1538 = vunpack.c.l.b16 %v1451
        %v1539 = vunpack.c.h.b16 %v1451
        %v1540 = vunpack.c.l.b16 %v1452
        %v1541 = vunpack.c.l.b16 %v1453
        %v1542 = vunpack.c.h.b16 %v1453
        %v1543 = vunpack.c.l.b16 %v1454
        %v1544 = vunpack.c.l.b16 %v1455
        %v1545 = vunpack.c.h.b16 %v1455
        %v1546 = vunpack.c.l.b16 %v1456
        %v1547 = vunpack.c.l.b16 %v1457
        %v1548 = vunpack.c.h.b16 %v1457
        %v1549 = vunpack.c.l.b16 %v1458
        %v1550 = vunpack.c.l.b16 %v1459
        %v1551 = vunpack.c.h.b16 %v1459
        %v1552 = vunpack.c.l.b16 %v1460
        %v1553 = vunpack.c.l.b16 %v1461
        %v1554 = vunpack.c.h.b16 %v1461
        %v1555 = vunpack.c.l.b16 %v1462
        %v1556 = vunpack.c.l.b16 %v1463
        %v1557 = vunpack.c.h.b16 %v1463
        %v1558 = vunpack.c.l.b16 %v1464
        %v1559 = vunpack.c.l.b16 %v1465
        %v1560 = vunpack.c.h.b16 %v1465
        %v1561 = vunpack.c.l.b16 %v1466
        %v1562 = vunpack.c.l.b16 %v1467
        %v1563 = vunpack.c.h.b16 %v1467
        %v1564 = vunpack.c.l.b16 %v1468
        %v1565 = vunpack.c.l.b16 %v1469
        %v1566 = vunpack.c.h.b16 %v1469
        %v1567 = vunpack.c.l.b16 %v1470
        %v1568 = vunpack.c.l.b16 %v1471
        %v1569 = vunpack.c.h.b16 %v1471
        %v1570 = vunpack.c.l.b16 %v1472
        %v1571 = vpack.c.b16 %v1526, %v1523
        %v1572 = vpack.c.b16 %v1527, %v1524
        %v1573 = vpack.c.b16 %v1528, %v1525
        %v1574 = vpack.c.b16 %v1532, %v1529
        %v1575 = vpack.c.b16 %v1533, %v1530
        %v1576 = vpack.c.b16 %v1534, %v1531
        %v1577 = vpack.c.b16 %v1538, %v1535
        %v1578 = vpack.c.b16 %v1539, %v1536
        %v1579 = vpack.c.b16 %v1540, %v1537
        %v1580 = vpack.c.b16 %v1544, %v1541
        %v1581 = vpack.c.b16 %v1545, %v1542
        %v1582 = vpack.c.b16 %v1546, %v1543
        %v1583 = vpack.c.b16 %v1550, %v1547
        %v1584 = vpack.c.b16 %v1551, %v1548
        %v1585 = vpack.c.b16 %v1552, %v1549
        %v1586 = vpack.c.b16 %v1556, %v1553
        %v1587 = vpack.c.b16 %v1557, %v1554
        %v1588 = vpack.c.b16 %v1558, %v1555
        %v1589 = vpack.c.b16 %v1562, %v1559
        %v1590 = vpack.c.b16 %v1563, %v1560
        %v1591 = vpack.c.b16 %v1564, %v1561
        %v1592 = vpack.c.b16 %v1568, %v1565
        %v1593 = vpack.c.b16 %v1569, %v1566
        %v1594 = vpack.c.b16 %v1570, %v1567
        %1619 = vmatprep.subr.bf16.mxu0 %v1572
        %1620 = vmatpush1.bf16.msra.mxu0 %v1571
        %1621 = vmatprep.subr.bf16.mxu0 %v1575
        %1622 = vmatpush1.bf16.msra.mxu0 %v1574
        %1623 = vmatprep.subr.bf16.mxu0 %v1578
        %1624 = vmatpush1.bf16.msra.mxu0 %v1577
        %1625 = vmatprep.subr.bf16.mxu0 %v1581
        %1626 = vmatpush1.bf16.msra.mxu0 %v1580
        %1627 = vmatprep.subr.bf16.mxu0 %v1584
        %1628 = vmatpush1.bf16.msra.mxu0 %v1583
        %1629 = vmatprep.subr.bf16.mxu0 %v1587
        %1630 = vmatpush1.bf16.msra.mxu0 %v1586
        %1631 = vmatprep.subr.bf16.mxu0 %v1590
        %1632 = vmatpush1.bf16.msra.mxu0 %v1589
        %1633 = vmatprep.subr.bf16.mxu0 %v1593
        %1634 = vmatpush1.bf16.msra.mxu0 %v1592
        %1635 = vmatprep.subr.bf16.mxu0 0
        %1636 = vmatpush1.bf16.msra.mxu0 0
        %1637 = vmatprep.subr.bf16.mxu0 0
        %1638 = vmatpush1.bf16.msra.mxu0 0
        %1639 = vmatprep.subr.bf16.mxu0 0
        %1640 = vmatpush1.bf16.msra.mxu0 0
        %1641 = vmatprep.subr.bf16.mxu0 0
        %1642 = vmatpush1.bf16.msra.mxu0 0
        %1643 = vmatprep.subr.bf16.mxu0 0
        %1644 = vmatpush1.bf16.msra.mxu0 0
        %1645 = vmatprep.subr.bf16.mxu0 0
        %1646 = vmatpush1.bf16.msra.mxu0 0
        %1647 = vmatprep.subr.bf16.mxu0 0
        %1648 = vmatpush1.bf16.msra.mxu0 0
        %1649 = vmatprep.subr.bf16.mxu0 0
        %1650 = vmatpush1.bf16.msra.mxu0 0
        %1651 = vmatprep.mubr.bf16.mxu0 0
        %1652 = vmatmul.mubr.bf16.gmra.mrb[0].mxu0 %v1473
        %v1653 = vpop.f32.mrb[0].mxu0
        %v1654 = vadd.f32 %v1479, %v1653
        %v1655 = vpop.f32.mrb[0].mxu0
        %v1656 = vadd.f32 %v1483, %v1655
        %v1657 = vpop.f32.mrb[0].mxu0
        %v1658 = vpop.f32.mrb[0].mxu0
        %1659 = vdwg.mxu0
        %1660 = vmatprep.subr.bf16.mxu0 0
        %1661 = vmatpush1.bf16.msra.mxu0 %v1573
        %1662 = vmatprep.subr.bf16.mxu0 0
        %1663 = vmatpush1.bf16.msra.mxu0 %v1576
        %1664 = vmatprep.subr.bf16.mxu0 0
        %1665 = vmatpush1.bf16.msra.mxu0 %v1579
        %1666 = vmatprep.subr.bf16.mxu0 0
        %1667 = vmatpush1.bf16.msra.mxu0 %v1582
        %1668 = vmatprep.subr.bf16.mxu0 0
        %1669 = vmatpush1.bf16.msra.mxu0 %v1585
        %1670 = vmatprep.subr.bf16.mxu0 0
        %1671 = vmatpush1.bf16.msra.mxu0 %v1588
        %1672 = vmatprep.subr.bf16.mxu0 0
        %1673 = vmatpush1.bf16.msra.mxu0 %v1591
        %1674 = vmatprep.subr.bf16.mxu0 0
        %1675 = vmatpush1.bf16.msra.mxu0 %v1594
        %1676 = vmatprep.subr.bf16.mxu0 0
        %1677 = vmatpush1.bf16.msra.mxu0 0
        %1678 = vmatprep.subr.bf16.mxu0 0
        %1679 = vmatpush1.bf16.msra.mxu0 0
        %1680 = vmatprep.subr.bf16.mxu0 0
        %1681 = vmatpush1.bf16.msra.mxu0 0
        %1682 = vmatprep.subr.bf16.mxu0 0
        %1683 = vmatpush1.bf16.msra.mxu0 0
        %1684 = vmatprep.subr.bf16.mxu0 0
        %1685 = vmatpush1.bf16.msra.mxu0 0
        %1686 = vmatprep.subr.bf16.mxu0 0
        %1687 = vmatpush1.bf16.msra.mxu0 0
        %1688 = vmatprep.subr.bf16.mxu0 0
        %1689 = vmatpush1.bf16.msra.mxu0 0
        %1690 = vmatprep.subr.bf16.mxu0 0
        %1691 = vmatpush1.bf16.msra.mxu0 0
        %1692 = vmatprep.mubr.bf16.mxu0 0
        %1693 = vmatmul.mubr.bf16.gmra.mrb[0].mxu0 %v1473
        %v1694 = vpop.f32.mrb[0].mxu0
        %v1695 = vadd.f32 %v1487, %v1694
        %v1696 = vpop.f32.mrb[0].mxu0
        %v1697 = vpop.f32.mrb[0].mxu0
        %v1698 = vpop.f32.mrb[0].mxu0
        %1699 = vdwg.mxu0
        %v1700 = vpack.c.bf16 %v1654, %v1654
        %v1701 = vpack.c.bf16 %v1656, %v1656
        %vm1702 = vcmask 261120
        %v1704 = vsel %vm1702, %v1700, 0
        %v1707 = vsel %vm1702, %v1701, 0
        %1709 = vmatprep.subr.bf16.mxu0 0
        %1710 = vmatpush1.bf16.xpose.msra.mxu0 %v1707
        %1711 = vmatprep.subr.bf16.mxu0 0
        %1712 = vmatpush1.bf16.xpose.msra.mxu0 0
        %1713 = vmatprep.subr.bf16.mxu0 0
        %1714 = vmatpush1.bf16.xpose.msra.mxu0 0
        %1715 = vmatprep.subr.bf16.mxu0 0
        %1716 = vmatpush1.bf16.xpose.msra.mxu0 0
        %1717 = vmatprep.subr.bf16.mxu0 0
        %1718 = vmatpush1.bf16.xpose.msra.mxu0 0
        %1719 = vmatprep.subr.bf16.mxu0 0
        %1720 = vmatpush1.bf16.xpose.msra.mxu0 0
        %1721 = vmatprep.subr.bf16.mxu0 0
        %1722 = vmatpush1.bf16.xpose.msra.mxu0 0
        %1723 = vmatprep.subr.bf16.mxu0 0
        %1724 = vmatpush1.bf16.xpose.msra.mxu0 0
        %1725 = vmatprep.subr.bf16.mxu0 0
        %1726 = vmatpush1.bf16.xpose.msra.mxu0 0
        %1727 = vmatprep.subr.bf16.mxu0 0
        %1728 = vmatpush1.bf16.xpose.msra.mxu0 0
        %1729 = vmatprep.subr.bf16.mxu0 0
        %1730 = vmatpush1.bf16.xpose.msra.mxu0 0
        %1731 = vmatprep.subr.bf16.mxu0 0
        %1732 = vmatpush1.bf16.xpose.msra.mxu0 0
        %1733 = vmatprep.subr.bf16.mxu0 0
        %1734 = vmatpush1.bf16.xpose.msra.mxu0 0
        %1735 = vmatprep.subr.bf16.mxu0 0
        %1736 = vmatpush1.bf16.xpose.msra.mxu0 0
        %1737 = vmatprep.subr.bf16.mxu0 0
        %1738 = vmatpush1.bf16.xpose.msra.mxu0 0
        %1739 = vmatprep.subr.bf16.mxu0 0
        %1740 = vmatpush1.bf16.xpose.msra.mxu0 0
        %1741 = vmatprep.mubr.bf16.mxu0 0
        %1742 = vmatmul.mubr.bf16.gmra.mrb[0].mxu0 %v1704
        %v1743 = vpop.f32.mrb[0].mxu0
        %v1744 = vadd.f32 0.0, %v1743
        %v1745 = vpop.f32.mrb[0].mxu0
        %v1746 = vpop.f32.mrb[0].mxu0
        %v1747 = vpop.f32.mrb[0].mxu0
        %1748 = vdwg.mxu0
        %v1749 = vmul.f32 %v1744, 0.17677669
        %v1750 = vadd.f32 %v1749, %v1412
        %vm1751 = vcmask 64512
        %v1752 = vsel %vm1751, %v1750, -inf
        %1753 = vmax.xlane.f32.xlu0 %v1752
        %v1754 = vpop.xlane.xlu0 %1753
        %v1755 = vsub.f32 %v1750, %v1754
        %v1756 = vmul.f32 %v1755, 1.442695
        %v1757 = vpow.pop %v1756
        %v1758 = vsel %vm1751, %v1757, 0.0
        %1759 = vadd.xlane.f32.xlu0 %v1758
        %v1760 = vpop.xlane.xlu0 %1759
        %v1761 = vrcp.pop %v1760
        %v1762 = vmul.f32 %v1757, %v1761
        %v1763 = vpack.c.bf16 %v1762, %v1762
        %v1764 = vpack.c.bf16 %v1695, %v1695
        %v1766 = vsel %vm1751, %v1763, 0
        %vm1768 = vcmask 1043456
        %v1770 = vsel %vm1768, %v1764, 0
        %1772 = vmatprep.subr.bf16.mxu0 0
        %1773 = vmatpush1.bf16.msra.mxu0 %v1770
        %1774 = vmatprep.subr.bf16.mxu0 0
        %1775 = vmatpush1.bf16.msra.mxu0 0
        %1776 = vmatprep.subr.bf16.mxu0 0
        %1777 = vmatpush1.bf16.msra.mxu0 0
        %1778 = vmatprep.subr.bf16.mxu0 0
        %1779 = vmatpush1.bf16.msra.mxu0 0
        %1780 = vmatprep.subr.bf16.mxu0 0
        %1781 = vmatpush1.bf16.msra.mxu0 0
        %1782 = vmatprep.subr.bf16.mxu0 0
        %1783 = vmatpush1.bf16.msra.mxu0 0
        %1784 = vmatprep.subr.bf16.mxu0 0
        %1785 = vmatpush1.bf16.msra.mxu0 0
        %1786 = vmatprep.subr.bf16.mxu0 0
        %1787 = vmatpush1.bf16.msra.mxu0 0
        %1788 = vmatprep.subr.bf16.mxu0 0
        %1789 = vmatpush1.bf16.msra.mxu0 0
        %1790 = vmatprep.subr.bf16.mxu0 0
        %1791 = vmatpush1.bf16.msra.mxu0 0
        %1792 = vmatprep.subr.bf16.mxu0 0
        %1793 = vmatpush1.bf16.msra.mxu0 0
        %1794 = vmatprep.subr.bf16.mxu0 0
        %1795 = vmatpush1.bf16.msra.mxu0 0
        %1796 = vmatprep.subr.bf16.mxu0 0
        %1797 = vmatpush1.bf16.msra.mxu0 0
        %1798 = vmatprep.subr.bf16.mxu0 0
        %1799 = vmatpush1.bf16.msra.mxu0 0
        %1800 = vmatprep.subr.bf16.mxu0 0
        %1801 = vmatpush1.bf16.msra.mxu0 0
        %1802 = vmatprep.subr.bf16.mxu0 0
        %1803 = vmatpush1.bf16.msra.mxu0 0
        %1804 = vmatprep.mubr.bf16.mxu0 0
        %1805 = vmatmul.mubr.bf16.gmra.mrb[0].mxu0 %v1766
        %v1806 = vpop.f32.mrb[0].mxu0
        %v1807 = vadd.f32 0.0, %v1806
        %v1808 = vpop.f32.mrb[0].mxu0
        %v1809 = vpop.f32.mrb[0].mxu0
        %v1810 = vpop.f32.mrb[0].mxu0
        %1811 = vdwg.mxu0
        %1813 = vrot.lane.b32.xlu0 %v1700, 96
        %v1814 = vpop.permute.xlu0 %1813
        %1816 = vrot.lane.b32.xlu0 %v1701, 96
        %v1817 = vpop.permute.xlu0 %1816
        %v1819 = vsel %vm1702, %v1814, 0
        %v1822 = vsel %vm1702, %v1817, 0
        %1824 = vmatprep.subr.bf16.mxu0 0
        %1825 = vmatpush1.bf16.xpose.msra.mxu0 %v1822
        %1826 = vmatprep.subr.bf16.mxu0 0
        %1827 = vmatpush1.bf16.xpose.msra.mxu0 0
        %1828 = vmatprep.subr.bf16.mxu0 0
        %1829 = vmatpush1.bf16.xpose.msra.mxu0 0
        %1830 = vmatprep.subr.bf16.mxu0 0
        %1831 = vmatpush1.bf16.xpose.msra.mxu0 0
        %1832 = vmatprep.subr.bf16.mxu0 0
        %1833 = vmatpush1.bf16.xpose.msra.mxu0 0
        %1834 = vmatprep.subr.bf16.mxu0 0
        %1835 = vmatpush1.bf16.xpose.msra.mxu0 0
        %1836 = vmatprep.subr.bf16.mxu0 0
        %1837 = vmatpush1.bf16.xpose.msra.mxu0 0
        %1838 = vmatprep.subr.bf16.mxu0 0
        %1839 = vmatpush1.bf16.xpose.msra.mxu0 0
        %1840 = vmatprep.subr.bf16.mxu0 0
        %1841 = vmatpush1.bf16.xpose.msra.mxu0 0
        %1842 = vmatprep.subr.bf16.mxu0 0
        %1843 = vmatpush1.bf16.xpose.msra.mxu0 0
        %1844 = vmatprep.subr.bf16.mxu0 0
        %1845 = vmatpush1.bf16.xpose.msra.mxu0 0
        %1846 = vmatprep.subr.bf16.mxu0 0
        %1847 = vmatpush1.bf16.xpose.msra.mxu0 0
        %1848 = vmatprep.subr.bf16.mxu0 0
        %1849 = vmatpush1.bf16.xpose.msra.mxu0 0
        %1850 = vmatprep.subr.bf16.mxu0 0
        %1851 = vmatpush1.bf16.xpose.msra.mxu0 0
        %1852 = vmatprep.subr.bf16.mxu0 0
        %1853 = vmatpush1.bf16.xpose.msra.mxu0 0
        %1854 = vmatprep.subr.bf16.mxu0 0
        %1855 = vmatpush1.bf16.xpose.msra.mxu0 0
        %1856 = vmatprep.mubr.bf16.mxu0 0
        %1857 = vmatmul.mubr.bf16.gmra.mrb[0].mxu0 %v1819
        %v1858 = vpop.f32.mrb[0].mxu0
        %v1859 = vadd.f32 0.0, %v1858
        %v1860 = vpop.f32.mrb[0].mxu0
        %v1861 = vpop.f32.mrb[0].mxu0
        %v1862 = vpop.f32.mrb[0].mxu0
        %1863 = vdwg.mxu0
        %v1864 = vmul.f32 %v1859, 0.17677669
        %v1865 = vadd.f32 %v1864, %v1412
        %v1866 = vsel %vm1751, %v1865, -inf
        %1867 = vmax.xlane.f32.xlu0 %v1866
        %v1868 = vpop.xlane.xlu0 %1867
        %v1869 = vsub.f32 %v1865, %v1868
        %v1870 = vmul.f32 %v1869, 1.442695
        %v1871 = vpow.pop %v1870
        %v1872 = vsel %vm1751, %v1871, 0.0
        %1873 = vadd.xlane.f32.xlu0 %v1872
        %v1874 = vpop.xlane.xlu0 %1873
        %v1875 = vrcp.pop %v1874
        %v1876 = vmul.f32 %v1871, %v1875
        %v1877 = vpack.c.bf16 %v1876, %v1876
        %1879 = vrot.lane.b32.xlu0 %v1764, 96
        %v1880 = vpop.permute.xlu0 %1879
        %v1882 = vsel %vm1751, %v1877, 0
        %v1885 = vsel %vm1768, %v1880, 0
        %1887 = vmatprep.subr.bf16.mxu0 0
        %1888 = vmatpush1.bf16.msra.mxu0 %v1885
        %1889 = vmatprep.subr.bf16.mxu0 0
        %1890 = vmatpush1.bf16.msra.mxu0 0
        %1891 = vmatprep.subr.bf16.mxu0 0
        %1892 = vmatpush1.bf16.msra.mxu0 0
        %1893 = vmatprep.subr.bf16.mxu0 0
        %1894 = vmatpush1.bf16.msra.mxu0 0
        %1895 = vmatprep.subr.bf16.mxu0 0
        %1896 = vmatpush1.bf16.msra.mxu0 0
        %1897 = vmatprep.subr.bf16.mxu0 0
        %1898 = vmatpush1.bf16.msra.mxu0 0
        %1899 = vmatprep.subr.bf16.mxu0 0
        %1900 = vmatpush1.bf16.msra.mxu0 0
        %1901 = vmatprep.subr.bf16.mxu0 0
        %1902 = vmatpush1.bf16.msra.mxu0 0
        %1903 = vmatprep.subr.bf16.mxu0 0
        %1904 = vmatpush1.bf16.msra.mxu0 0
        %1905 = vmatprep.subr.bf16.mxu0 0
        %1906 = vmatpush1.bf16.msra.mxu0 0
        %1907 = vmatprep.subr.bf16.mxu0 0
        %1908 = vmatpush1.bf16.msra.mxu0 0
        %1909 = vmatprep.subr.bf16.mxu0 0
        %1910 = vmatpush1.bf16.msra.mxu0 0
        %1911 = vmatprep.subr.bf16.mxu0 0
        %1912 = vmatpush1.bf16.msra.mxu0 0
        %1913 = vmatprep.subr.bf16.mxu0 0
        %1914 = vmatpush1.bf16.msra.mxu0 0
        %1915 = vmatprep.subr.bf16.mxu0 0
        %1916 = vmatpush1.bf16.msra.mxu0 0
        %1917 = vmatprep.subr.bf16.mxu0 0
        %1918 = vmatpush1.bf16.msra.mxu0 0
        %1919 = vmatprep.mubr.bf16.mxu0 0
        %1920 = vmatmul.mubr.bf16.gmra.mrb[0].mxu0 %v1882
        %v1921 = vpop.f32.mrb[0].mxu0
        %v1922 = vadd.f32 0.0, %v1921
        %v1923 = vpop.f32.mrb[0].mxu0
        %v1924 = vpop.f32.mrb[0].mxu0
        %v1925 = vpop.f32.mrb[0].mxu0
        %1926 = vdwg.mxu0
        %1927 = vrot.lane.b32.xlu0 %v1700, 64
        %v1928 = vpop.permute.xlu0 %1927
        %1929 = vrot.lane.b32.xlu0 %v1701, 64
        %v1930 = vpop.permute.xlu0 %1929
        %v1932 = vsel %vm1702, %v1928, 0
        %v1935 = vsel %vm1702, %v1930, 0
        %1937 = vmatprep.subr.bf16.mxu0 0
        %1938 = vmatpush1.bf16.xpose.msra.mxu0 %v1935
        %1939 = vmatprep.subr.bf16.mxu0 0
        %1940 = vmatpush1.bf16.xpose.msra.mxu0 0
        %1941 = vmatprep.subr.bf16.mxu0 0
        %1942 = vmatpush1.bf16.xpose.msra.mxu0 0
        %1943 = vmatprep.subr.bf16.mxu0 0
        %1944 = vmatpush1.bf16.xpose.msra.mxu0 0
        %1945 = vmatprep.subr.bf16.mxu0 0
        %1946 = vmatpush1.bf16.xpose.msra.mxu0 0
        %1947 = vmatprep.subr.bf16.mxu0 0
        %1948 = vmatpush1.bf16.xpose.msra.mxu0 0
        %1949 = vmatprep.subr.bf16.mxu0 0
        %1950 = vmatpush1.bf16.xpose.msra.mxu0 0
        %1951 = vmatprep.subr.bf16.mxu0 0
        %1952 = vmatpush1.bf16.xpose.msra.mxu0 0
        %1953 = vmatprep.subr.bf16.mxu0 0
        %1954 = vmatpush1.bf16.xpose.msra.mxu0 0
        %1955 = vmatprep.subr.bf16.mxu0 0
        %1956 = vmatpush1.bf16.xpose.msra.mxu0 0
        %1957 = vmatprep.subr.bf16.mxu0 0
        %1958 = vmatpush1.bf16.xpose.msra.mxu0 0
        %1959 = vmatprep.subr.bf16.mxu0 0
        %1960 = vmatpush1.bf16.xpose.msra.mxu0 0
        %1961 = vmatprep.subr.bf16.mxu0 0
        %1962 = vmatpush1.bf16.xpose.msra.mxu0 0
        %1963 = vmatprep.subr.bf16.mxu0 0
        %1964 = vmatpush1.bf16.xpose.msra.mxu0 0
        %1965 = vmatprep.subr.bf16.mxu0 0
        %1966 = vmatpush1.bf16.xpose.msra.mxu0 0
        %1967 = vmatprep.subr.bf16.mxu0 0
        %1968 = vmatpush1.bf16.xpose.msra.mxu0 0
        %1969 = vmatprep.mubr.bf16.mxu0 0
        %1970 = vmatmul.mubr.bf16.gmra.mrb[0].mxu0 %v1932
        %v1971 = vpop.f32.mrb[0].mxu0
        %v1972 = vadd.f32 0.0, %v1971
        %v1973 = vpop.f32.mrb[0].mxu0
        %v1974 = vpop.f32.mrb[0].mxu0
        %v1975 = vpop.f32.mrb[0].mxu0
        %1976 = vdwg.mxu0
        %v1977 = vmul.f32 %v1972, 0.17677669
        %v1978 = vadd.f32 %v1977, %v1412
        %v1979 = vsel %vm1751, %v1978, -inf
        %1980 = vmax.xlane.f32.xlu0 %v1979
        %v1981 = vpop.xlane.xlu0 %1980
        %v1982 = vsub.f32 %v1978, %v1981
        %v1983 = vmul.f32 %v1982, 1.442695
        %v1984 = vpow.pop %v1983
        %v1985 = vsel %vm1751, %v1984, 0.0
        %1986 = vadd.xlane.f32.xlu0 %v1985
        %v1987 = vpop.xlane.xlu0 %1986
        %v1988 = vrcp.pop %v1987
        %v1989 = vmul.f32 %v1984, %v1988
        %v1990 = vpack.c.bf16 %v1989, %v1989
        %1991 = vrot.lane.b32.xlu0 %v1764, 64
        %v1992 = vpop.permute.xlu0 %1991
        %v1994 = vsel %vm1751, %v1990, 0
        %v1997 = vsel %vm1768, %v1992, 0
        %1999 = vmatprep.subr.bf16.mxu0 0
        %2000 = vmatpush1.bf16.msra.mxu0 %v1997
        %2001 = vmatprep.subr.bf16.mxu0 0
        %2002 = vmatpush1.bf16.msra.mxu0 0
        %2003 = vmatprep.subr.bf16.mxu0 0
        %2004 = vmatpush1.bf16.msra.mxu0 0
        %2005 = vmatprep.subr.bf16.mxu0 0
        %2006 = vmatpush1.bf16.msra.mxu0 0
        %2007 = vmatprep.subr.bf16.mxu0 0
        %2008 = vmatpush1.bf16.msra.mxu0 0
        %2009 = vmatprep.subr.bf16.mxu0 0
        %2010 = vmatpush1.bf16.msra.mxu0 0
        %2011 = vmatprep.subr.bf16.mxu0 0
        %2012 = vmatpush1.bf16.msra.mxu0 0
        %2013 = vmatprep.subr.bf16.mxu0 0
        %2014 = vmatpush1.bf16.msra.mxu0 0
        %2015 = vmatprep.subr.bf16.mxu0 0
        %2016 = vmatpush1.bf16.msra.mxu0 0
        %2017 = vmatprep.subr.bf16.mxu0 0
        %2018 = vmatpush1.bf16.msra.mxu0 0
        %2019 = vmatprep.subr.bf16.mxu0 0
        %2020 = vmatpush1.bf16.msra.mxu0 0
        %2021 = vmatprep.subr.bf16.mxu0 0
        %2022 = vmatpush1.bf16.msra.mxu0 0
        %2023 = vmatprep.subr.bf16.mxu0 0
        %2024 = vmatpush1.bf16.msra.mxu0 0
        %2025 = vmatprep.subr.bf16.mxu0 0
        %2026 = vmatpush1.bf16.msra.mxu0 0
        %2027 = vmatprep.subr.bf16.mxu0 0
        %2028 = vmatpush1.bf16.msra.mxu0 0
        %2029 = vmatprep.subr.bf16.mxu0 0
        %2030 = vmatpush1.bf16.msra.mxu0 0
        %2031 = vmatprep.mubr.bf16.mxu0 0
        %2032 = vmatmul.mubr.bf16.gmra.mrb[0].mxu0 %v1994
        %v2033 = vpop.f32.mrb[0].mxu0
        %v2034 = vadd.f32 0.0, %v2033
        %v2035 = vpop.f32.mrb[0].mxu0
        %v2036 = vpop.f32.mrb[0].mxu0
        %v2037 = vpop.f32.mrb[0].mxu0
        %2038 = vdwg.mxu0
        %2039 = vrot.lane.b32.xlu0 %v1700, 32
        %v2040 = vpop.permute.xlu0 %2039
        %2041 = vrot.lane.b32.xlu0 %v1701, 32
        %v2042 = vpop.permute.xlu0 %2041
        %v2044 = vsel %vm1702, %v2040, 0
        %v2047 = vsel %vm1702, %v2042, 0
        %2049 = vmatprep.subr.bf16.mxu0 0
        %2050 = vmatpush1.bf16.xpose.msra.mxu0 %v2047
        %2051 = vmatprep.subr.bf16.mxu0 0
        %2052 = vmatpush1.bf16.xpose.msra.mxu0 0
        %2053 = vmatprep.subr.bf16.mxu0 0
        %2054 = vmatpush1.bf16.xpose.msra.mxu0 0
        %2055 = vmatprep.subr.bf16.mxu0 0
        %2056 = vmatpush1.bf16.xpose.msra.mxu0 0
        %2057 = vmatprep.subr.bf16.mxu0 0
        %2058 = vmatpush1.bf16.xpose.msra.mxu0 0
        %2059 = vmatprep.subr.bf16.mxu0 0
        %2060 = vmatpush1.bf16.xpose.msra.mxu0 0
        %2061 = vmatprep.subr.bf16.mxu0 0
        %2062 = vmatpush1.bf16.xpose.msra.mxu0 0
        %2063 = vmatprep.subr.bf16.mxu0 0
        %2064 = vmatpush1.bf16.xpose.msra.mxu0 0
        %2065 = vmatprep.subr.bf16.mxu0 0
        %2066 = vmatpush1.bf16.xpose.msra.mxu0 0
        %2067 = vmatprep.subr.bf16.mxu0 0
        %2068 = vmatpush1.bf16.xpose.msra.mxu0 0
        %2069 = vmatprep.subr.bf16.mxu0 0
        %2070 = vmatpush1.bf16.xpose.msra.mxu0 0
        %2071 = vmatprep.subr.bf16.mxu0 0
        %2072 = vmatpush1.bf16.xpose.msra.mxu0 0
        %2073 = vmatprep.subr.bf16.mxu0 0
        %2074 = vmatpush1.bf16.xpose.msra.mxu0 0
        %2075 = vmatprep.subr.bf16.mxu0 0
        %2076 = vmatpush1.bf16.xpose.msra.mxu0 0
        %2077 = vmatprep.subr.bf16.mxu0 0
        %2078 = vmatpush1.bf16.xpose.msra.mxu0 0
        %2079 = vmatprep.subr.bf16.mxu0 0
        %2080 = vmatpush1.bf16.xpose.msra.mxu0 0
        %2081 = vmatprep.mubr.bf16.mxu0 0
        %2082 = vmatmul.mubr.bf16.gmra.mrb[0].mxu0 %v2044
        %v2083 = vpop.f32.mrb[0].mxu0
        %v2084 = vadd.f32 0.0, %v2083
        %v2085 = vpop.f32.mrb[0].mxu0
        %v2086 = vpop.f32.mrb[0].mxu0
        %v2087 = vpop.f32.mrb[0].mxu0
        %2088 = vdwg.mxu0
        %v2089 = vmul.f32 %v2084, 0.17677669
        %v2090 = vadd.f32 %v2089, %v1412
        %v2091 = vsel %vm1751, %v2090, -inf
        %2092 = vmax.xlane.f32.xlu0 %v2091
        %v2093 = vpop.xlane.xlu0 %2092
        %v2094 = vsub.f32 %v2090, %v2093
        %v2095 = vmul.f32 %v2094, 1.442695
        %v2096 = vpow.pop %v2095
        %v2097 = vsel %vm1751, %v2096, 0.0
        %2098 = vadd.xlane.f32.xlu0 %v2097
        %v2099 = vpop.xlane.xlu0 %2098
        %v2100 = vrcp.pop %v2099
        %v2101 = vmul.f32 %v2096, %v2100
        %v2102 = vpack.c.bf16 %v2101, %v2101
        %2103 = vrot.lane.b32.xlu0 %v1764, 32
        %v2104 = vpop.permute.xlu0 %2103
        %v2106 = vsel %vm1751, %v2102, 0
        %v2109 = vsel %vm1768, %v2104, 0
        %2111 = vmatprep.subr.bf16.mxu0 0
        %2112 = vmatpush1.bf16.msra.mxu0 %v2109
        %2113 = vmatprep.subr.bf16.mxu0 0
        %2114 = vmatpush1.bf16.msra.mxu0 0
        %2115 = vmatprep.subr.bf16.mxu0 0
        %2116 = vmatpush1.bf16.msra.mxu0 0
        %2117 = vmatprep.subr.bf16.mxu0 0
        %2118 = vmatpush1.bf16.msra.mxu0 0
        %2119 = vmatprep.subr.bf16.mxu0 0
        %2120 = vmatpush1.bf16.msra.mxu0 0
        %2121 = vmatprep.subr.bf16.mxu0 0
        %2122 = vmatpush1.bf16.msra.mxu0 0
        %2123 = vmatprep.subr.bf16.mxu0 0
        %2124 = vmatpush1.bf16.msra.mxu0 0
        %2125 = vmatprep.subr.bf16.mxu0 0
        %2126 = vmatpush1.bf16.msra.mxu0 0
        %2127 = vmatprep.subr.bf16.mxu0 0
        %2128 = vmatpush1.bf16.msra.mxu0 0
        %2129 = vmatprep.subr.bf16.mxu0 0
        %2130 = vmatpush1.bf16.msra.mxu0 0
        %2131 = vmatprep.subr.bf16.mxu0 0
        %2132 = vmatpush1.bf16.msra.mxu0 0
        %2133 = vmatprep.subr.bf16.mxu0 0
        %2134 = vmatpush1.bf16.msra.mxu0 0
        %2135 = vmatprep.subr.bf16.mxu0 0
        %2136 = vmatpush1.bf16.msra.mxu0 0
        %2137 = vmatprep.subr.bf16.mxu0 0
        %2138 = vmatpush1.bf16.msra.mxu0 0
        %2139 = vmatprep.subr.bf16.mxu0 0
        %2140 = vmatpush1.bf16.msra.mxu0 0
        %2141 = vmatprep.subr.bf16.mxu0 0
        %2142 = vmatpush1.bf16.msra.mxu0 0
        %2143 = vmatprep.mubr.bf16.mxu0 0
        %2144 = vmatmul.mubr.bf16.gmra.mrb[0].mxu0 %v2106
        %v2145 = vpop.f32.mrb[0].mxu0
        %v2146 = vadd.f32 0.0, %v2145
        %v2147 = vpop.f32.mrb[0].mxu0
        %v2148 = vpop.f32.mrb[0].mxu0
        %v2149 = vpop.f32.mrb[0].mxu0
        %2150 = vdwg.mxu0
        %2152 = vrot.lane.b32.xlu0 %v1922, 32
        %v2153 = vpop.permute.xlu0 %2152
        %2156 = vrot.lane.b32.xlu0 %v2034, 64
        %v2157 = vpop.permute.xlu0 %2156
        %2160 = vrot.lane.b32.xlu0 %v2146, 96
        %v2161 = vpop.permute.xlu0 %2160
        %v2163 = vsel %vm1702, %v1807, %v2153
        %vm2164 = vcmask 523264
        %v2165 = vsel %vm2164, %v2163, %v2157
        %vm2166 = vcmask 785408
        %v2167 = vsel %vm2166, %v2165, %v2161
        %v2168 = vld [vmem:[%s837] sm:$0xf]
        %v2169 = vld [vmem:[%s837 + $0x4] sm:$0xf]
        %v2170 = vld [vmem:[%s837 + $0x8] sm:$0xf]
        %v2171 = vld [vmem:[%s837 + $0xc] sm:$0xf]
        %v2172 = vld [vmem:[%s837 + $0x10] sm:$0xf]
        %v2173 = vld [vmem:[%s837 + $0x14] sm:$0xf]
        %v2174 = vld [vmem:[%s837 + $0x18] sm:$0xf]
        %v2175 = vld [vmem:[%s837 + $0x1c] sm:$0xf]
        %v2176 = vld [vmem:[%s837 + $0x20] sm:$0xf]
        %v2177 = vld [vmem:[%s837 + $0x24] sm:$0xf]
        %v2178 = vld [vmem:[%s837 + $0x28] sm:$0xf]
        %v2179 = vld [vmem:[%s837 + $0x2c] sm:$0xf]
        %v2180 = vld [vmem:[%s837 + $0x30] sm:$0xf]
        %v2181 = vld [vmem:[%s837 + $0x34] sm:$0xf]
        %v2182 = vld [vmem:[%s837 + $0x38] sm:$0xf]
        %v2183 = vld [vmem:[%s837 + $0x3c] sm:$0xf]
        %v2184 = vpack.c.bf16 %v2167, %v2167
        %v2185 = vld [vmem:[%s840] sm:$0x1]
        %v2187 = vlaneseq
        %v2188 = vshrl.u32 %v2187, 7
        %v2189 = vsub.s32 0, %v2188
        %v2190 = vrot.slane %v2185, %v2189
        %v2208 = vunpack.c.l.b16 %v2168
        %v2209 = vunpack.c.l.b16 %v2169
        %v2210 = vunpack.c.l.b16 %v2170
        %v2211 = vunpack.c.l.b16 %v2171
        %v2212 = vunpack.c.l.b16 %v2172
        %v2213 = vunpack.c.l.b16 %v2173
        %v2214 = vunpack.c.l.b16 %v2174
        %v2215 = vunpack.c.l.b16 %v2175
        %v2216 = vunpack.c.l.b16 %v2176
        %v2217 = vunpack.c.l.b16 %v2177
        %v2218 = vunpack.c.l.b16 %v2178
        %v2219 = vunpack.c.l.b16 %v2179
        %v2220 = vunpack.c.l.b16 %v2180
        %v2221 = vunpack.c.l.b16 %v2181
        %v2222 = vunpack.c.l.b16 %v2182
        %v2223 = vunpack.c.l.b16 %v2183
        %v2224 = vpack.c.b16 %v2209, %v2208
        %v2225 = vpack.c.b16 %v2211, %v2210
        %v2226 = vpack.c.b16 %v2213, %v2212
        %v2227 = vpack.c.b16 %v2215, %v2214
        %v2228 = vpack.c.b16 %v2217, %v2216
        %v2229 = vpack.c.b16 %v2219, %v2218
        %v2230 = vpack.c.b16 %v2221, %v2220
        %v2231 = vpack.c.b16 %v2223, %v2222
        %2240 = vmatprep.subr.bf16.mxu0 0
        %2241 = vmatpush1.bf16.msra.mxu0 %v2224
        %2242 = vmatprep.subr.bf16.mxu0 0
        %2243 = vmatpush1.bf16.msra.mxu0 %v2225
        %2244 = vmatprep.subr.bf16.mxu0 0
        %2245 = vmatpush1.bf16.msra.mxu0 %v2226
        %2246 = vmatprep.subr.bf16.mxu0 0
        %2247 = vmatpush1.bf16.msra.mxu0 %v2227
        %2248 = vmatprep.subr.bf16.mxu0 0
        %2249 = vmatpush1.bf16.msra.mxu0 %v2228
        %2250 = vmatprep.subr.bf16.mxu0 0
        %2251 = vmatpush1.bf16.msra.mxu0 %v2229
        %2252 = vmatprep.subr.bf16.mxu0 0
        %2253 = vmatpush1.bf16.msra.mxu0 %v2230
        %2254 = vmatprep.subr.bf16.mxu0 0
        %2255 = vmatpush1.bf16.msra.mxu0 %v2231
        %2256 = vmatprep.subr.bf16.mxu0 0
        %2257 = vmatpush1.bf16.msra.mxu0 0
        %2258 = vmatprep.subr.bf16.mxu0 0
        %2259 = vmatpush1.bf16.msra.mxu0 0
        %2260 = vmatprep.subr.bf16.mxu0 0
        %2261 = vmatpush1.bf16.msra.mxu0 0
        %2262 = vmatprep.subr.bf16.mxu0 0
        %2263 = vmatpush1.bf16.msra.mxu0 0
        %2264 = vmatprep.subr.bf16.mxu0 0
        %2265 = vmatpush1.bf16.msra.mxu0 0
        %2266 = vmatprep.subr.bf16.mxu0 0
        %2267 = vmatpush1.bf16.msra.mxu0 0
        %2268 = vmatprep.subr.bf16.mxu0 0
        %2269 = vmatpush1.bf16.msra.mxu0 0
        %2270 = vmatprep.subr.bf16.mxu0 0
        %2271 = vmatpush1.bf16.msra.mxu0 0
        %2272 = vmatprep.mubr.bf16.mxu0 0
        %2273 = vmatmul.mubr.bf16.gmra.mrb[0].mxu0 %v2184
        %v2274 = vpop.f32.mrb[0].mxu0
        %v2275 = vadd.f32 %v2190, %v2274
        %v2276 = vpop.f32.mrb[0].mxu0
        %v2277 = vpop.f32.mrb[0].mxu0
        %v2278 = vpop.f32.mrb[0].mxu0
        %2279 = vdwg.mxu0
        %v2280 = vadd.f32 %v1408, %v2275
        %v2281 = vld [vmem:[%s843] sm:$0x1]
        %v2282 = vld [vmem:[%s846] sm:$0x1]
        %2283 = vadd.xlane.f32.xlu0 %v2280
        %v2284 = vpop.xlane.xlu0 %2283
        %v2285 = vmul.f32 %v2284, %v1417
        %v2286 = vsub.f32 %v2280, %v2285
        %v2287 = vmul.f32 %v2286, %v2286
        %2288 = vadd.xlane.f32.xlu0 %v2287
        %v2289 = vpop.xlane.xlu0 %2288
        %v2290 = vmul.f32 %v2289, %v1417
        %v2291 = vadd.f32 %v2290, 1e-12
        %v2292 = vrsqrt.pop %v2291
        %v2293 = vmul.f32 %v2286, %v2292
        %v2295 = vlaneseq
        %v2296 = vshrl.u32 %v2295, 7
        %v2297 = vsub.s32 0, %v2296
        %v2298 = vrot.slane %v2281, %v2297
        %v2300 = vmul.f32 %v2293, %v2298
        %v2302 = vlaneseq
        %v2303 = vshrl.u32 %v2302, 7
        %v2304 = vsub.s32 0, %v2303
        %v2305 = vrot.slane %v2282, %v2304
        %v2307 = vadd.f32 %v2300, %v2305
        %v2308 = vld [vmem:[%s851] sm:$0xff]
        %v2309 = vld [vmem:[%s851 + $0x8] sm:$0xff]
        %v2310 = vld [vmem:[%s851 + $0x10] sm:$0xff]
        %v2311 = vld [vmem:[%s851 + $0x18] sm:$0xff]
        %v2312 = vld [vmem:[%s851 + $0x20] sm:$0xff]
        %v2313 = vld [vmem:[%s851 + $0x28] sm:$0xff]
        %v2314 = vld [vmem:[%s851 + $0x30] sm:$0xff]
        %v2315 = vld [vmem:[%s851 + $0x38] sm:$0xff]
        %v2316 = vld [vmem:[%s851 + $0x40] sm:$0xff]
        %v2317 = vld [vmem:[%s851 + $0x48] sm:$0xff]
        %v2318 = vld [vmem:[%s851 + $0x50] sm:$0xff]
        %v2319 = vld [vmem:[%s851 + $0x58] sm:$0xff]
        %v2320 = vld [vmem:[%s851 + $0x60] sm:$0xff]
        %v2321 = vld [vmem:[%s851 + $0x68] sm:$0xff]
        %v2322 = vld [vmem:[%s851 + $0x70] sm:$0xff]
        %v2323 = vld [vmem:[%s851 + $0x78] sm:$0xff]
        %v2324 = vpack.c.bf16 %v2307, %v2307
        %v2325 = vld [vmem:[%s855] sm:$0x3]
        %v2327 = vlaneseq
        %v2328 = vshrl.u32 %v2327, 7
        %v2329 = vsub.s32 0, %v2328
        %v2330 = vrot.slane %v2325, %v2329
        %v2331 = vlaneseq
        %v2332 = vshrl.u32 %v2331, 7
        %v2333 = vsub.s32 1, %v2332
        %v2334 = vrot.slane %v2325, %v2333
        %v2353 = vunpack.c.l.b16 %v2308
        %v2354 = vunpack.c.h.b16 %v2308
        %v2355 = vunpack.c.l.b16 %v2309
        %v2356 = vunpack.c.h.b16 %v2309
        %v2357 = vunpack.c.l.b16 %v2310
        %v2358 = vunpack.c.h.b16 %v2310
        %v2359 = vunpack.c.l.b16 %v2311
        %v2360 = vunpack.c.h.b16 %v2311
        %v2361 = vunpack.c.l.b16 %v2312
        %v2362 = vunpack.c.h.b16 %v2312
        %v2363 = vunpack.c.l.b16 %v2313
        %v2364 = vunpack.c.h.b16 %v2313
        %v2365 = vunpack.c.l.b16 %v2314
        %v2366 = vunpack.c.h.b16 %v2314
        %v2367 = vunpack.c.l.b16 %v2315
        %v2368 = vunpack.c.h.b16 %v2315
        %v2369 = vunpack.c.l.b16 %v2316
        %v2370 = vunpack.c.h.b16 %v2316
        %v2371 = vunpack.c.l.b16 %v2317
        %v2372 = vunpack.c.h.b16 %v2317
        %v2373 = vunpack.c.l.b16 %v2318
        %v2374 = vunpack.c.h.b16 %v2318
        %v2375 = vunpack.c.l.b16 %v2319
        %v2376 = vunpack.c.h.b16 %v2319
        %v2377 = vunpack.c.l.b16 %v2320
        %v2378 = vunpack.c.h.b16 %v2320
        %v2379 = vunpack.c.l.b16 %v2321
        %v2380 = vunpack.c.h.b16 %v2321
        %v2381 = vunpack.c.l.b16 %v2322
        %v2382 = vunpack.c.h.b16 %v2322
        %v2383 = vunpack.c.l.b16 %v2323
        %v2384 = vunpack.c.h.b16 %v2323
        %v2385 = vpack.c.b16 %v2355, %v2353
        %v2386 = vpack.c.b16 %v2356, %v2354
        %v2387 = vpack.c.b16 %v2359, %v2357
        %v2388 = vpack.c.b16 %v2360, %v2358
        %v2389 = vpack.c.b16 %v2363, %v2361
        %v2390 = vpack.c.b16 %v2364, %v2362
        %v2391 = vpack.c.b16 %v2367, %v2365
        %v2392 = vpack.c.b16 %v2368, %v2366
        %v2393 = vpack.c.b16 %v2371, %v2369
        %v2394 = vpack.c.b16 %v2372, %v2370
        %v2395 = vpack.c.b16 %v2375, %v2373
        %v2396 = vpack.c.b16 %v2376, %v2374
        %v2397 = vpack.c.b16 %v2379, %v2377
        %v2398 = vpack.c.b16 %v2380, %v2378
        %v2399 = vpack.c.b16 %v2383, %v2381
        %v2400 = vpack.c.b16 %v2384, %v2382
        %2417 = vmatprep.subr.bf16.mxu0 %v2386
        %2418 = vmatpush1.bf16.msra.mxu0 %v2385
        %2419 = vmatprep.subr.bf16.mxu0 %v2388
        %2420 = vmatpush1.bf16.msra.mxu0 %v2387
        %2421 = vmatprep.subr.bf16.mxu0 %v2390
        %2422 = vmatpush1.bf16.msra.mxu0 %v2389
        %2423 = vmatprep.subr.bf16.mxu0 %v2392
        %2424 = vmatpush1.bf16.msra.mxu0 %v2391
        %2425 = vmatprep.subr.bf16.mxu0 %v2394
        %2426 = vmatpush1.bf16.msra.mxu0 %v2393
        %2427 = vmatprep.subr.bf16.mxu0 %v2396
        %2428 = vmatpush1.bf16.msra.mxu0 %v2395
        %2429 = vmatprep.subr.bf16.mxu0 %v2398
        %2430 = vmatpush1.bf16.msra.mxu0 %v2397
        %2431 = vmatprep.subr.bf16.mxu0 %v2400
        %2432 = vmatpush1.bf16.msra.mxu0 %v2399
        %2433 = vmatprep.subr.bf16.mxu0 0
        %2434 = vmatpush1.bf16.msra.mxu0 0
        %2435 = vmatprep.subr.bf16.mxu0 0
        %2436 = vmatpush1.bf16.msra.mxu0 0
        %2437 = vmatprep.subr.bf16.mxu0 0
        %2438 = vmatpush1.bf16.msra.mxu0 0
        %2439 = vmatprep.subr.bf16.mxu0 0
        %2440 = vmatpush1.bf16.msra.mxu0 0
        %2441 = vmatprep.subr.bf16.mxu0 0
        %2442 = vmatpush1.bf16.msra.mxu0 0
        %2443 = vmatprep.subr.bf16.mxu0 0
        %2444 = vmatpush1.bf16.msra.mxu0 0
        %2445 = vmatprep.subr.bf16.mxu0 0
        %2446 = vmatpush1.bf16.msra.mxu0 0
        %2447 = vmatprep.subr.bf16.mxu0 0
        %2448 = vmatpush1.bf16.msra.mxu0 0
        %2449 = vmatprep.mubr.bf16.mxu0 0
        %2450 = vmatmul.mubr.bf16.gmra.mrb[0].mxu0 %v2324
        %v2451 = vpop.f32.mrb[0].mxu0
        %v2452 = vadd.f32 %v2330, %v2451
        %v2453 = vpop.f32.mrb[0].mxu0
        %v2454 = vadd.f32 %v2334, %v2453
        %v2455 = vpop.f32.mrb[0].mxu0
        %v2456 = vpop.f32.mrb[0].mxu0
        %2457 = vdwg.mxu0
        %v2458 = vmul.f32 %v2452, 0.5
        %v2459 = vmul.f32 %v2454, 0.5
        %v2460 = vmul.f32 %v2452, 0.044715
        %v2461 = vmul.f32 %v2454, 0.044715
        %v2462 = vmul.f32 %v2460, %v2452
        %v2463 = vmul.f32 %v2461, %v2454
        %v2464 = vmul.f32 %v2462, %v2452
        %v2465 = vmul.f32 %v2463, %v2454
        %v2466 = vadd.f32 %v2452, %v2464
        %v2467 = vadd.f32 %v2454, %v2465
        %v2468 = vmul.f32 %v2466, 0.7978846
        %v2469 = vmul.f32 %v2467, 0.7978846
        %v2470 = vtanh.pop %v2468
        %v2471 = vtanh.pop %v2469
        %v2472 = vadd.f32 %v2470, 1.0
        %v2473 = vadd.f32 %v2471, 1.0
        %v2474 = vmul.f32 %v2458, %v2472
        %v2475 = vmul.f32 %v2459, %v2473
        %v2476 = vld [vmem:[%s860] sm:$0xf]
        %v2477 = vld [vmem:[%s860 + $0x4] sm:$0xf]
        %v2478 = vld [vmem:[%s860 + $0x8] sm:$0xf]
        %v2479 = vld [vmem:[%s860 + $0xc] sm:$0xf]
        %v2480 = vld [vmem:[%s860 + $0x10] sm:$0xf]
        %v2481 = vld [vmem:[%s860 + $0x14] sm:$0xf]
        %v2482 = vld [vmem:[%s860 + $0x18] sm:$0xf]
        %v2483 = vld [vmem:[%s860 + $0x1c] sm:$0xf]
        %v2484 = vld [vmem:[%s860 + $0x20] sm:$0xf]
        %v2485 = vld [vmem:[%s860 + $0x24] sm:$0xf]
        %v2486 = vld [vmem:[%s860 + $0x28] sm:$0xf]
        %v2487 = vld [vmem:[%s860 + $0x2c] sm:$0xf]
        %v2488 = vld [vmem:[%s860 + $0x30] sm:$0xf]
        %v2489 = vld [vmem:[%s860 + $0x34] sm:$0xf]
        %v2490 = vld [vmem:[%s860 + $0x38] sm:$0xf]
        %v2491 = vld [vmem:[%s860 + $0x3c] sm:$0xf]
        %v2492 = vld [vmem:[%s860 + $0x40] sm:$0xf]
        %v2493 = vld [vmem:[%s860 + $0x44] sm:$0xf]
        %v2494 = vld [vmem:[%s860 + $0x48] sm:$0xf]
        %v2495 = vld [vmem:[%s860 + $0x4c] sm:$0xf]
        %v2496 = vld [vmem:[%s860 + $0x50] sm:$0xf]
        %v2497 = vld [vmem:[%s860 + $0x54] sm:$0xf]
        %v2498 = vld [vmem:[%s860 + $0x58] sm:$0xf]
        %v2499 = vld [vmem:[%s860 + $0x5c] sm:$0xf]
        %v2500 = vld [vmem:[%s860 + $0x60] sm:$0xf]
        %v2501 = vld [vmem:[%s860 + $0x64] sm:$0xf]
        %v2502 = vld [vmem:[%s860 + $0x68] sm:$0xf]
        %v2503 = vld [vmem:[%s860 + $0x6c] sm:$0xf]
        %v2504 = vld [vmem:[%s860 + $0x70] sm:$0xf]
        %v2505 = vld [vmem:[%s860 + $0x74] sm:$0xf]
        %v2506 = vld [vmem:[%s860 + $0x78] sm:$0xf]
        %v2507 = vld [vmem:[%s860 + $0x7c] sm:$0xf]
        %v2508 = vpack.c.bf16 %v2474, %v2474
        %v2509 = vpack.c.bf16 %v2475, %v2475
        %v2510 = vld [vmem:[%s863] sm:$0x1]
        %v2512 = vlaneseq
        %v2513 = vshrl.u32 %v2512, 7
        %v2514 = vsub.s32 0, %v2513
        %v2515 = vrot.slane %v2510, %v2514
        %v2549 = vunpack.c.l.b16 %v2476
        %v2550 = vunpack.c.l.b16 %v2477
        %v2551 = vunpack.c.l.b16 %v2478
        %v2552 = vunpack.c.l.b16 %v2479
        %v2553 = vunpack.c.l.b16 %v2480
        %v2554 = vunpack.c.l.b16 %v2481
        %v2555 = vunpack.c.l.b16 %v2482
        %v2556 = vunpack.c.l.b16 %v2483
        %v2557 = vunpack.c.l.b16 %v2484
        %v2558 = vunpack.c.l.b16 %v2485
        %v2559 = vunpack.c.l.b16 %v2486
        %v2560 = vunpack.c.l.b16 %v2487
        %v2561 = vunpack.c.l.b16 %v2488
        %v2562 = vunpack.c.l.b16 %v2489
        %v2563 = vunpack.c.l.b16 %v2490
        %v2564 = vunpack.c.l.b16 %v2491
        %v2565 = vunpack.c.l.b16 %v2492
        %v2566 = vunpack.c.l.b16 %v2493
        %v2567 = vunpack.c.l.b16 %v2494
        %v2568 = vunpack.c.l.b16 %v2495
        %v2569 = vunpack.c.l.b16 %v2496
        %v2570 = vunpack.c.l.b16 %v2497
        %v2571 = vunpack.c.l.b16 %v2498
        %v2572 = vunpack.c.l.b16 %v2499
        %v2573 = vunpack.c.l.b16 %v2500
        %v2574 = vunpack.c.l.b16 %v2501
        %v2575 = vunpack.c.l.b16 %v2502
        %v2576 = vunpack.c.l.b16 %v2503
        %v2577 = vunpack.c.l.b16 %v2504
        %v2578 = vunpack.c.l.b16 %v2505
        %v2579 = vunpack.c.l.b16 %v2506
        %v2580 = vunpack.c.l.b16 %v2507
        %v2581 = vpack.c.b16 %v2550, %v2549
        %v2582 = vpack.c.b16 %v2552, %v2551
        %v2583 = vpack.c.b16 %v2554, %v2553
        %v2584 = vpack.c.b16 %v2556, %v2555
        %v2585 = vpack.c.b16 %v2558, %v2557
        %v2586 = vpack.c.b16 %v2560, %v2559
        %v2587 = vpack.c.b16 %v2562, %v2561
        %v2588 = vpack.c.b16 %v2564, %v2563
        %v2589 = vpack.c.b16 %v2566, %v2565
        %v2590 = vpack.c.b16 %v2568, %v2567
        %v2591 = vpack.c.b16 %v2570, %v2569
        %v2592 = vpack.c.b16 %v2572, %v2571
        %v2593 = vpack.c.b16 %v2574, %v2573
        %v2594 = vpack.c.b16 %v2576, %v2575
        %v2595 = vpack.c.b16 %v2578, %v2577
        %v2596 = vpack.c.b16 %v2580, %v2579
        %2613 = vmatprep.subr.bf16.mxu0 0
        %2614 = vmatpush1.bf16.msra.mxu0 %v2581
        %2615 = vmatprep.subr.bf16.mxu0 0
        %2616 = vmatpush1.bf16.msra.mxu0 %v2582
        %2617 = vmatprep.subr.bf16.mxu0 0
        %2618 = vmatpush1.bf16.msra.mxu0 %v2583
        %2619 = vmatprep.subr.bf16.mxu0 0
        %2620 = vmatpush1.bf16.msra.mxu0 %v2584
        %2621 = vmatprep.subr.bf16.mxu0 0
        %2622 = vmatpush1.bf16.msra.mxu0 %v2585
        %2623 = vmatprep.subr.bf16.mxu0 0
        %2624 = vmatpush1.bf16.msra.mxu0 %v2586
        %2625 = vmatprep.subr.bf16.mxu0 0
        %2626 = vmatpush1.bf16.msra.mxu0 %v2587
        %2627 = vmatprep.subr.bf16.mxu0 0
        %2628 = vmatpush1.bf16.msra.mxu0 %v2588
        %2629 = vmatprep.subr.bf16.mxu0 0
        %2630 = vmatpush1.bf16.msra.mxu0 %v2589
        %2631 = vmatprep.subr.bf16.mxu0 0
        %2632 = vmatpush1.bf16.msra.mxu0 %v2590
        %2633 = vmatprep.subr.bf16.mxu0 0
        %2634 = vmatpush1.bf16.msra.mxu0 %v2591
        %2635 = vmatprep.subr.bf16.mxu0 0
        %2636 = vmatpush1.bf16.msra.mxu0 %v2592
        %2637 = vmatprep.subr.bf16.mxu0 0
        %2638 = vmatpush1.bf16.msra.mxu0 %v2593
        %2639 = vmatprep.subr.bf16.mxu0 0
        %2640 = vmatpush1.bf16.msra.mxu0 %v2594
        %2641 = vmatprep.subr.bf16.mxu0 0
        %2642 = vmatpush1.bf16.msra.mxu0 %v2595
        %2643 = vmatprep.subr.bf16.mxu0 0
        %2644 = vmatpush1.bf16.msra.mxu0 %v2596
        %2645 = vmatprep.mubr.bf16.mxu0 %v2509
        %2646 = vmatmul.mubr.bf16.gmra.mrb[0].mxu0 %v2508
        %v2647 = vpop.f32.mrb[0].mxu0
        %v2648 = vadd.f32 %v2515, %v2647
        %v2649 = vpop.f32.mrb[0].mxu0
        %v2650 = vpop.f32.mrb[0].mxu0
        %v2651 = vpop.f32.mrb[0].mxu0
        %2652 = vdwg.mxu0
        %v2653 = vadd.f32 %v2280, %v2648
        %2654 = vst [vmem:[#allocation2] sm:$0xff] %v2653
        %p2655 = scmp.eq.s32.totalorder %s40, 1
        // Predicated region
        $region109: #{vit_forward.1} parent=103 // pred_check
          %p2656 = pneg %p2655
        $region110: #{vit_forward.1} parent=103 // pred_check_branch
          %2658 = sbr.rel (%p2656) target = $region112
        $region111: #{vit_forward.1} parent=103 // pred_region
          %v2659 = vld [vmem:[%s17] sm:$0x1]
          %v2660 = vld [vmem:[%s18] sm:$0x1]
          %vm2661 = vcmask 1040384
          %v2662 = vsel %vm2661, %v2653, 0.0
          %2663 = vadd.xlane.f32.xlu0 %v2662
          %v2664 = vpop.xlane.xlu0 %2663
          %v2665 = vmul.f32 %v2664, %v1417
          %v2666 = vsub.f32 %v2653, %v2665
          %v2667 = vmul.f32 %v2666, %v2666
          %v2668 = vsel %vm2661, %v2667, 0.0
          %2669 = vadd.xlane.f32.xlu0 %v2668
          %v2670 = vpop.xlane.xlu0 %2669
          %v2671 = vmul.f32 %v2670, %v1417
          %v2672 = vadd.f32 %v2671, 1e-12
          %v2673 = vrsqrt.pop %v2672
          %v2674 = vmul.f32 %v2666, %v2673
          %v2675 = vmul.f32 %v2674, %v2659
          %v2676 = vadd.f32 %v2675, %v2660
          %v2677 = vld [vmem:[%s19] sm:$0xf]
          %v2678 = vld [vmem:[%s19 + $0x4] sm:$0xf]
          %v2679 = vld [vmem:[%s19 + $0x8] sm:$0xf]
          %v2680 = vld [vmem:[%s19 + $0xc] sm:$0xf]
          %v2681 = vld [vmem:[%s19 + $0x10] sm:$0xf]
          %v2682 = vld [vmem:[%s19 + $0x14] sm:$0xf]
          %v2683 = vld [vmem:[%s19 + $0x18] sm:$0xf]
          %v2684 = vld [vmem:[%s19 + $0x1c] sm:$0xf]
          %v2685 = vld [vmem:[%s19 + $0x20] sm:$0xf]
          %v2686 = vld [vmem:[%s19 + $0x24] sm:$0xf]
          %v2687 = vld [vmem:[%s19 + $0x28] sm:$0xf]
          %v2688 = vld [vmem:[%s19 + $0x2c] sm:$0xf]
          %v2689 = vld [vmem:[%s19 + $0x30] sm:$0xf]
          %v2690 = vld [vmem:[%s19 + $0x34] sm:$0xf]
          %v2691 = vld [vmem:[%s19 + $0x38] sm:$0xf]
          %v2692 = vld [vmem:[%s19 + $0x3c] sm:$0xf]
          %v2693 = vpack.c.bf16 %v2676, %v2676
          %v2694 = vld [vmem:[%s20] sm:$0x1]
          %v2711 = vunpack.c.l.b16 %v2677
          %v2712 = vunpack.c.l.b16 %v2678
          %v2713 = vunpack.c.l.b16 %v2679
          %v2714 = vunpack.c.l.b16 %v2680
          %v2715 = vunpack.c.l.b16 %v2681
          %v2716 = vunpack.c.l.b16 %v2682
          %v2717 = vunpack.c.l.b16 %v2683
          %v2718 = vunpack.c.l.b16 %v2684
          %v2719 = vunpack.c.l.b16 %v2685
          %v2720 = vunpack.c.l.b16 %v2686
          %v2721 = vunpack.c.l.b16 %v2687
          %v2722 = vunpack.c.l.b16 %v2688
          %v2723 = vunpack.c.l.b16 %v2689
          %v2724 = vunpack.c.l.b16 %v2690
          %v2725 = vunpack.c.l.b16 %v2691
          %v2726 = vunpack.c.l.b16 %v2692
          %v2727 = vpack.c.b16 %v2712, %v2711
          %v2728 = vpack.c.b16 %v2714, %v2713
          %v2729 = vpack.c.b16 %v2716, %v2715
          %v2730 = vpack.c.b16 %v2718, %v2717
          %v2731 = vpack.c.b16 %v2720, %v2719
          %v2732 = vpack.c.b16 %v2722, %v2721
          %v2733 = vpack.c.b16 %v2724, %v2723
          %v2734 = vpack.c.b16 %v2726, %v2725
          %2743 = vmatprep.subr.bf16.mxu0 0
          %2744 = vmatpush1.bf16.msra.mxu0 %v2727
          %2745 = vmatprep.subr.bf16.mxu0 0
          %2746 = vmatpush1.bf16.msra.mxu0 %v2728
          %2747 = vmatprep.subr.bf16.mxu0 0
          %2748 = vmatpush1.bf16.msra.mxu0 %v2729
          %2749 = vmatprep.subr.bf16.mxu0 0
          %2750 = vmatpush1.bf16.msra.mxu0 %v2730
          %2751 = vmatprep.subr.bf16.mxu0 0
          %2752 = vmatpush1.bf16.msra.mxu0 %v2731
          %2753 = vmatprep.subr.bf16.mxu0 0
          %2754 = vmatpush1.bf16.msra.mxu0 %v2732
          %2755 = vmatprep.subr.bf16.mxu0 0
          %2756 = vmatpush1.bf16.msra.mxu0 %v2733
          %2757 = vmatprep.subr.bf16.mxu0 0
          %2758 = vmatpush1.bf16.msra.mxu0 %v2734
          %2759 = vmatprep.subr.bf16.mxu0 0
          %2760 = vmatpush1.bf16.msra.mxu0 0
          %2761 = vmatprep.subr.bf16.mxu0 0
          %2762 = vmatpush1.bf16.msra.mxu0 0
          %2763 = vmatprep.subr.bf16.mxu0 0
          %2764 = vmatpush1.bf16.msra.mxu0 0
          %2765 = vmatprep.subr.bf16.mxu0 0
          %2766 = vmatpush1.bf16.msra.mxu0 0
          %2767 = vmatprep.subr.bf16.mxu0 0
          %2768 = vmatpush1.bf16.msra.mxu0 0
          %2769 = vmatprep.subr.bf16.mxu0 0
          %2770 = vmatpush1.bf16.msra.mxu0 0
          %2771 = vmatprep.subr.bf16.mxu0 0
          %2772 = vmatpush1.bf16.msra.mxu0 0
          %2773 = vmatprep.subr.bf16.mxu0 0
          %2774 = vmatpush1.bf16.msra.mxu0 0
          %2775 = vmatprep.mubr.bf16.mxu0 0
          %2776 = vmatmul.mubr.bf16.gmra.mrb[0].mxu0 %v2693
          %v2777 = vpop.f32.mrb[0].mxu0
          %v2778 = vadd.f32 %v2694, %v2777
          %v2779 = vpop.f32.mrb[0].mxu0
          %v2780 = vpop.f32.mrb[0].mxu0
          %v2781 = vpop.f32.mrb[0].mxu0
          %2782 = vdwg.mxu0
          %2783 = vst [vmem:[%s812] sm:$0x1] %v2778
        $region112: #{vit_forward.1} parent=103 // pred_fallthru
          _
        %s2784 = sand.u32 %s561, 1
        %s2785 = scalar_lea.sflag [#allocation4], %s2784
        %s2786 = sand.u32 %s561, 1
        %s2787 = scalar_lea.vmem [#allocation3], %s2786
        // Predicated region
        $region113: #{vit_forward.1} parent=103 // pred_check
          %p2788 = pneg %p571
        $region114: #{vit_forward.1} parent=103 // pred_check_branch
          %2790 = sbr.rel (%p2788) target = $region116
        $region115: #{vit_forward.1} parent=103 // pred_region
          %s2792 = ssub.s32 16, 16
          %2793 = vsyncadd %s2785, %s2792
          %s2794 = smul.addr %s39, 16
          %s2795 = scalar_lea.hbm %s21, %s2794
          %s2797 = sshll.u32 %s2787, 4
          %s2798 = int_to_ptr.vmem [resolvable:$true] %s2797
          %2800 = dma.vmem_to_hbm [thread:$0]  %s2798, 16, %s2795, %s2785
        $region116: #{vit_forward.1} parent=103 // pred_fallthru
          _
      $region104: #{vit_forward.1} parent=5 // pred_fallthru
        _
      %p2801 = scmp.le.s32.totalorder 2, %s30
      // Predicated region
      $region117: #{vit_forward.1} parent=5 // pred_check
        %p2802 = pneg %p2801
      $region118: #{vit_forward.1} parent=5 // pred_check_branch
        %2804 = sbr.rel (%p2802) target = $region120
      $region119: #{vit_forward.1} parent=5 // pred_region
        %s2805 = ssub.s32 %s30, 2
        // Predicated region
        $region121: #{vit_forward.1} parent=119 // pred_check
          %p2806 = pneg %p577
        $region122: #{vit_forward.1} parent=119 // pred_check_branch
          %2808 = sbr.rel (%p2806) target = $region124
        $region123: #{vit_forward.1} parent=119 // pred_region
          %s2809 = sand.u32 %s562, 1
          %s2810 = scalar_lea.sflag [#allocation4], %s2809
          %s2811 = sand.u32 %s562, 1
          %s2812 = scalar_lea.vmem [#allocation3], %s2811
          %2813 = dma.done %s2810, 16
        $region124: #{vit_forward.1} parent=119 // pred_fallthru
          _
      $region120: #{vit_forward.1} parent=5 // pred_fallthru
        _
    $region6: #{vit_forward.1} parent=1 // loop_footer
      %s34 = sadd.s32 1, %s30
    $region7: #{vit_forward.1} parent=1 // loop_footer_branch
      %29 = sbr.rel target = $region3
    $region8: #{vit_forward.1} parent=1 // loop_exit
      _
    %2814 = vsyncpa [#allocation4], 1
    %s2815 = scalar_lea.sflag [#allocation4], 1
    %2816 = vsyncpa %s2815, 1

</llo_original>
